<compile_context>
chip_gen: v7x
topology: tpu7x:2x2x1
jax: 0.10.0
libtpu: 0.0.40
codegen_flags: <defaults>
</compile_context>

<pallas_src>
import functools
import math

import jax
import jax.numpy as jnp
from jax.experimental import pallas as pl
from jax.experimental.pallas import tpu as pltpu


VMEM_LIMIT_BYTES = 48 * 1024 * 1024


# ----------------------------- tiling helpers -----------------------------

def _row_tile(m, cap=512):
    """Largest row tile (2nd-to-last dim, multiple of 8) that divides m, up to cap."""
    for t in (512, 256, 128, 64, 32, 16, 8):
        if t <= cap and m % t == 0:
            return t
    return m


def _col_tile(n, cap=512):
    """Largest lane tile (last dim, multiple of 128) that divides n, else full n."""
    for t in (512, 384, 256, 128):
        if t <= cap and n % t == 0:
            return t
    return n


def _round_up(x, m):
    return ((x + m - 1) // m) * m


# --------------------- single-buffered resident BlockSpecs ---------------------

def _probe_copy_kernel(x_ref, o_ref):
    o_ref[...] = x_ref[...]


def _probe_buffered_support():
    """Check end-to-end that pipeline_mode=pl.Buffered(1) works on this backend."""
    if not hasattr(pl, "Buffered"):
        return False
    try:
        spec = pl.BlockSpec((8, 128), lambda i: (0, 0), pipeline_mode=pl.Buffered(1))
        out = pl.pallas_call(
            _probe_copy_kernel,
            out_shape=jax.ShapeDtypeStruct((8, 128), jnp.float32),
            grid=(1,),
            in_specs=[spec],
            out_specs=pl.BlockSpec((8, 128), lambda i: (0, 0)),
        )(jnp.zeros((8, 128), jnp.float32))
        jax.block_until_ready(out)
        return True
    except Exception:
        return False


_RESIDENT_BUFFERED = _probe_buffered_support()


def _resident(shape):
    """BlockSpec for a grid-invariant (resident) operand: single-buffered if possible."""
    index_map = lambda *_: (0,) * len(shape)
    if _RESIDENT_BUFFERED:
        return pl.BlockSpec(shape, index_map, pipeline_mode=pl.Buffered(1))
    return pl.BlockSpec(shape, index_map)


# ----------------------------- attention kernel -----------------------------

def _mha_ln_kernel(*refs, n_head, scale, causal, tq, self_attn):
    """Fused attention block for one (batch, query-tile) grid step.

    o = LayerNorm(x_q + Wo(MHA(x_q, x_kv)))   (post-LN residual block)
    """
    if self_attn:
        (x_ref, kval_ref, wq_ref, bq_ref, wkv_ref, bkv_ref,
         wo_ref, bo_ref, g_ref, beta_ref, o_ref, kv_scr, attn_scr) = refs
        xkv_ref = x_ref
    else:
        (xq_ref, xkv_ref, kval_ref, wq_ref, bq_ref, wkv_ref, bkv_ref,
         wo_ref, bo_ref, g_ref, beta_ref, o_ref, kv_scr, attn_scr) = refs

    qi = pl.program_id(1)
    d = wq_ref.shape[0]
    dh = d // n_head
    sk = kv_scr.shape[0]

    # Fused K/V projection of the full key sequence: computed once per batch
    # element (qi == 0), cached as bf16 in VMEM scratch, reused by all q-tiles.
    @pl.when(qi == 0)
    def _():
        kv = jnp.dot(xkv_ref[...].astype(jnp.bfloat16), wkv_ref[...],
                     preferred_element_type=jnp.float32) + bkv_ref[...]
        kv_scr[...] = kv.astype(jnp.bfloat16)

    if self_attn:
        # Query tile sliced from the resident full-sequence block (x passed once).
        q_start = pl.multiple_of(qi * tq, tq)
        xq = x_ref[pl.ds(q_start, tq), :]                        # [tq, D] f32
    else:
        xq = xq_ref[...]                                         # [tq, D] f32

    # Q projection; 1/sqrt(dh) folded into q once (not per [tq, Sk] score matrix).
    q = (jnp.dot(xq.astype(jnp.bfloat16), wq_ref[...],
                 preferred_element_type=jnp.float32) + bq_ref[...]) * scale
    qb = q.astype(jnp.bfloat16)                                  # cast once, pre-loop

    # Additive mask bias: 0 for valid keys, -1e9 otherwise (+ causal constraint).
    bias = (kval_ref[...] - 1.0) * 1e9                           # [1, Sk]
    if causal:
        row = jax.lax.broadcasted_iota(jnp.int32, (tq, sk), 0) + qi * tq
        col = jax.lax.broadcasted_iota(jnp.int32, (tq, sk), 1)
        bias = jnp.where(col <= row, bias, jnp.float32(-1e9))    # [tq, Sk]

    # TODO(synk): for very long Sk, tile Sk with an online-softmax (flash)
    # accumulator instead of materializing the full [tq, Sk] score matrix.
    for h in range(n_head):                                      # static unroll
        sl = slice(h * dh, (h + 1) * dh)
        s = jax.lax.dot_general(qb[:, sl], kv_scr[:, sl],
                                (((1,), (1,)), ((), ())),
                                preferred_element_type=jnp.float32)      # [tq, Sk]
        s = s + bias
        m = jnp.max(s, axis=-1, keepdims=True)
        p = jnp.exp(s - m)
        l = jnp.sum(p, axis=-1, keepdims=True)                           # [tq, 1]
        pv = jnp.dot(p.astype(jnp.bfloat16),
                     kv_scr[:, d + h * dh:d + (h + 1) * dh],
                     preferred_element_type=jnp.float32)                 # [tq, dh]
        # Normalize after PV (EUP reciprocal; [tq, dh] multiplies, not [tq, Sk]
        # divides) and write the head directly into the [tq, D] scratch (no concat).
        attn_scr[:, sl] = pv * pl.reciprocal(l, approx=True)

    out = jnp.dot(attn_scr[...].astype(jnp.bfloat16), wo_ref[...],
                  preferred_element_type=jnp.float32) + bo_ref[...]

    y = xq + out                                                         # residual
    mu = jnp.mean(y, axis=-1, keepdims=True)
    var = jnp.mean(jnp.square(y - mu), axis=-1, keepdims=True)
    o_ref[...] = (y - mu) * jax.lax.rsqrt(var + 1e-5) * g_ref[...] + beta_ref[...]


def mha_block(x_q, x_kv, key_valid, p, ln_g, ln_b, *, n_head, causal, self_attn):
    """x_q: [B,Sq,D], x_kv: [B,Sk,D], key_valid: [B,1,Sk] (1.0 valid / 0.0 pad).

    If self_attn, x_kv must be x_q and is only passed to the kernel once.
    """
    B, Sq, D = x_q.shape
    Sk = x_kv.shape[1]
    tq = _row_tile(Sq, cap=256)
    n_qt = Sq // tq
    scale = 1.0 / math.sqrt(D // n_head)
    kernel = functools.partial(_mha_ln_kernel, n_head=n_head, scale=scale,
                               causal=causal, tq=tq, self_attn=self_attn)

    if self_attn:
        x_specs = [pl.BlockSpec((None, Sq, D), lambda b, q: (b, 0, 0))]   # x (once)
        x_inputs = [x_q]
    else:
        x_specs = [pl.BlockSpec((None, tq, D), lambda b, q: (b, q, 0)),   # x_q tile
                   pl.BlockSpec((None, Sk, D), lambda b, q: (b, 0, 0))]   # x_kv full
        x_inputs = [x_q, x_kv]

    in_specs = x_specs + [
        pl.BlockSpec((None, 1, Sk), lambda b, q: (b, 0, 0)),   # key_valid
        _resident((D, D)),          # wq   (bf16, resident)
        _resident((1, D)),          # bq
        _resident((D, 2 * D)),      # wkv  (bf16, resident)
        _resident((1, 2 * D)),      # bkv
        _resident((D, D)),          # wo   (bf16, resident)
        _resident((1, D)),          # bo
        _resident((1, D)),          # ln gamma
        _resident((1, D)),          # ln beta
    ]
    inputs = x_inputs + [
        key_valid, p["wq"], p["bq"].reshape(1, D), p["wkv"],
        p["bkv"].reshape(1, 2 * D), p["wo"], p["bo"].reshape(1, D),
        ln_g.reshape(1, D), ln_b.reshape(1, D)]

    return pl.pallas_call(
        kernel,
        out_shape=jax.ShapeDtypeStruct((B, Sq, D), jnp.float32),
        grid=(B, n_qt),
        in_specs=in_specs,
        out_specs=pl.BlockSpec((None, tq, D), lambda b, q: (b, q, 0)),
        scratch_shapes=[pltpu.VMEM((Sk, 2 * D), jnp.bfloat16),   # cached K|V
                        pltpu.VMEM((tq, D), jnp.float32)],       # head outputs
        compiler_params=pltpu.CompilerParams(
            dimension_semantics=("parallel", "arbitrary"),
            vmem_limit_bytes=VMEM_LIMIT_BYTES),
    )(*inputs)


# ----------------------------- FFN kernel -----------------------------

def _ffn_ln_kernel(x_ref, w1_ref, b1_ref, w2_ref, b2_ref, g_ref, beta_ref, o_ref):
    """o = LayerNorm(x + (relu(x@w1+b1) @ w2 + b2))  for a row-tile of x."""
    x = x_ref[...]                                                       # [tm, D]
    h = jnp.dot(x.astype(jnp.bfloat16), w1_ref[...],
                preferred_element_type=jnp.float32) + b1_ref[...]
    h = jnp.maximum(h, 0.0)                                              # ReLU
    f = jnp.dot(h.astype(jnp.bfloat16), w2_ref[...],
                preferred_element_type=jnp.float32) + b2_ref[...]
    y = x + f                                                            # residual
    mu = jnp.mean(y, axis=-1, keepdims=True)
    var = jnp.mean(jnp.square(y - mu), axis=-1, keepdims=True)
    o_ref[...] = (y - mu) * jax.lax.rsqrt(var + 1e-5) * g_ref[...] + beta_ref[...]


def ffn_ln(x2d, w1, b1, w2, b2, g, beta):
    """Fused position-wise FFN + residual + LayerNorm, row-tiled over M."""
    M, D = x2d.shape
    H = w1.shape[1]
    tm = _row_tile(M, cap=256)        # bound the live [tm, H] intermediate
    return pl.pallas_call(
        _ffn_ln_kernel,
        out_shape=jax.ShapeDtypeStruct((M, D), jnp.float32),
        grid=(M // tm,),
        in_specs=[
            pl.BlockSpec((tm, D), lambda i: (i, 0)),
            _resident((D, H)),          # w1 (bf16, resident)
            _resident((1, H)),
            _resident((H, D)),          # w2 (bf16, resident)
            _resident((1, D)),
            _resident((1, D)),
            _resident((1, D)),
        ],
        out_specs=pl.BlockSpec((tm, D), lambda i: (i, 0)),
        compiler_params=pltpu.CompilerParams(
            dimension_semantics=("parallel",),
            vmem_limit_bytes=VMEM_LIMIT_BYTES),
    )(x2d, w1, b1.reshape(1, H), w2, b2.reshape(1, D),
      g.reshape(1, D), beta.reshape(1, D))


# ----------------------------- tied logits kernel -----------------------------

def _logits_kernel(y_ref, e_ref, o_ref):
    # Contract feature axes directly: y [tm, D] x emb [tv, D] -> [tm, tv].
    o_ref[...] = jax.lax.dot_general(
        y_ref[...].astype(jnp.bfloat16), e_ref[...],
        (((1,), (1,)), ((), ())), preferred_element_type=jnp.float32)


def tied_logits(y2d, emb_bf16):
    """logits = y @ emb^T without materializing emb.T (weight-tied head)."""
    M, D = y2d.shape
    V = emb_bf16.shape[0]
    Mp = _round_up(M, 8)
    Vp = _round_up(V, 128)            # keep the output lane-dense (unmasked vst)
    y_p = y2d if Mp == M else jnp.pad(y2d, ((0, Mp - M), (0, 0)))
    e_p = emb_bf16 if Vp == V else jnp.pad(emb_bf16, ((0, Vp - V), (0, 0)))
    tm = _row_tile(Mp, cap=512)
    tv = _col_tile(Vp, cap=512)
    out = pl.pallas_call(
        _logits_kernel,
        out_shape=jax.ShapeDtypeStruct((Mp, Vp), jnp.float32),
        grid=(Mp // tm, Vp // tv),
        in_specs=[
            pl.BlockSpec((tm, D), lambda i, j: (i, 0)),
            pl.BlockSpec((tv, D), lambda i, j: (j, 0)),   # bf16 emb stream
        ],
        out_specs=pl.BlockSpec((tm, tv), lambda i, j: (i, j)),
        compiler_params=pltpu.CompilerParams(
            dimension_semantics=("parallel", "parallel"),
            vmem_limit_bytes=VMEM_LIMIT_BYTES),
    )(y_p, e_p)
    return out[:M, :V]


# ----------------------------- model glue (plain JAX) -----------------------------

def sinusoidal_pos_encoding(max_len, d_model):
    pos = jnp.arange(max_len, dtype=jnp.float32)[:, None]
    i = jnp.arange(d_model, dtype=jnp.float32)[None, :]
    angle = pos / jnp.power(10000.0, (2.0 * jnp.floor(i / 2.0)) / d_model)
    even = (jnp.arange(d_model)[None, :] % 2) == 0
    return jnp.where(even, jnp.sin(angle), jnp.cos(angle)).astype(jnp.float32)


def embed(tokens, emb_table, pos_enc):
    # TODO(synk): dropout (p_dropout) omitted — deterministic / eval-mode forward.
    # TODO(synk): embedding gather left as JAX glue (no rectangular BlockSpec form).
    B, S = tokens.shape
    tok = jnp.take(emb_table, tokens, axis=0).astype(jnp.float32)
    return tok + pos_enc[None, :S, :]


def transformer_forward(params, src, tgt, *, n_head, src_pad_idx, tgt_pad_idx):
    B, Ss = src.shape
    _, St = tgt.shape
    d_model = params["pos"].shape[1]

    # Per-key validity vectors (additive mask bias is built inside the kernel).
    src_valid = (src != src_pad_idx).astype(jnp.float32)[:, None, :]   # [B,1,Ss]
    tgt_valid = (tgt != tgt_pad_idx).astype(jnp.float32)[:, None, :]   # [B,1,St]

    # ---- encoder ----
    x = embed(src, params["emb"], params["pos"])
    for lyr in params["enc_layers"]:
        x = mha_block(x, x, src_valid, lyr["attn"], lyr["ln1_g"], lyr["ln1_b"],
                      n_head=n_head, causal=False, self_attn=True)
        x = ffn_ln(x.reshape(B * Ss, d_model),
                   lyr["w1"], lyr["b1"], lyr["w2"], lyr["b2"],
                   lyr["ln2_g"], lyr["ln2_b"]).reshape(B, Ss, d_model)
    enc = x

    # ---- decoder (shared embedding; logits head weight-tied) ----
    y = embed(tgt, params["emb"], params["pos"])
    for lyr in params["dec_layers"]:
        y = mha_block(y, y, tgt_valid, lyr["self_attn"], lyr["ln1_g"], lyr["ln1_b"],
                      n_head=n_head, causal=True, self_attn=True)
        y = mha_block(y, enc, src_valid, lyr["cross_attn"], lyr["ln2_g"],
                      lyr["ln2_b"], n_head=n_head, causal=False, self_attn=False)
        y = ffn_ln(y.reshape(B * St, d_model),
                   lyr["w1"], lyr["b1"], lyr["w2"], lyr["b2"],
                   lyr["ln3_g"], lyr["ln3_b"]).reshape(B, St, d_model)

    logits = tied_logits(y.reshape(B * St, d_model), params["emb"])
    return logits.reshape(B, St, -1)


# ----------------------------- deterministic init -----------------------------

def xavier_uniform(key, shape, dtype=jnp.float32):
    fan_in, fan_out = shape
    lim = math.sqrt(6.0 / (fan_in + fan_out))
    return jax.random.uniform(key, shape, jnp.float32, -lim, lim).astype(dtype)


def init_attn_params(key, d_model):
    ks = jax.random.split(key, 4)
    wk = xavier_uniform(ks[1], (d_model, d_model))
    wv = xavier_uniform(ks[2], (d_model, d_model))
    return {"wq": xavier_uniform(ks[0], (d_model, d_model), jnp.bfloat16),
            "bq": jnp.zeros((d_model,), jnp.float32),
            "wkv": jnp.concatenate([wk, wv], axis=1).astype(jnp.bfloat16),
            "bkv": jnp.zeros((2 * d_model,), jnp.float32),
            "wo": xavier_uniform(ks[3], (d_model, d_model), jnp.bfloat16),
            "bo": jnp.zeros((d_model,), jnp.float32)}


def init_enc_layer(key, d_model, d_hidden):
    ks = jax.random.split(key, 3)
    return {"attn": init_attn_params(ks[0], d_model),
            "ln1_g": jnp.ones((d_model,), jnp.float32),
            "ln1_b": jnp.zeros((d_model,), jnp.float32),
            "w1": xavier_uniform(ks[1], (d_model, d_hidden), jnp.bfloat16),
            "b1": jnp.zeros((d_hidden,), jnp.float32),
            "w2": xavier_uniform(ks[2], (d_hidden, d_model), jnp.bfloat16),
            "b2": jnp.zeros((d_model,), jnp.float32),
            "ln2_g": jnp.ones((d_model,), jnp.float32),
            "ln2_b": jnp.zeros((d_model,), jnp.float32)}


def init_dec_layer(key, d_model, d_hidden):
    ks = jax.random.split(key, 4)
    return {"self_attn": init_attn_params(ks[0], d_model),
            "ln1_g": jnp.ones((d_model,), jnp.float32),
            "ln1_b": jnp.zeros((d_model,), jnp.float32),
            "cross_attn": init_attn_params(ks[1], d_model),
            "ln2_g": jnp.ones((d_model,), jnp.float32),
            "ln2_b": jnp.zeros((d_model,), jnp.float32),
            "w1": xavier_uniform(ks[2], (d_model, d_hidden), jnp.bfloat16),
            "b1": jnp.zeros((d_hidden,), jnp.float32),
            "w2": xavier_uniform(ks[3], (d_hidden, d_model), jnp.bfloat16),
            "b2": jnp.zeros((d_model,), jnp.float32),
            "ln3_g": jnp.ones((d_model,), jnp.float32),
            "ln3_b": jnp.zeros((d_model,), jnp.float32)}


def init_params(key, vocab_size, max_len, d_model, d_hidden, n_layer):
    ks = jax.random.split(key, 1 + 2 * n_layer)
    return {"emb": xavier_uniform(ks[0], (vocab_size, d_model), jnp.bfloat16),
            "pos": sinusoidal_pos_encoding(max_len, d_model),
            "enc_layers": [init_enc_layer(ks[1 + i], d_model, d_hidden)
                           for i in range(n_layer)],
            "dec_layers": [init_dec_layer(ks[1 + n_layer + i], d_model, d_hidden)
                           for i in range(n_layer)]}


# ----------------------------- main -----------------------------

if __name__ == "__main__":
    SRC_PAD_IDX = 0
    TGT_PAD_IDX = 0
    VOCAB_SIZE = 32
    MAX_LEN = 16
    D_MODEL = 32
    D_HIDDEN = 64
    N_HEAD = 4
    N_LAYER = 2
    BATCH = 2
    SEQ = 8

    root = jax.random.PRNGKey(0)
    k_param, k_src, k_tgt = jax.random.split(root, 3)

    params = init_params(k_param, VOCAB_SIZE, MAX_LEN, D_MODEL, D_HIDDEN, N_LAYER)

    src = jax.random.randint(k_src, (BATCH, SEQ), 1, VOCAB_SIZE, dtype=jnp.int32)
    tgt = jax.random.randint(k_tgt, (BATCH, SEQ), 1, VOCAB_SIZE, dtype=jnp.int32)
    # introduce some padding tokens to exercise the masks
    src = src.at[:, -2:].set(SRC_PAD_IDX)
    tgt = tgt.at[:, -1:].set(TGT_PAD_IDX)

    fwd = jax.jit(functools.partial(transformer_forward,
                                    n_head=N_HEAD,
                                    src_pad_idx=SRC_PAD_IDX,
                                    tgt_pad_idx=TGT_PAD_IDX))

    logits = fwd(params, src, tgt)
    jax.block_until_ready(logits)

    assert logits.shape == (BATCH, SEQ, VOCAB_SIZE)
    assert bool(jnp.all(jnp.isfinite(logits)))
    print("KERNEL_OK")
</pallas_src>

<mosaic_0001>
module attributes {stable_mosaic.version = 11 : i64} {
  func.func @_probe_copy_kernel(%arg0: i32, %arg1: memref<8x128xf32, #tpu.memory_space<vmem>>, %arg2: memref<8x128xf32, #tpu.memory_space<vmem>>) attributes {dimension_semantics = [#tpu.dimension_semantics<arbitrary>], iteration_bounds = array<i64: 1>, scalar_prefetch = 0 : i64, scratch_operands = 0 : i64, tpu.core_type = #tpu.core_type<tc>, window_params = [{pipeline_mode = #tpu.pipeline_mode<synchronous>, transform_indices = @transform_0, window_bounds = array<i64: 8, 128>}, {pipeline_mode = #tpu.pipeline_mode<synchronous>, transform_indices = @transform_1, window_bounds = array<i64: 8, 128>}]} {
    %c0 = arith.constant 0 : index
    %c0_0 = arith.constant 0 : index
    %0 = vector.load %arg1[%c0, %c0_0] : memref<8x128xf32, #tpu.memory_space<vmem>>, vector<8x128xf32>
    %c0_1 = arith.constant 0 : index
    %c0_2 = arith.constant 0 : index
    %1 = vector.load %arg2[%c0_1, %c0_2] : memref<8x128xf32, #tpu.memory_space<vmem>>, vector<8x128xf32>
    tpu.vector_store %arg2[%c0_1, %c0_2], %0 {strides = array<i32>} : memref<8x128xf32, #tpu.memory_space<vmem>>, vector<8x128xf32>,
    return
  }
  func.func @transform_0(%arg0: i32) -> (i32, i32) {
    %c0_i32 = arith.constant 0 : i32
    %c0_i32_0 = arith.constant 0 : i32
    %c0_i32_1 = arith.constant 0 : i32
    return %c0_i32, %c0_i32_0 : i32, i32
  }
  func.func @transform_1(%arg0: i32) -> (i32, i32) {
    %c0_i32 = arith.constant 0 : i32
    %c0_i32_0 = arith.constant 0 : i32
    %c0_i32_1 = arith.constant 0 : i32
    return %c0_i32, %c0_i32_0 : i32, i32
  }
}

module attributes {stable_mosaic.version = 11 : i64} {
  func.func @_mha_ln_kernel(%arg0: i32, %arg1: i32, %arg2: memref<1x8x32xf32, #tpu.memory_space<vmem>>, %arg3: memref<1x1x8xf32, #tpu.memory_space<vmem>>, %arg4: memref<32x32xbf16, #tpu.memory_space<vmem>>, %arg5: memref<1x32xf32, #tpu.memory_space<vmem>>, %arg6: memref<32x64xbf16, #tpu.memory_space<vmem>>, %arg7: memref<1x64xf32, #tpu.memory_space<vmem>>, %arg8: memref<32x32xbf16, #tpu.memory_space<vmem>>, %arg9: memref<1x32xf32, #tpu.memory_space<vmem>>, %arg10: memref<1x32xf32, #tpu.memory_space<vmem>>, %arg11: memref<1x32xf32, #tpu.memory_space<vmem>>, %arg12: memref<1x8x32xf32, #tpu.memory_space<vmem>>, %arg13: memref<8x64xbf16, #tpu.memory_space<vmem>>, %arg14: memref<8x32xf32, #tpu.memory_space<vmem>>) attributes {dimension_semantics = [#tpu.dimension_semantics<parallel>, #tpu.dimension_semantics<arbitrary>], iteration_bounds = array<i64: 2, 1>, scalar_prefetch = 0 : i64, scratch_operands = 2 : i64, tpu.core_type = #tpu.core_type<tc>, window_params = [{transform_indices = @transform_0, window_bounds = array<i64: 1, 8, 32>}, {transform_indices = @transform_1, window_bounds = array<i64: 1, 1, 8>}, {pipeline_mode = #tpu.pipeline_mode<synchronous>, transform_indices = @transform_2, window_bounds = array<i64: 32, 32>}, {pipeline_mode = #tpu.pipeline_mode<synchronous>, transform_indices = @transform_3, window_bounds = array<i64: 1, 32>}, {pipeline_mode = #tpu.pipeline_mode<synchronous>, transform_indices = @transform_4, window_bounds = array<i64: 32, 64>}, {pipeline_mode = #tpu.pipeline_mode<synchronous>, transform_indices = @transform_5, window_bounds = array<i64: 1, 64>}, {pipeline_mode = #tpu.pipeline_mode<synchronous>, transform_indices = @transform_6, window_bounds = array<i64: 32, 32>}, {pipeline_mode = #tpu.pipeline_mode<synchronous>, transform_indices = @transform_7, window_bounds = array<i64: 1, 32>}, {pipeline_mode = #tpu.pipeline_mode<synchronous>, transform_indices = @transform_8, window_bounds = array<i64: 1, 32>}, {pipeline_mode = #tpu.pipeline_mode<synchronous>, transform_indices = @transform_9, window_bounds = array<i64: 1, 32>}, {transform_indices = @transform_10, window_bounds = array<i64: 1, 8, 32>}]} {
    %c0_i32 = arith.constant 0 : i32
    %0 = arith.cmpi eq, %arg1, %c0_i32 : i32
    %1 = arith.extui %0 : i1 to i32
    %c0_i32_0 = arith.constant 0 : i32
    %2 = arith.cmpi ne, %1, %c0_i32_0 : i32
    scf.if %2 {
      %c0_66 = arith.constant 0 : index
      %c0_67 = arith.constant 0 : index
      %c0_68 = arith.constant 0 : index
      %140 = vector.load %arg2[%c0_66, %c0_67, %c0_68] : memref<1x8x32xf32, #tpu.memory_space<vmem>>, vector<1x8x32xf32>
      %141 = vector.shape_cast %140 : vector<1x8x32xf32> to vector<8x32xf32>
      %142 = arith.truncf %141 : vector<8x32xf32> to vector<8x32xbf16>
      %c0_69 = arith.constant 0 : index
      %c0_70 = arith.constant 0 : index
      %143 = vector.load %arg6[%c0_69, %c0_70] : memref<32x64xbf16, #tpu.memory_space<vmem>>, vector<32x64xbf16>
      %cst_71 = arith.constant dense<0.000000e+00> : vector<8x64xf32>
      %144 = tpu.matmul %142, %143, %cst_71 {dimension_numbers = #tpu.dot_dimension_numbers<[1], [0], [0], [1], [0, 0, 1, 1], [], []>} : vector<8x32xbf16>, vector<32x64xbf16>, vector<8x64xf32> -> vector<8x64xf32>
      %c0_72 = arith.constant 0 : index
      %c0_73 = arith.constant 0 : index
      %145 = vector.load %arg7[%c0_72, %c0_73] : memref<1x64xf32, #tpu.memory_space<vmem>>, vector<1x64xf32>
      %146 = vector.broadcast %145 : vector<1x64xf32> to vector<8x64xf32>
      %147 = arith.addf %144, %146 : vector<8x64xf32>
      %148 = arith.truncf %147 : vector<8x64xf32> to vector<8x64xbf16>
      %c0_74 = arith.constant 0 : index
      %c0_75 = arith.constant 0 : index
      %149 = vector.load %arg13[%c0_74, %c0_75] : memref<8x64xbf16, #tpu.memory_space<vmem>>, vector<8x64xbf16>
      tpu.vector_store %arg13[%c0_74, %c0_75], %148 {strides = array<i32>} : memref<8x64xbf16, #tpu.memory_space<vmem>>, vector<8x64xbf16>,
    } else {
    }
    %c8_i32 = arith.constant 8 : i32
    %3 = arith.muli %arg1, %c8_i32 : i32
    %4 = tpu.assume_multiple %3, 8 : i32
    %c0 = arith.constant 0 : index
    %5 = arith.index_cast %4 : i32 to index
    %c0_1 = arith.constant 0 : index
    %6 = vector.load %arg2[%c0, %5, %c0_1] : memref<1x8x32xf32, #tpu.memory_space<vmem>>, vector<1x8x32xf32>
    %7 = vector.shape_cast %6 : vector<1x8x32xf32> to vector<8x32xf32>
    %8 = arith.truncf %7 : vector<8x32xf32> to vector<8x32xbf16>
    %c0_2 = arith.constant 0 : index
    %c0_3 = arith.constant 0 : index
    %9 = vector.load %arg4[%c0_2, %c0_3] : memref<32x32xbf16, #tpu.memory_space<vmem>>, vector<32x32xbf16>
    %cst = arith.constant dense<0.000000e+00> : vector<8x32xf32>
    %10 = tpu.matmul %8, %9, %cst {dimension_numbers = #tpu.dot_dimension_numbers<[1], [0], [0], [1], [0, 0, 1, 1], [], []>} : vector<8x32xbf16>, vector<32x32xbf16>, vector<8x32xf32> -> vector<8x32xf32>
    %c0_4 = arith.constant 0 : index
    %c0_5 = arith.constant 0 : index
    %11 = vector.load %arg5[%c0_4, %c0_5] : memref<1x32xf32, #tpu.memory_space<vmem>>, vector<1x32xf32>
    %12 = vector.broadcast %11 : vector<1x32xf32> to vector<8x32xf32>
    %13 = arith.addf %10, %12 : vector<8x32xf32>
    %cst_6 = arith.constant 0.353553385 : f32
    %14 = vector.broadcast %cst_6 : f32 to vector<8x32xf32>
    %15 = arith.mulf %13, %14 : vector<8x32xf32>
    %16 = arith.truncf %15 : vector<8x32xf32> to vector<8x32xbf16>
    %c0_7 = arith.constant 0 : index
    %c0_8 = arith.constant 0 : index
    %c0_9 = arith.constant 0 : index
    %17 = vector.load %arg3[%c0_7, %c0_8, %c0_9] : memref<1x1x8xf32, #tpu.memory_space<vmem>>, vector<1x1x8xf32>
    %18 = vector.shape_cast %17 : vector<1x1x8xf32> to vector<1x8xf32>
    %cst_10 = arith.constant 1.000000e+00 : f32
    %19 = vector.broadcast %cst_10 : f32 to vector<1x8xf32>
    %20 = arith.subf %18, %19 : vector<1x8xf32>
    %cst_11 = arith.constant 1.000000e+09 : f32
    %21 = vector.broadcast %cst_11 : f32 to vector<1x8xf32>
    %22 = arith.mulf %20, %21 : vector<1x8xf32>
    %23 = tpu.iota {dimensions = array<i32: 0>} : vector<8x8xi32>
    %c8_i32_12 = arith.constant 8 : i32
    %24 = arith.muli %arg1, %c8_i32_12 : i32
    %25 = vector.broadcast %24 : i32 to vector<8x8xi32>
    %26 = arith.addi %23, %25 : vector<8x8xi32>
    %27 = tpu.iota {dimensions = array<i32: 1>} : vector<8x8xi32>
    %28 = arith.cmpi sle, %27, %26 : vector<8x8xi32>
    %cst_13 = arith.constant -1.000000e+09 : f32
    %29 = vector.shape_cast %22 : vector<1x8xf32> to vector<1x8xf32>
    %30 = vector.broadcast %29 : vector<1x8xf32> to vector<8x8xf32>
    %31 = vector.broadcast %cst_13 : f32 to vector<8x8xf32>
    %32 = arith.select %28, %30, %31 : vector<8x8xi1>, vector<8x8xf32>
    %33 = vector.extract_strided_slice %16 {offsets = [0, 0], sizes = [8, 8], strides = [1, 1]} : vector<8x32xbf16> to vector<8x8xbf16>
    %c0_14 = arith.constant 0 : index
    %c0_15 = arith.constant 0 : index
    %34 = vector.load %arg13[%c0_14, %c0_15] : memref<8x64xbf16, #tpu.memory_space<vmem>>, vector<8x8xbf16>
    %cst_16 = arith.constant dense<0.000000e+00> : vector<8x8xf32>
    %35 = tpu.matmul %33, %34, %cst_16 {dimension_numbers = #tpu.dot_dimension_numbers<[1], [1], [0], [0], [0, 0, 1, 0], [], []>} : vector<8x8xbf16>, vector<8x8xbf16>, vector<8x8xf32> -> vector<8x8xf32>
    %36 = arith.addf %35, %32 : vector<8x8xf32>
    %cst_17 = arith.constant dense<0xFF800000> : vector<8xf32>
    %37 = vector.multi_reduction <maximumf>, %36, %cst_17 [1] : vector<8x8xf32> to vector<8xf32>
    %38 = vector.shape_cast %37 : vector<8xf32> to vector<8x1xf32>
    %39 = vector.broadcast %38 : vector<8x1xf32> to vector<8x8xf32>
    %40 = arith.subf %36, %39 : vector<8x8xf32>
    %41 = math.exp %40 : vector<8x8xf32>
    %cst_18 = arith.constant dense<0.000000e+00> : vector<8xf32>
    %42 = vector.multi_reduction <add>, %41, %cst_18 [1] : vector<8x8xf32> to vector<8xf32>
    %43 = vector.shape_cast %42 : vector<8xf32> to vector<8x1xf32>
    %44 = arith.truncf %41 : vector<8x8xf32> to vector<8x8xbf16>
    %c0_19 = arith.constant 0 : index
    %c32 = arith.constant 32 : index
    %45 = vector.load %arg13[%c0_19, %c32] : memref<8x64xbf16, #tpu.memory_space<vmem>>, vector<8x8xbf16>
    %cst_20 = arith.constant dense<0.000000e+00> : vector<8x8xf32>
    %46 = tpu.matmul %44, %45, %cst_20 {dimension_numbers = #tpu.dot_dimension_numbers<[1], [0], [0], [1], [0, 0, 1, 1], [], []>} : vector<8x8xbf16>, vector<8x8xbf16>, vector<8x8xf32> -> vector<8x8xf32>
    %47 = tpu.reciprocal %43 {approx = true} : vector<8x1xf32> -> vector<8x1xf32>
    %48 = vector.broadcast %47 : vector<8x1xf32> to vector<8x8xf32>
    %49 = arith.mulf %46, %48 : vector<8x8xf32>
    %c0_21 = arith.constant 0 : index
    %c0_22 = arith.constant 0 : index
    %50 = vector.load %arg14[%c0_21, %c0_22] : memref<8x32xf32, #tpu.memory_space<vmem>>, vector<8x8xf32>
    tpu.vector_store %arg14[%c0_21, %c0_22], %49 {strides = array<i32>} : memref<8x32xf32, #tpu.memory_space<vmem>>, vector<8x8xf32>,
    %51 = vector.extract_strided_slice %16 {offsets = [0, 8], sizes = [8, 8], strides = [1, 1]} : vector<8x32xbf16> to vector<8x8xbf16>
    %c0_23 = arith.constant 0 : index
    %c8 = arith.constant 8 : index
    %52 = vector.load %arg13[%c0_23, %c8] : memref<8x64xbf16, #tpu.memory_space<vmem>>, vector<8x8xbf16>
    %cst_24 = arith.constant dense<0.000000e+00> : vector<8x8xf32>
    %53 = tpu.matmul %51, %52, %cst_24 {dimension_numbers = #tpu.dot_dimension_numbers<[1], [1], [0], [0], [0, 0, 1, 0], [], []>} : vector<8x8xbf16>, vector<8x8xbf16>, vector<8x8xf32> -> vector<8x8xf32>
    %54 = arith.addf %53, %32 : vector<8x8xf32>
    %cst_25 = arith.constant dense<0xFF800000> : vector<8xf32>
    %55 = vector.multi_reduction <maximumf>, %54, %cst_25 [1] : vector<8x8xf32> to vector<8xf32>
    %56 = vector.shape_cast %55 : vector<8xf32> to vector<8x1xf32>
    %57 = vector.broadcast %56 : vector<8x1xf32> to vector<8x8xf32>
    %58 = arith.subf %54, %57 : vector<8x8xf32>
    %59 = math.exp %58 : vector<8x8xf32>
    %cst_26 = arith.constant dense<0.000000e+00> : vector<8xf32>
    %60 = vector.multi_reduction <add>, %59, %cst_26 [1] : vector<8x8xf32> to vector<8xf32>
    %61 = vector.shape_cast %60 : vector<8xf32> to vector<8x1xf32>
    %62 = arith.truncf %59 : vector<8x8xf32> to vector<8x8xbf16>
    %c0_27 = arith.constant 0 : index
    %c40 = arith.constant 40 : index
    %63 = vector.load %arg13[%c0_27, %c40] : memref<8x64xbf16, #tpu.memory_space<vmem>>, vector<8x8xbf16>
    %cst_28 = arith.constant dense<0.000000e+00> : vector<8x8xf32>
    %64 = tpu.matmul %62, %63, %cst_28 {dimension_numbers = #tpu.dot_dimension_numbers<[1], [0], [0], [1], [0, 0, 1, 1], [], []>} : vector<8x8xbf16>, vector<8x8xbf16>, vector<8x8xf32> -> vector<8x8xf32>
    %65 = tpu.reciprocal %61 {approx = true} : vector<8x1xf32> -> vector<8x1xf32>
    %66 = vector.broadcast %65 : vector<8x1xf32> to vector<8x8xf32>
    %67 = arith.mulf %64, %66 : vector<8x8xf32>
    %c0_29 = arith.constant 0 : index
    %c8_30 = arith.constant 8 : index
    %68 = vector.load %arg14[%c0_29, %c8_30] : memref<8x32xf32, #tpu.memory_space<vmem>>, vector<8x8xf32>
    tpu.vector_store %arg14[%c0_29, %c8_30], %67 {strides = array<i32>} : memref<8x32xf32, #tpu.memory_space<vmem>>, vector<8x8xf32>,
    %69 = vector.extract_strided_slice %16 {offsets = [0, 16], sizes = [8, 8], strides = [1, 1]} : vector<8x32xbf16> to vector<8x8xbf16>
    %c0_31 = arith.constant 0 : index
    %c16 = arith.constant 16 : index
    %70 = vector.load %arg13[%c0_31, %c16] : memref<8x64xbf16, #tpu.memory_space<vmem>>, vector<8x8xbf16>
    %cst_32 = arith.constant dense<0.000000e+00> : vector<8x8xf32>
    %71 = tpu.matmul %69, %70, %cst_32 {dimension_numbers = #tpu.dot_dimension_numbers<[1], [1], [0], [0], [0, 0, 1, 0], [], []>} : vector<8x8xbf16>, vector<8x8xbf16>, vector<8x8xf32> -> vector<8x8xf32>
    %72 = arith.addf %71, %32 : vector<8x8xf32>
    %cst_33 = arith.constant dense<0xFF800000> : vector<8xf32>
    %73 = vector.multi_reduction <maximumf>, %72, %cst_33 [1] : vector<8x8xf32> to vector<8xf32>
    %74 = vector.shape_cast %73 : vector<8xf32> to vector<8x1xf32>
    %75 = vector.broadcast %74 : vector<8x1xf32> to vector<8x8xf32>
    %76 = arith.subf %72, %75 : vector<8x8xf32>
    %77 = math.exp %76 : vector<8x8xf32>
    %cst_34 = arith.constant dense<0.000000e+00> : vector<8xf32>
    %78 = vector.multi_reduction <add>, %77, %cst_34 [1] : vector<8x8xf32> to vector<8xf32>
    %79 = vector.shape_cast %78 : vector<8xf32> to vector<8x1xf32>
    %80 = arith.truncf %77 : vector<8x8xf32> to vector<8x8xbf16>
    %c0_35 = arith.constant 0 : index
    %c48 = arith.constant 48 : index
    %81 = vector.load %arg13[%c0_35, %c48] : memref<8x64xbf16, #tpu.memory_space<vmem>>, vector<8x8xbf16>
    %cst_36 = arith.constant dense<0.000000e+00> : vector<8x8xf32>
    %82 = tpu.matmul %80, %81, %cst_36 {dimension_numbers = #tpu.dot_dimension_numbers<[1], [0], [0], [1], [0, 0, 1, 1], [], []>} : vector<8x8xbf16>, vector<8x8xbf16>, vector<8x8xf32> -> vector<8x8xf32>
    %83 = tpu.reciprocal %79 {approx = true} : vector<8x1xf32> -> vector<8x1xf32>
    %84 = vector.broadcast %83 : vector<8x1xf32> to vector<8x8xf32>
    %85 = arith.mulf %82, %84 : vector<8x8xf32>
    %c0_37 = arith.constant 0 : index
    %c16_38 = arith.constant 16 : index
    %86 = vector.load %arg14[%c0_37, %c16_38] : memref<8x32xf32, #tpu.memory_space<vmem>>, vector<8x8xf32>
    tpu.vector_store %arg14[%c0_37, %c16_38], %85 {strides = array<i32>} : memref<8x32xf32, #tpu.memory_space<vmem>>, vector<8x8xf32>,
    %87 = vector.extract_strided_slice %16 {offsets = [0, 24], sizes = [8, 8], strides = [1, 1]} : vector<8x32xbf16> to vector<8x8xbf16>
    %c0_39 = arith.constant 0 : index
    %c24 = arith.constant 24 : index
    %88 = vector.load %arg13[%c0_39, %c24] : memref<8x64xbf16, #tpu.memory_space<vmem>>, vector<8x8xbf16>
    %cst_40 = arith.constant dense<0.000000e+00> : vector<8x8xf32>
    %89 = tpu.matmul %87, %88, %cst_40 {dimension_numbers = #tpu.dot_dimension_numbers<[1], [1], [0], [0], [0, 0, 1, 0], [], []>} : vector<8x8xbf16>, vector<8x8xbf16>, vector<8x8xf32> -> vector<8x8xf32>
    %90 = arith.addf %89, %32 : vector<8x8xf32>
    %cst_41 = arith.constant dense<0xFF800000> : vector<8xf32>
    %91 = vector.multi_reduction <maximumf>, %90, %cst_41 [1] : vector<8x8xf32> to vector<8xf32>
    %92 = vector.shape_cast %91 : vector<8xf32> to vector<8x1xf32>
    %93 = vector.broadcast %92 : vector<8x1xf32> to vector<8x8xf32>
    %94 = arith.subf %90, %93 : vector<8x8xf32>
    %95 = math.exp %94 : vector<8x8xf32>
    %cst_42 = arith.constant dense<0.000000e+00> : vector<8xf32>
    %96 = vector.multi_reduction <add>, %95, %cst_42 [1] : vector<8x8xf32> to vector<8xf32>
    %97 = vector.shape_cast %96 : vector<8xf32> to vector<8x1xf32>
    %98 = arith.truncf %95 : vector<8x8xf32> to vector<8x8xbf16>
    %c0_43 = arith.constant 0 : index
    %c56 = arith.constant 56 : index
    %99 = vector.load %arg13[%c0_43, %c56] : memref<8x64xbf16, #tpu.memory_space<vmem>>, vector<8x8xbf16>
    %cst_44 = arith.constant dense<0.000000e+00> : vector<8x8xf32>
    %100 = tpu.matmul %98, %99, %cst_44 {dimension_numbers = #tpu.dot_dimension_numbers<[1], [0], [0], [1], [0, 0, 1, 1], [], []>} : vector<8x8xbf16>, vector<8x8xbf16>, vector<8x8xf32> -> vector<8x8xf32>
    %101 = tpu.reciprocal %97 {approx = true} : vector<8x1xf32> -> vector<8x1xf32>
    %102 = vector.broadcast %101 : vector<8x1xf32> to vector<8x8xf32>
    %103 = arith.mulf %100, %102 : vector<8x8xf32>
    %c0_45 = arith.constant 0 : index
    %c24_46 = arith.constant 24 : index
    %104 = vector.load %arg14[%c0_45, %c24_46] : memref<8x32xf32, #tpu.memory_space<vmem>>, vector<8x8xf32>
    tpu.vector_store %arg14[%c0_45, %c24_46], %103 {strides = array<i32>} : memref<8x32xf32, #tpu.memory_space<vmem>>, vector<8x8xf32>,
    %c0_47 = arith.constant 0 : index
    %c0_48 = arith.constant 0 : index
    %105 = vector.load %arg14[%c0_47, %c0_48] : memref<8x32xf32, #tpu.memory_space<vmem>>, vector<8x32xf32>
    %106 = arith.truncf %105 : vector<8x32xf32> to vector<8x32xbf16>
    %c0_49 = arith.constant 0 : index
    %c0_50 = arith.constant 0 : index
    %107 = vector.load %arg8[%c0_49, %c0_50] : memref<32x32xbf16, #tpu.memory_space<vmem>>, vector<32x32xbf16>
    %cst_51 = arith.constant dense<0.000000e+00> : vector<8x32xf32>
    %108 = tpu.matmul %106, %107, %cst_51 {dimension_numbers = #tpu.dot_dimension_numbers<[1], [0], [0], [1], [0, 0, 1, 1], [], []>} : vector<8x32xbf16>, vector<32x32xbf16>, vector<8x32xf32> -> vector<8x32xf32>
    %c0_52 = arith.constant 0 : index
    %c0_53 = arith.constant 0 : index
    %109 = vector.load %arg9[%c0_52, %c0_53] : memref<1x32xf32, #tpu.memory_space<vmem>>, vector<1x32xf32>
    %110 = vector.broadcast %109 : vector<1x32xf32> to vector<8x32xf32>
    %111 = arith.addf %108, %110 : vector<8x32xf32>
    %112 = arith.addf %7, %111 : vector<8x32xf32>
    %cst_54 = arith.constant dense<0.000000e+00> : vector<8xf32>
    %113 = vector.multi_reduction <add>, %112, %cst_54 [1] : vector<8x32xf32> to vector<8xf32>
    %114 = vector.shape_cast %113 : vector<8xf32> to vector<8x1xf32>
    %cst_55 = arith.constant 3.200000e+01 : f32
    %115 = vector.broadcast %cst_55 : f32 to vector<8x1xf32>
    %116 = arith.divf %114, %115 : vector<8x1xf32>
    %117 = vector.broadcast %116 : vector<8x1xf32> to vector<8x32xf32>
    %118 = arith.subf %112, %117 : vector<8x32xf32>
    %119 = arith.mulf %118, %118 : vector<8x32xf32>
    %cst_56 = arith.constant dense<0.000000e+00> : vector<8xf32>
    %120 = vector.multi_reduction <add>, %119, %cst_56 [1] : vector<8x32xf32> to vector<8xf32>
    %121 = vector.shape_cast %120 : vector<8xf32> to vector<8x1xf32>
    %cst_57 = arith.constant 3.200000e+01 : f32
    %122 = vector.broadcast %cst_57 : f32 to vector<8x1xf32>
    %123 = arith.divf %121, %122 : vector<8x1xf32>
    %124 = vector.broadcast %116 : vector<8x1xf32> to vector<8x32xf32>
    %125 = arith.subf %112, %124 : vector<8x32xf32>
    %cst_58 = arith.constant 9.99999974E-6 : f32
    %126 = vector.broadcast %cst_58 : f32 to vector<8x1xf32>
    %127 = arith.addf %123, %126 : vector<8x1xf32>
    %128 = math.rsqrt %127 : vector<8x1xf32>
    %129 = vector.broadcast %128 : vector<8x1xf32> to vector<8x32xf32>
    %130 = arith.mulf %125, %129 : vector<8x32xf32>
    %c0_59 = arith.constant 0 : index
    %c0_60 = arith.constant 0 : index
    %131 = vector.load %arg10[%c0_59, %c0_60] : memref<1x32xf32, #tpu.memory_space<vmem>>, vector<1x32xf32>
    %132 = vector.broadcast %131 : vector<1x32xf32> to vector<8x32xf32>
    %133 = arith.mulf %130, %132 : vector<8x32xf32>
    %c0_61 = arith.constant 0 : index
    %c0_62 = arith.constant 0 : index
    %134 = vector.load %arg11[%c0_61, %c0_62] : memref<1x32xf32, #tpu.memory_space<vmem>>, vector<1x32xf32>
    %135 = vector.broadcast %134 : vector<1x32xf32> to vector<8x32xf32>
    %136 = arith.addf %133, %135 : vector<8x32xf32>
    %c0_63 = arith.constant 0 : index
    %c0_64 = arith.constant 0 : index
    %c0_65 = arith.constant 0 : index
    %137 = vector.load %arg12[%c0_63, %c0_64, %c0_65] : memref<1x8x32xf32, #tpu.memory_space<vmem>>, vector<1x8x32xf32>
    %138 = vector.shape_cast %137 : vector<1x8x32xf32> to vector<8x32xf32>
    %139 = vector.shape_cast %136 : vector<8x32xf32> to vector<1x8x32xf32>
    tpu.vector_store %arg12[%c0_63, %c0_64, %c0_65], %139 {strides = array<i32>} : memref<1x8x32xf32, #tpu.memory_space<vmem>>, vector<1x8x32xf32>,
    return
  }
  func.func @transform_0(%arg0: i32, %arg1: i32) -> (i32, i32, i32) {
    %c0_i32 = arith.constant 0 : i32
    %c0_i32_0 = arith.constant 0 : i32
    %c0_i32_1 = arith.constant 0 : i32
    return %arg0, %c0_i32, %c0_i32_0 : i32, i32, i32
  }
  func.func @transform_1(%arg0: i32, %arg1: i32) -> (i32, i32, i32) {
    %c0_i32 = arith.constant 0 : i32
    %c0_i32_0 = arith.constant 0 : i32
    %c0_i32_1 = arith.constant 0 : i32
    return %arg0, %c0_i32, %c0_i32_0 : i32, i32, i32
  }
  func.func @transform_2(%arg0: i32, %arg1: i32) -> (i32, i32) {
    %c0_i32 = arith.constant 0 : i32
    %c0_i32_0 = arith.constant 0 : i32
    %c0_i32_1 = arith.constant 0 : i32
    return %c0_i32, %c0_i32_0 : i32, i32
  }
  func.func @transform_3(%arg0: i32, %arg1: i32) -> (i32, i32) {
    %c0_i32 = arith.constant 0 : i32
    %c0_i32_0 = arith.constant 0 : i32
    %c0_i32_1 = arith.constant 0 : i32
    return %c0_i32, %c0_i32_0 : i32, i32
  }
  func.func @transform_4(%arg0: i32, %arg1: i32) -> (i32, i32) {
    %c0_i32 = arith.constant 0 : i32
    %c0_i32_0 = arith.constant 0 : i32
    %c0_i32_1 = arith.constant 0 : i32
    return %c0_i32, %c0_i32_0 : i32, i32
  }
  func.func @transform_5(%arg0: i32, %arg1: i32) -> (i32, i32) {
    %c0_i32 = arith.constant 0 : i32
    %c0_i32_0 = arith.constant 0 : i32
    %c0_i32_1 = arith.constant 0 : i32
    return %c0_i32, %c0_i32_0 : i32, i32
  }
  func.func @transform_6(%arg0: i32, %arg1: i32) -> (i32, i32) {
    %c0_i32 = arith.constant 0 : i32
    %c0_i32_0 = arith.constant 0 : i32
    %c0_i32_1 = arith.constant 0 : i32
    return %c0_i32, %c0_i32_0 : i32, i32
  }
  func.func @transform_7(%arg0: i32, %arg1: i32) -> (i32, i32) {
    %c0_i32 = arith.constant 0 : i32
    %c0_i32_0 = arith.constant 0 : i32
    %c0_i32_1 = arith.constant 0 : i32
    return %c0_i32, %c0_i32_0 : i32, i32
  }
  func.func @transform_8(%arg0: i32, %arg1: i32) -> (i32, i32) {
    %c0_i32 = arith.constant 0 : i32
    %c0_i32_0 = arith.constant 0 : i32
    %c0_i32_1 = arith.constant 0 : i32
    return %c0_i32, %c0_i32_0 : i32, i32
  }
  func.func @transform_9(%arg0: i32, %arg1: i32) -> (i32, i32) {
    %c0_i32 = arith.constant 0 : i32
    %c0_i32_0 = arith.constant 0 : i32
    %c0_i32_1 = arith.constant 0 : i32
    return %c0_i32, %c0_i32_0 : i32, i32
  }
  func.func @transform_10(%arg0: i32, %arg1: i32) -> (i32, i32, i32) {
    %c0_i32 = arith.constant 0 : i32
    %c0_i32_0 = arith.constant 0 : i32
    return %arg0, %arg1, %c0_i32 : i32, i32, i32
  }
}

module attributes {stable_mosaic.version = 11 : i64} {
  func.func @_ffn_ln_kernel(%arg0: i32, %arg1: memref<16x32xf32, #tpu.memory_space<vmem>>, %arg2: memref<32x64xbf16, #tpu.memory_space<vmem>>, %arg3: memref<1x64xf32, #tpu.memory_space<vmem>>, %arg4: memref<64x32xbf16, #tpu.memory_space<vmem>>, %arg5: memref<1x32xf32, #tpu.memory_space<vmem>>, %arg6: memref<1x32xf32, #tpu.memory_space<vmem>>, %arg7: memref<1x32xf32, #tpu.memory_space<vmem>>, %arg8: memref<16x32xf32, #tpu.memory_space<vmem>>) attributes {dimension_semantics = [#tpu.dimension_semantics<parallel>], iteration_bounds = array<i64: 1>, scalar_prefetch = 0 : i64, scratch_operands = 0 : i64, tpu.core_type = #tpu.core_type<tc>, window_params = [{transform_indices = @transform_0, window_bounds = array<i64: 16, 32>}, {pipeline_mode = #tpu.pipeline_mode<synchronous>, transform_indices = @transform_1, window_bounds = array<i64: 32, 64>}, {pipeline_mode = #tpu.pipeline_mode<synchronous>, transform_indices = @transform_2, window_bounds = array<i64: 1, 64>}, {pipeline_mode = #tpu.pipeline_mode<synchronous>, transform_indices = @transform_3, window_bounds = array<i64: 64, 32>}, {pipeline_mode = #tpu.pipeline_mode<synchronous>, transform_indices = @transform_4, window_bounds = array<i64: 1, 32>}, {pipeline_mode = #tpu.pipeline_mode<synchronous>, transform_indices = @transform_5, window_bounds = array<i64: 1, 32>}, {pipeline_mode = #tpu.pipeline_mode<synchronous>, transform_indices = @transform_6, window_bounds = array<i64: 1, 32>}, {transform_indices = @transform_7, window_bounds = array<i64: 16, 32>}]} {
    %c0 = arith.constant 0 : index
    %c0_0 = arith.constant 0 : index
    %0 = vector.load %arg1[%c0, %c0_0] : memref<16x32xf32, #tpu.memory_space<vmem>>, vector<16x32xf32>
    %1 = arith.truncf %0 : vector<16x32xf32> to vector<16x32xbf16>
    %c0_1 = arith.constant 0 : index
    %c0_2 = arith.constant 0 : index
    %2 = vector.load %arg2[%c0_1, %c0_2] : memref<32x64xbf16, #tpu.memory_space<vmem>>, vector<32x64xbf16>
    %cst = arith.constant dense<0.000000e+00> : vector<16x64xf32>
    %3 = tpu.matmul %1, %2, %cst {dimension_numbers = #tpu.dot_dimension_numbers<[1], [0], [0], [1], [0, 0, 1, 1], [], []>} : vector<16x32xbf16>, vector<32x64xbf16>, vector<16x64xf32> -> vector<16x64xf32>
    %c0_3 = arith.constant 0 : index
    %c0_4 = arith.constant 0 : index
    %4 = vector.load %arg3[%c0_3, %c0_4] : memref<1x64xf32, #tpu.memory_space<vmem>>, vector<1x64xf32>
    %5 = vector.broadcast %4 : vector<1x64xf32> to vector<16x64xf32>
    %6 = arith.addf %3, %5 : vector<16x64xf32>
    %cst_5 = arith.constant 0.000000e+00 : f32
    %7 = vector.broadcast %cst_5 : f32 to vector<16x64xf32>
    %8 = arith.maximumf %6, %7 : vector<16x64xf32>
    %9 = arith.truncf %8 : vector<16x64xf32> to vector<16x64xbf16>
    %c0_6 = arith.constant 0 : index
    %c0_7 = arith.constant 0 : index
    %10 = vector.load %arg4[%c0_6, %c0_7] : memref<64x32xbf16, #tpu.memory_space<vmem>>, vector<64x32xbf16>
    %cst_8 = arith.constant dense<0.000000e+00> : vector<16x32xf32>
    %11 = tpu.matmul %9, %10, %cst_8 {dimension_numbers = #tpu.dot_dimension_numbers<[1], [0], [0], [1], [0, 0, 1, 1], [], []>} : vector<16x64xbf16>, vector<64x32xbf16>, vector<16x32xf32> -> vector<16x32xf32>
    %c0_9 = arith.constant 0 : index
    %c0_10 = arith.constant 0 : index
    %12 = vector.load %arg5[%c0_9, %c0_10] : memref<1x32xf32, #tpu.memory_space<vmem>>, vector<1x32xf32>
    %13 = vector.broadcast %12 : vector<1x32xf32> to vector<16x32xf32>
    %14 = arith.addf %11, %13 : vector<16x32xf32>
    %15 = arith.addf %0, %14 : vector<16x32xf32>
    %cst_11 = arith.constant dense<0.000000e+00> : vector<16xf32>
    %16 = vector.multi_reduction <add>, %15, %cst_11 [1] : vector<16x32xf32> to vector<16xf32>
    %17 = vector.shape_cast %16 : vector<16xf32> to vector<16x1xf32>
    %cst_12 = arith.constant 3.200000e+01 : f32
    %18 = vector.broadcast %cst_12 : f32 to vector<16x1xf32>
    %19 = arith.divf %17, %18 : vector<16x1xf32>
    %20 = vector.broadcast %19 : vector<16x1xf32> to vector<16x32xf32>
    %21 = arith.subf %15, %20 : vector<16x32xf32>
    %22 = arith.mulf %21, %21 : vector<16x32xf32>
    %cst_13 = arith.constant dense<0.000000e+00> : vector<16xf32>
    %23 = vector.multi_reduction <add>, %22, %cst_13 [1] : vector<16x32xf32> to vector<16xf32>
    %24 = vector.shape_cast %23 : vector<16xf32> to vector<16x1xf32>
    %cst_14 = arith.constant 3.200000e+01 : f32
    %25 = vector.broadcast %cst_14 : f32 to vector<16x1xf32>
    %26 = arith.divf %24, %25 : vector<16x1xf32>
    %27 = vector.broadcast %19 : vector<16x1xf32> to vector<16x32xf32>
    %28 = arith.subf %15, %27 : vector<16x32xf32>
    %cst_15 = arith.constant 9.99999974E-6 : f32
    %29 = vector.broadcast %cst_15 : f32 to vector<16x1xf32>
    %30 = arith.addf %26, %29 : vector<16x1xf32>
    %31 = math.rsqrt %30 : vector<16x1xf32>
    %32 = vector.broadcast %31 : vector<16x1xf32> to vector<16x32xf32>
    %33 = arith.mulf %28, %32 : vector<16x32xf32>
    %c0_16 = arith.constant 0 : index
    %c0_17 = arith.constant 0 : index
    %34 = vector.load %arg6[%c0_16, %c0_17] : memref<1x32xf32, #tpu.memory_space<vmem>>, vector<1x32xf32>
    %35 = vector.broadcast %34 : vector<1x32xf32> to vector<16x32xf32>
    %36 = arith.mulf %33, %35 : vector<16x32xf32>
    %c0_18 = arith.constant 0 : index
    %c0_19 = arith.constant 0 : index
    %37 = vector.load %arg7[%c0_18, %c0_19] : memref<1x32xf32, #tpu.memory_space<vmem>>, vector<1x32xf32>
    %38 = vector.broadcast %37 : vector<1x32xf32> to vector<16x32xf32>
    %39 = arith.addf %36, %38 : vector<16x32xf32>
    %c0_20 = arith.constant 0 : index
    %c0_21 = arith.constant 0 : index
    %40 = vector.load %arg8[%c0_20, %c0_21] : memref<16x32xf32, #tpu.memory_space<vmem>>, vector<16x32xf32>
    tpu.vector_store %arg8[%c0_20, %c0_21], %39 {strides = array<i32>} : memref<16x32xf32, #tpu.memory_space<vmem>>, vector<16x32xf32>,
    return
  }
  func.func @transform_0(%arg0: i32) -> (i32, i32) {
    %c0_i32 = arith.constant 0 : i32
    %c0_i32_0 = arith.constant 0 : i32
    return %arg0, %c0_i32 : i32, i32
  }
  func.func @transform_1(%arg0: i32) -> (i32, i32) {
    %c0_i32 = arith.constant 0 : i32
    %c0_i32_0 = arith.constant 0 : i32
    %c0_i32_1 = arith.constant 0 : i32
    return %c0_i32, %c0_i32_0 : i32, i32
  }
  func.func @transform_2(%arg0: i32) -> (i32, i32) {
    %c0_i32 = arith.constant 0 : i32
    %c0_i32_0 = arith.constant 0 : i32
    %c0_i32_1 = arith.constant 0 : i32
    return %c0_i32, %c0_i32_0 : i32, i32
  }
  func.func @transform_3(%arg0: i32) -> (i32, i32) {
    %c0_i32 = arith.constant 0 : i32
    %c0_i32_0 = arith.constant 0 : i32
    %c0_i32_1 = arith.constant 0 : i32
    return %c0_i32, %c0_i32_0 : i32, i32
  }
  func.func @transform_4(%arg0: i32) -> (i32, i32) {
    %c0_i32 = arith.constant 0 : i32
    %c0_i32_0 = arith.constant 0 : i32
    %c0_i32_1 = arith.constant 0 : i32
    return %c0_i32, %c0_i32_0 : i32, i32
  }
  func.func @transform_5(%arg0: i32) -> (i32, i32) {
    %c0_i32 = arith.constant 0 : i32
    %c0_i32_0 = arith.constant 0 : i32
    %c0_i32_1 = arith.constant 0 : i32
    return %c0_i32, %c0_i32_0 : i32, i32
  }
  func.func @transform_6(%arg0: i32) -> (i32, i32) {
    %c0_i32 = arith.constant 0 : i32
    %c0_i32_0 = arith.constant 0 : i32
    %c0_i32_1 = arith.constant 0 : i32
    return %c0_i32, %c0_i32_0 : i32, i32
  }
  func.func @transform_7(%arg0: i32) -> (i32, i32) {
    %c0_i32 = arith.constant 0 : i32
    %c0_i32_0 = arith.constant 0 : i32
    return %arg0, %c0_i32 : i32, i32
  }
}

module attributes {stable_mosaic.version = 11 : i64} {
  func.func @_mha_ln_kernel(%arg0: i32, %arg1: i32, %arg2: memref<1x8x32xf32, #tpu.memory_space<vmem>>, %arg3: memref<1x1x8xf32, #tpu.memory_space<vmem>>, %arg4: memref<32x32xbf16, #tpu.memory_space<vmem>>, %arg5: memref<1x32xf32, #tpu.memory_space<vmem>>, %arg6: memref<32x64xbf16, #tpu.memory_space<vmem>>, %arg7: memref<1x64xf32, #tpu.memory_space<vmem>>, %arg8: memref<32x32xbf16, #tpu.memory_space<vmem>>, %arg9: memref<1x32xf32, #tpu.memory_space<vmem>>, %arg10: memref<1x32xf32, #tpu.memory_space<vmem>>, %arg11: memref<1x32xf32, #tpu.memory_space<vmem>>, %arg12: memref<1x8x32xf32, #tpu.memory_space<vmem>>, %arg13: memref<8x64xbf16, #tpu.memory_space<vmem>>, %arg14: memref<8x32xf32, #tpu.memory_space<vmem>>) attributes {dimension_semantics = [#tpu.dimension_semantics<parallel>, #tpu.dimension_semantics<arbitrary>], iteration_bounds = array<i64: 2, 1>, scalar_prefetch = 0 : i64, scratch_operands = 2 : i64, tpu.core_type = #tpu.core_type<tc>, window_params = [{transform_indices = @transform_0, window_bounds = array<i64: 1, 8, 32>}, {transform_indices = @transform_1, window_bounds = array<i64: 1, 1, 8>}, {pipeline_mode = #tpu.pipeline_mode<synchronous>, transform_indices = @transform_2, window_bounds = array<i64: 32, 32>}, {pipeline_mode = #tpu.pipeline_mode<synchronous>, transform_indices = @transform_3, window_bounds = array<i64: 1, 32>}, {pipeline_mode = #tpu.pipeline_mode<synchronous>, transform_indices = @transform_4, window_bounds = array<i64: 32, 64>}, {pipeline_mode = #tpu.pipeline_mode<synchronous>, transform_indices = @transform_5, window_bounds = array<i64: 1, 64>}, {pipeline_mode = #tpu.pipeline_mode<synchronous>, transform_indices = @transform_6, window_bounds = array<i64: 32, 32>}, {pipeline_mode = #tpu.pipeline_mode<synchronous>, transform_indices = @transform_7, window_bounds = array<i64: 1, 32>}, {pipeline_mode = #tpu.pipeline_mode<synchronous>, transform_indices = @transform_8, window_bounds = array<i64: 1, 32>}, {pipeline_mode = #tpu.pipeline_mode<synchronous>, transform_indices = @transform_9, window_bounds = array<i64: 1, 32>}, {transform_indices = @transform_10, window_bounds = array<i64: 1, 8, 32>}]} {
    %c0_i32 = arith.constant 0 : i32
    %0 = arith.cmpi eq, %arg1, %c0_i32 : i32
    %1 = arith.extui %0 : i1 to i32
    %c0_i32_0 = arith.constant 0 : i32
    %2 = arith.cmpi ne, %1, %c0_i32_0 : i32
    scf.if %2 {
      %c0_64 = arith.constant 0 : index
      %c0_65 = arith.constant 0 : index
      %c0_66 = arith.constant 0 : index
      %134 = vector.load %arg2[%c0_64, %c0_65, %c0_66] : memref<1x8x32xf32, #tpu.memory_space<vmem>>, vector<1x8x32xf32>
      %135 = vector.shape_cast %134 : vector<1x8x32xf32> to vector<8x32xf32>
      %136 = arith.truncf %135 : vector<8x32xf32> to vector<8x32xbf16>
      %c0_67 = arith.constant 0 : index
      %c0_68 = arith.constant 0 : index
      %137 = vector.load %arg6[%c0_67, %c0_68] : memref<32x64xbf16, #tpu.memory_space<vmem>>, vector<32x64xbf16>
      %cst_69 = arith.constant dense<0.000000e+00> : vector<8x64xf32>
      %138 = tpu.matmul %136, %137, %cst_69 {dimension_numbers = #tpu.dot_dimension_numbers<[1], [0], [0], [1], [0, 0, 1, 1], [], []>} : vector<8x32xbf16>, vector<32x64xbf16>, vector<8x64xf32> -> vector<8x64xf32>
      %c0_70 = arith.constant 0 : index
      %c0_71 = arith.constant 0 : index
      %139 = vector.load %arg7[%c0_70, %c0_71] : memref<1x64xf32, #tpu.memory_space<vmem>>, vector<1x64xf32>
      %140 = vector.broadcast %139 : vector<1x64xf32> to vector<8x64xf32>
      %141 = arith.addf %138, %140 : vector<8x64xf32>
      %142 = arith.truncf %141 : vector<8x64xf32> to vector<8x64xbf16>
      %c0_72 = arith.constant 0 : index
      %c0_73 = arith.constant 0 : index
      %143 = vector.load %arg13[%c0_72, %c0_73] : memref<8x64xbf16, #tpu.memory_space<vmem>>, vector<8x64xbf16>
      tpu.vector_store %arg13[%c0_72, %c0_73], %142 {strides = array<i32>} : memref<8x64xbf16, #tpu.memory_space<vmem>>, vector<8x64xbf16>,
    } else {
    }
    %c8_i32 = arith.constant 8 : i32
    %3 = arith.muli %arg1, %c8_i32 : i32
    %4 = tpu.assume_multiple %3, 8 : i32
    %c0 = arith.constant 0 : index
    %5 = arith.index_cast %4 : i32 to index
    %c0_1 = arith.constant 0 : index
    %6 = vector.load %arg2[%c0, %5, %c0_1] : memref<1x8x32xf32, #tpu.memory_space<vmem>>, vector<1x8x32xf32>
    %7 = vector.shape_cast %6 : vector<1x8x32xf32> to vector<8x32xf32>
    %8 = arith.truncf %7 : vector<8x32xf32> to vector<8x32xbf16>
    %c0_2 = arith.constant 0 : index
    %c0_3 = arith.constant 0 : index
    %9 = vector.load %arg4[%c0_2, %c0_3] : memref<32x32xbf16, #tpu.memory_space<vmem>>, vector<32x32xbf16>
    %cst = arith.constant dense<0.000000e+00> : vector<8x32xf32>
    %10 = tpu.matmul %8, %9, %cst {dimension_numbers = #tpu.dot_dimension_numbers<[1], [0], [0], [1], [0, 0, 1, 1], [], []>} : vector<8x32xbf16>, vector<32x32xbf16>, vector<8x32xf32> -> vector<8x32xf32>
    %c0_4 = arith.constant 0 : index
    %c0_5 = arith.constant 0 : index
    %11 = vector.load %arg5[%c0_4, %c0_5] : memref<1x32xf32, #tpu.memory_space<vmem>>, vector<1x32xf32>
    %12 = vector.broadcast %11 : vector<1x32xf32> to vector<8x32xf32>
    %13 = arith.addf %10, %12 : vector<8x32xf32>
    %cst_6 = arith.constant 0.353553385 : f32
    %14 = vector.broadcast %cst_6 : f32 to vector<8x32xf32>
    %15 = arith.mulf %13, %14 : vector<8x32xf32>
    %16 = arith.truncf %15 : vector<8x32xf32> to vector<8x32xbf16>
    %c0_7 = arith.constant 0 : index
    %c0_8 = arith.constant 0 : index
    %c0_9 = arith.constant 0 : index
    %17 = vector.load %arg3[%c0_7, %c0_8, %c0_9] : memref<1x1x8xf32, #tpu.memory_space<vmem>>, vector<1x1x8xf32>
    %18 = vector.shape_cast %17 : vector<1x1x8xf32> to vector<1x8xf32>
    %cst_10 = arith.constant 1.000000e+00 : f32
    %19 = vector.broadcast %cst_10 : f32 to vector<1x8xf32>
    %20 = arith.subf %18, %19 : vector<1x8xf32>
    %cst_11 = arith.constant 1.000000e+09 : f32
    %21 = vector.broadcast %cst_11 : f32 to vector<1x8xf32>
    %22 = arith.mulf %20, %21 : vector<1x8xf32>
    %23 = vector.extract_strided_slice %16 {offsets = [0, 0], sizes = [8, 8], strides = [1, 1]} : vector<8x32xbf16> to vector<8x8xbf16>
    %c0_12 = arith.constant 0 : index
    %c0_13 = arith.constant 0 : index
    %24 = vector.load %arg13[%c0_12, %c0_13] : memref<8x64xbf16, #tpu.memory_space<vmem>>, vector<8x8xbf16>
    %cst_14 = arith.constant dense<0.000000e+00> : vector<8x8xf32>
    %25 = tpu.matmul %23, %24, %cst_14 {dimension_numbers = #tpu.dot_dimension_numbers<[1], [1], [0], [0], [0, 0, 1, 0], [], []>} : vector<8x8xbf16>, vector<8x8xbf16>, vector<8x8xf32> -> vector<8x8xf32>
    %26 = vector.broadcast %22 : vector<1x8xf32> to vector<8x8xf32>
    %27 = arith.addf %25, %26 : vector<8x8xf32>
    %cst_15 = arith.constant dense<0xFF800000> : vector<8xf32>
    %28 = vector.multi_reduction <maximumf>, %27, %cst_15 [1] : vector<8x8xf32> to vector<8xf32>
    %29 = vector.shape_cast %28 : vector<8xf32> to vector<8x1xf32>
    %30 = vector.broadcast %29 : vector<8x1xf32> to vector<8x8xf32>
    %31 = arith.subf %27, %30 : vector<8x8xf32>
    %32 = math.exp %31 : vector<8x8xf32>
    %cst_16 = arith.constant dense<0.000000e+00> : vector<8xf32>
    %33 = vector.multi_reduction <add>, %32, %cst_16 [1] : vector<8x8xf32> to vector<8xf32>
    %34 = vector.shape_cast %33 : vector<8xf32> to vector<8x1xf32>
    %35 = arith.truncf %32 : vector<8x8xf32> to vector<8x8xbf16>
    %c0_17 = arith.constant 0 : index
    %c32 = arith.constant 32 : index
    %36 = vector.load %arg13[%c0_17, %c32] : memref<8x64xbf16, #tpu.memory_space<vmem>>, vector<8x8xbf16>
    %cst_18 = arith.constant dense<0.000000e+00> : vector<8x8xf32>
    %37 = tpu.matmul %35, %36, %cst_18 {dimension_numbers = #tpu.dot_dimension_numbers<[1], [0], [0], [1], [0, 0, 1, 1], [], []>} : vector<8x8xbf16>, vector<8x8xbf16>, vector<8x8xf32> -> vector<8x8xf32>
    %38 = tpu.reciprocal %34 {approx = true} : vector<8x1xf32> -> vector<8x1xf32>
    %39 = vector.broadcast %38 : vector<8x1xf32> to vector<8x8xf32>
    %40 = arith.mulf %37, %39 : vector<8x8xf32>
    %c0_19 = arith.constant 0 : index
    %c0_20 = arith.constant 0 : index
    %41 = vector.load %arg14[%c0_19, %c0_20] : memref<8x32xf32, #tpu.memory_space<vmem>>, vector<8x8xf32>
    tpu.vector_store %arg14[%c0_19, %c0_20], %40 {strides = array<i32>} : memref<8x32xf32, #tpu.memory_space<vmem>>, vector<8x8xf32>,
    %42 = vector.extract_strided_slice %16 {offsets = [0, 8], sizes = [8, 8], strides = [1, 1]} : vector<8x32xbf16> to vector<8x8xbf16>
    %c0_21 = arith.constant 0 : index
    %c8 = arith.constant 8 : index
    %43 = vector.load %arg13[%c0_21, %c8] : memref<8x64xbf16, #tpu.memory_space<vmem>>, vector<8x8xbf16>
    %cst_22 = arith.constant dense<0.000000e+00> : vector<8x8xf32>
    %44 = tpu.matmul %42, %43, %cst_22 {dimension_numbers = #tpu.dot_dimension_numbers<[1], [1], [0], [0], [0, 0, 1, 0], [], []>} : vector<8x8xbf16>, vector<8x8xbf16>, vector<8x8xf32> -> vector<8x8xf32>
    %45 = vector.broadcast %22 : vector<1x8xf32> to vector<8x8xf32>
    %46 = arith.addf %44, %45 : vector<8x8xf32>
    %cst_23 = arith.constant dense<0xFF800000> : vector<8xf32>
    %47 = vector.multi_reduction <maximumf>, %46, %cst_23 [1] : vector<8x8xf32> to vector<8xf32>
    %48 = vector.shape_cast %47 : vector<8xf32> to vector<8x1xf32>
    %49 = vector.broadcast %48 : vector<8x1xf32> to vector<8x8xf32>
    %50 = arith.subf %46, %49 : vector<8x8xf32>
    %51 = math.exp %50 : vector<8x8xf32>
    %cst_24 = arith.constant dense<0.000000e+00> : vector<8xf32>
    %52 = vector.multi_reduction <add>, %51, %cst_24 [1] : vector<8x8xf32> to vector<8xf32>
    %53 = vector.shape_cast %52 : vector<8xf32> to vector<8x1xf32>
    %54 = arith.truncf %51 : vector<8x8xf32> to vector<8x8xbf16>
    %c0_25 = arith.constant 0 : index
    %c40 = arith.constant 40 : index
    %55 = vector.load %arg13[%c0_25, %c40] : memref<8x64xbf16, #tpu.memory_space<vmem>>, vector<8x8xbf16>
    %cst_26 = arith.constant dense<0.000000e+00> : vector<8x8xf32>
    %56 = tpu.matmul %54, %55, %cst_26 {dimension_numbers = #tpu.dot_dimension_numbers<[1], [0], [0], [1], [0, 0, 1, 1], [], []>} : vector<8x8xbf16>, vector<8x8xbf16>, vector<8x8xf32> -> vector<8x8xf32>
    %57 = tpu.reciprocal %53 {approx = true} : vector<8x1xf32> -> vector<8x1xf32>
    %58 = vector.broadcast %57 : vector<8x1xf32> to vector<8x8xf32>
    %59 = arith.mulf %56, %58 : vector<8x8xf32>
    %c0_27 = arith.constant 0 : index
    %c8_28 = arith.constant 8 : index
    %60 = vector.load %arg14[%c0_27, %c8_28] : memref<8x32xf32, #tpu.memory_space<vmem>>, vector<8x8xf32>
    tpu.vector_store %arg14[%c0_27, %c8_28], %59 {strides = array<i32>} : memref<8x32xf32, #tpu.memory_space<vmem>>, vector<8x8xf32>,
    %61 = vector.extract_strided_slice %16 {offsets = [0, 16], sizes = [8, 8], strides = [1, 1]} : vector<8x32xbf16> to vector<8x8xbf16>
    %c0_29 = arith.constant 0 : index
    %c16 = arith.constant 16 : index
    %62 = vector.load %arg13[%c0_29, %c16] : memref<8x64xbf16, #tpu.memory_space<vmem>>, vector<8x8xbf16>
    %cst_30 = arith.constant dense<0.000000e+00> : vector<8x8xf32>
    %63 = tpu.matmul %61, %62, %cst_30 {dimension_numbers = #tpu.dot_dimension_numbers<[1], [1], [0], [0], [0, 0, 1, 0], [], []>} : vector<8x8xbf16>, vector<8x8xbf16>, vector<8x8xf32> -> vector<8x8xf32>
    %64 = vector.broadcast %22 : vector<1x8xf32> to vector<8x8xf32>
    %65 = arith.addf %63, %64 : vector<8x8xf32>
    %cst_31 = arith.constant dense<0xFF800000> : vector<8xf32>
    %66 = vector.multi_reduction <maximumf>, %65, %cst_31 [1] : vector<8x8xf32> to vector<8xf32>
    %67 = vector.shape_cast %66 : vector<8xf32> to vector<8x1xf32>
    %68 = vector.broadcast %67 : vector<8x1xf32> to vector<8x8xf32>
    %69 = arith.subf %65, %68 : vector<8x8xf32>
    %70 = math.exp %69 : vector<8x8xf32>
    %cst_32 = arith.constant dense<0.000000e+00> : vector<8xf32>
    %71 = vector.multi_reduction <add>, %70, %cst_32 [1] : vector<8x8xf32> to vector<8xf32>
    %72 = vector.shape_cast %71 : vector<8xf32> to vector<8x1xf32>
    %73 = arith.truncf %70 : vector<8x8xf32> to vector<8x8xbf16>
    %c0_33 = arith.constant 0 : index
    %c48 = arith.constant 48 : index
    %74 = vector.load %arg13[%c0_33, %c48] : memref<8x64xbf16, #tpu.memory_space<vmem>>, vector<8x8xbf16>
    %cst_34 = arith.constant dense<0.000000e+00> : vector<8x8xf32>
    %75 = tpu.matmul %73, %74, %cst_34 {dimension_numbers = #tpu.dot_dimension_numbers<[1], [0], [0], [1], [0, 0, 1, 1], [], []>} : vector<8x8xbf16>, vector<8x8xbf16>, vector<8x8xf32> -> vector<8x8xf32>
    %76 = tpu.reciprocal %72 {approx = true} : vector<8x1xf32> -> vector<8x1xf32>
    %77 = vector.broadcast %76 : vector<8x1xf32> to vector<8x8xf32>
    %78 = arith.mulf %75, %77 : vector<8x8xf32>
    %c0_35 = arith.constant 0 : index
    %c16_36 = arith.constant 16 : index
    %79 = vector.load %arg14[%c0_35, %c16_36] : memref<8x32xf32, #tpu.memory_space<vmem>>, vector<8x8xf32>
    tpu.vector_store %arg14[%c0_35, %c16_36], %78 {strides = array<i32>} : memref<8x32xf32, #tpu.memory_space<vmem>>, vector<8x8xf32>,
    %80 = vector.extract_strided_slice %16 {offsets = [0, 24], sizes = [8, 8], strides = [1, 1]} : vector<8x32xbf16> to vector<8x8xbf16>
    %c0_37 = arith.constant 0 : index
    %c24 = arith.constant 24 : index
    %81 = vector.load %arg13[%c0_37, %c24] : memref<8x64xbf16, #tpu.memory_space<vmem>>, vector<8x8xbf16>
    %cst_38 = arith.constant dense<0.000000e+00> : vector<8x8xf32>
    %82 = tpu.matmul %80, %81, %cst_38 {dimension_numbers = #tpu.dot_dimension_numbers<[1], [1], [0], [0], [0, 0, 1, 0], [], []>} : vector<8x8xbf16>, vector<8x8xbf16>, vector<8x8xf32> -> vector<8x8xf32>
    %83 = vector.broadcast %22 : vector<1x8xf32> to vector<8x8xf32>
    %84 = arith.addf %82, %83 : vector<8x8xf32>
    %cst_39 = arith.constant dense<0xFF800000> : vector<8xf32>
    %85 = vector.multi_reduction <maximumf>, %84, %cst_39 [1] : vector<8x8xf32> to vector<8xf32>
    %86 = vector.shape_cast %85 : vector<8xf32> to vector<8x1xf32>
    %87 = vector.broadcast %86 : vector<8x1xf32> to vector<8x8xf32>
    %88 = arith.subf %84, %87 : vector<8x8xf32>
    %89 = math.exp %88 : vector<8x8xf32>
    %cst_40 = arith.constant dense<0.000000e+00> : vector<8xf32>
    %90 = vector.multi_reduction <add>, %89, %cst_40 [1] : vector<8x8xf32> to vector<8xf32>
    %91 = vector.shape_cast %90 : vector<8xf32> to vector<8x1xf32>
    %92 = arith.truncf %89 : vector<8x8xf32> to vector<8x8xbf16>
    %c0_41 = arith.constant 0 : index
    %c56 = arith.constant 56 : index
    %93 = vector.load %arg13[%c0_41, %c56] : memref<8x64xbf16, #tpu.memory_space<vmem>>, vector<8x8xbf16>
    %cst_42 = arith.constant dense<0.000000e+00> : vector<8x8xf32>
    %94 = tpu.matmul %92, %93, %cst_42 {dimension_numbers = #tpu.dot_dimension_numbers<[1], [0], [0], [1], [0, 0, 1, 1], [], []>} : vector<8x8xbf16>, vector<8x8xbf16>, vector<8x8xf32> -> vector<8x8xf32>
    %95 = tpu.reciprocal %91 {approx = true} : vector<8x1xf32> -> vector<8x1xf32>
    %96 = vector.broadcast %95 : vector<8x1xf32> to vector<8x8xf32>
    %97 = arith.mulf %94, %96 : vector<8x8xf32>
    %c0_43 = arith.constant 0 : index
    %c24_44 = arith.constant 24 : index
    %98 = vector.load %arg14[%c0_43, %c24_44] : memref<8x32xf32, #tpu.memory_space<vmem>>, vector<8x8xf32>
    tpu.vector_store %arg14[%c0_43, %c24_44], %97 {strides = array<i32>} : memref<8x32xf32, #tpu.memory_space<vmem>>, vector<8x8xf32>,
    %c0_45 = arith.constant 0 : index
    %c0_46 = arith.constant 0 : index
    %99 = vector.load %arg14[%c0_45, %c0_46] : memref<8x32xf32, #tpu.memory_space<vmem>>, vector<8x32xf32>
    %100 = arith.truncf %99 : vector<8x32xf32> to vector<8x32xbf16>
    %c0_47 = arith.constant 0 : index
    %c0_48 = arith.constant 0 : index
    %101 = vector.load %arg8[%c0_47, %c0_48] : memref<32x32xbf16, #tpu.memory_space<vmem>>, vector<32x32xbf16>
    %cst_49 = arith.constant dense<0.000000e+00> : vector<8x32xf32>
    %102 = tpu.matmul %100, %101, %cst_49 {dimension_numbers = #tpu.dot_dimension_numbers<[1], [0], [0], [1], [0, 0, 1, 1], [], []>} : vector<8x32xbf16>, vector<32x32xbf16>, vector<8x32xf32> -> vector<8x32xf32>
    %c0_50 = arith.constant 0 : index
    %c0_51 = arith.constant 0 : index
    %103 = vector.load %arg9[%c0_50, %c0_51] : memref<1x32xf32, #tpu.memory_space<vmem>>, vector<1x32xf32>
    %104 = vector.broadcast %103 : vector<1x32xf32> to vector<8x32xf32>
    %105 = arith.addf %102, %104 : vector<8x32xf32>
    %106 = arith.addf %7, %105 : vector<8x32xf32>
    %cst_52 = arith.constant dense<0.000000e+00> : vector<8xf32>
    %107 = vector.multi_reduction <add>, %106, %cst_52 [1] : vector<8x32xf32> to vector<8xf32>
    %108 = vector.shape_cast %107 : vector<8xf32> to vector<8x1xf32>
    %cst_53 = arith.constant 3.200000e+01 : f32
    %109 = vector.broadcast %cst_53 : f32 to vector<8x1xf32>
    %110 = arith.divf %108, %109 : vector<8x1xf32>
    %111 = vector.broadcast %110 : vector<8x1xf32> to vector<8x32xf32>
    %112 = arith.subf %106, %111 : vector<8x32xf32>
    %113 = arith.mulf %112, %112 : vector<8x32xf32>
    %cst_54 = arith.constant dense<0.000000e+00> : vector<8xf32>
    %114 = vector.multi_reduction <add>, %113, %cst_54 [1] : vector<8x32xf32> to vector<8xf32>
    %115 = vector.shape_cast %114 : vector<8xf32> to vector<8x1xf32>
    %cst_55 = arith.constant 3.200000e+01 : f32
    %116 = vector.broadcast %cst_55 : f32 to vector<8x1xf32>
    %117 = arith.divf %115, %116 : vector<8x1xf32>
    %118 = vector.broadcast %110 : vector<8x1xf32> to vector<8x32xf32>
    %119 = arith.subf %106, %118 : vector<8x32xf32>
    %cst_56 = arith.constant 9.99999974E-6 : f32
    %120 = vector.broadcast %cst_56 : f32 to vector<8x1xf32>
    %121 = arith.addf %117, %120 : vector<8x1xf32>
    %122 = math.rsqrt %121 : vector<8x1xf32>
    %123 = vector.broadcast %122 : vector<8x1xf32> to vector<8x32xf32>
    %124 = arith.mulf %119, %123 : vector<8x32xf32>
    %c0_57 = arith.constant 0 : index
    %c0_58 = arith.constant 0 : index
    %125 = vector.load %arg10[%c0_57, %c0_58] : memref<1x32xf32, #tpu.memory_space<vmem>>, vector<1x32xf32>
    %126 = vector.broadcast %125 : vector<1x32xf32> to vector<8x32xf32>
    %127 = arith.mulf %124, %126 : vector<8x32xf32>
    %c0_59 = arith.constant 0 : index
    %c0_60 = arith.constant 0 : index
    %128 = vector.load %arg11[%c0_59, %c0_60] : memref<1x32xf32, #tpu.memory_space<vmem>>, vector<1x32xf32>
    %129 = vector.broadcast %128 : vector<1x32xf32> to vector<8x32xf32>
    %130 = arith.addf %127, %129 : vector<8x32xf32>
    %c0_61 = arith.constant 0 : index
    %c0_62 = arith.constant 0 : index
    %c0_63 = arith.constant 0 : index
    %131 = vector.load %arg12[%c0_61, %c0_62, %c0_63] : memref<1x8x32xf32, #tpu.memory_space<vmem>>, vector<1x8x32xf32>
    %132 = vector.shape_cast %131 : vector<1x8x32xf32> to vector<8x32xf32>
    %133 = vector.shape_cast %130 : vector<8x32xf32> to vector<1x8x32xf32>
    tpu.vector_store %arg12[%c0_61, %c0_62, %c0_63], %133 {strides = array<i32>} : memref<1x8x32xf32, #tpu.memory_space<vmem>>, vector<1x8x32xf32>,
    return
  }
  func.func @transform_0(%arg0: i32, %arg1: i32) -> (i32, i32, i32) {
    %c0_i32 = arith.constant 0 : i32
    %c0_i32_0 = arith.constant 0 : i32
    %c0_i32_1 = arith.constant 0 : i32
    return %arg0, %c0_i32, %c0_i32_0 : i32, i32, i32
  }
  func.func @transform_1(%arg0: i32, %arg1: i32) -> (i32, i32, i32) {
    %c0_i32 = arith.constant 0 : i32
    %c0_i32_0 = arith.constant 0 : i32
    %c0_i32_1 = arith.constant 0 : i32
    return %arg0, %c0_i32, %c0_i32_0 : i32, i32, i32
  }
  func.func @transform_2(%arg0: i32, %arg1: i32) -> (i32, i32) {
    %c0_i32 = arith.constant 0 : i32
    %c0_i32_0 = arith.constant 0 : i32
    %c0_i32_1 = arith.constant 0 : i32
    return %c0_i32, %c0_i32_0 : i32, i32
  }
  func.func @transform_3(%arg0: i32, %arg1: i32) -> (i32, i32) {
    %c0_i32 = arith.constant 0 : i32
    %c0_i32_0 = arith.constant 0 : i32
    %c0_i32_1 = arith.constant 0 : i32
    return %c0_i32, %c0_i32_0 : i32, i32
  }
  func.func @transform_4(%arg0: i32, %arg1: i32) -> (i32, i32) {
    %c0_i32 = arith.constant 0 : i32
    %c0_i32_0 = arith.constant 0 : i32
    %c0_i32_1 = arith.constant 0 : i32
    return %c0_i32, %c0_i32_0 : i32, i32
  }
  func.func @transform_5(%arg0: i32, %arg1: i32) -> (i32, i32) {
    %c0_i32 = arith.constant 0 : i32
    %c0_i32_0 = arith.constant 0 : i32
    %c0_i32_1 = arith.constant 0 : i32
    return %c0_i32, %c0_i32_0 : i32, i32
  }
  func.func @transform_6(%arg0: i32, %arg1: i32) -> (i32, i32) {
    %c0_i32 = arith.constant 0 : i32
    %c0_i32_0 = arith.constant 0 : i32
    %c0_i32_1 = arith.constant 0 : i32
    return %c0_i32, %c0_i32_0 : i32, i32
  }
  func.func @transform_7(%arg0: i32, %arg1: i32) -> (i32, i32) {
    %c0_i32 = arith.constant 0 : i32
    %c0_i32_0 = arith.constant 0 : i32
    %c0_i32_1 = arith.constant 0 : i32
    return %c0_i32, %c0_i32_0 : i32, i32
  }
  func.func @transform_8(%arg0: i32, %arg1: i32) -> (i32, i32) {
    %c0_i32 = arith.constant 0 : i32
    %c0_i32_0 = arith.constant 0 : i32
    %c0_i32_1 = arith.constant 0 : i32
    return %c0_i32, %c0_i32_0 : i32, i32
  }
  func.func @transform_9(%arg0: i32, %arg1: i32) -> (i32, i32) {
    %c0_i32 = arith.constant 0 : i32
    %c0_i32_0 = arith.constant 0 : i32
    %c0_i32_1 = arith.constant 0 : i32
    return %c0_i32, %c0_i32_0 : i32, i32
  }
  func.func @transform_10(%arg0: i32, %arg1: i32) -> (i32, i32, i32) {
    %c0_i32 = arith.constant 0 : i32
    %c0_i32_0 = arith.constant 0 : i32
    return %arg0, %arg1, %c0_i32 : i32, i32, i32
  }
}

module attributes {stable_mosaic.version = 11 : i64} {
  func.func @_mha_ln_kernel(%arg0: i32, %arg1: i32, %arg2: memref<1x8x32xf32, #tpu.memory_space<vmem>>, %arg3: memref<1x8x32xf32, #tpu.memory_space<vmem>>, %arg4: memref<1x1x8xf32, #tpu.memory_space<vmem>>, %arg5: memref<32x32xbf16, #tpu.memory_space<vmem>>, %arg6: memref<1x32xf32, #tpu.memory_space<vmem>>, %arg7: memref<32x64xbf16, #tpu.memory_space<vmem>>, %arg8: memref<1x64xf32, #tpu.memory_space<vmem>>, %arg9: memref<32x32xbf16, #tpu.memory_space<vmem>>, %arg10: memref<1x32xf32, #tpu.memory_space<vmem>>, %arg11: memref<1x32xf32, #tpu.memory_space<vmem>>, %arg12: memref<1x32xf32, #tpu.memory_space<vmem>>, %arg13: memref<1x8x32xf32, #tpu.memory_space<vmem>>, %arg14: memref<8x64xbf16, #tpu.memory_space<vmem>>, %arg15: memref<8x32xf32, #tpu.memory_space<vmem>>) attributes {dimension_semantics = [#tpu.dimension_semantics<parallel>, #tpu.dimension_semantics<arbitrary>], iteration_bounds = array<i64: 2, 1>, scalar_prefetch = 0 : i64, scratch_operands = 2 : i64, tpu.core_type = #tpu.core_type<tc>, window_params = [{transform_indices = @transform_0, window_bounds = array<i64: 1, 8, 32>}, {transform_indices = @transform_1, window_bounds = array<i64: 1, 8, 32>}, {transform_indices = @transform_2, window_bounds = array<i64: 1, 1, 8>}, {pipeline_mode = #tpu.pipeline_mode<synchronous>, transform_indices = @transform_3, window_bounds = array<i64: 32, 32>}, {pipeline_mode = #tpu.pipeline_mode<synchronous>, transform_indices = @transform_4, window_bounds = array<i64: 1, 32>}, {pipeline_mode = #tpu.pipeline_mode<synchronous>, transform_indices = @transform_5, window_bounds = array<i64: 32, 64>}, {pipeline_mode = #tpu.pipeline_mode<synchronous>, transform_indices = @transform_6, window_bounds = array<i64: 1, 64>}, {pipeline_mode = #tpu.pipeline_mode<synchronous>, transform_indices = @transform_7, window_bounds = array<i64: 32, 32>}, {pipeline_mode = #tpu.pipeline_mode<synchronous>, transform_indices = @transform_8, window_bounds = array<i64: 1, 32>}, {pipeline_mode = #tpu.pipeline_mode<synchronous>, transform_indices = @transform_9, window_bounds = array<i64: 1, 32>}, {pipeline_mode = #tpu.pipeline_mode<synchronous>, transform_indices = @transform_10, window_bounds = array<i64: 1, 32>}, {transform_indices = @transform_11, window_bounds = array<i64: 1, 8, 32>}]} {
    %c0_i32 = arith.constant 0 : i32
    %0 = arith.cmpi eq, %arg1, %c0_i32 : i32
    %1 = arith.extui %0 : i1 to i32
    %c0_i32_0 = arith.constant 0 : i32
    %2 = arith.cmpi ne, %1, %c0_i32_0 : i32
    scf.if %2 {
      %c0_65 = arith.constant 0 : index
      %c0_66 = arith.constant 0 : index
      %c0_67 = arith.constant 0 : index
      %131 = vector.load %arg3[%c0_65, %c0_66, %c0_67] : memref<1x8x32xf32, #tpu.memory_space<vmem>>, vector<1x8x32xf32>
      %132 = vector.shape_cast %131 : vector<1x8x32xf32> to vector<8x32xf32>
      %133 = arith.truncf %132 : vector<8x32xf32> to vector<8x32xbf16>
      %c0_68 = arith.constant 0 : index
      %c0_69 = arith.constant 0 : index
      %134 = vector.load %arg7[%c0_68, %c0_69] : memref<32x64xbf16, #tpu.memory_space<vmem>>, vector<32x64xbf16>
      %cst_70 = arith.constant dense<0.000000e+00> : vector<8x64xf32>
      %135 = tpu.matmul %133, %134, %cst_70 {dimension_numbers = #tpu.dot_dimension_numbers<[1], [0], [0], [1], [0, 0, 1, 1], [], []>} : vector<8x32xbf16>, vector<32x64xbf16>, vector<8x64xf32> -> vector<8x64xf32>
      %c0_71 = arith.constant 0 : index
      %c0_72 = arith.constant 0 : index
      %136 = vector.load %arg8[%c0_71, %c0_72] : memref<1x64xf32, #tpu.memory_space<vmem>>, vector<1x64xf32>
      %137 = vector.broadcast %136 : vector<1x64xf32> to vector<8x64xf32>
      %138 = arith.addf %135, %137 : vector<8x64xf32>
      %139 = arith.truncf %138 : vector<8x64xf32> to vector<8x64xbf16>
      %c0_73 = arith.constant 0 : index
      %c0_74 = arith.constant 0 : index
      %140 = vector.load %arg14[%c0_73, %c0_74] : memref<8x64xbf16, #tpu.memory_space<vmem>>, vector<8x64xbf16>
      tpu.vector_store %arg14[%c0_73, %c0_74], %139 {strides = array<i32>} : memref<8x64xbf16, #tpu.memory_space<vmem>>, vector<8x64xbf16>,
    } else {
    }
    %c0 = arith.constant 0 : index
    %c0_1 = arith.constant 0 : index
    %c0_2 = arith.constant 0 : index
    %3 = vector.load %arg2[%c0, %c0_1, %c0_2] : memref<1x8x32xf32, #tpu.memory_space<vmem>>, vector<1x8x32xf32>
    %4 = vector.shape_cast %3 : vector<1x8x32xf32> to vector<8x32xf32>
    %5 = arith.truncf %4 : vector<8x32xf32> to vector<8x32xbf16>
    %c0_3 = arith.constant 0 : index
    %c0_4 = arith.constant 0 : index
    %6 = vector.load %arg5[%c0_3, %c0_4] : memref<32x32xbf16, #tpu.memory_space<vmem>>, vector<32x32xbf16>
    %cst = arith.constant dense<0.000000e+00> : vector<8x32xf32>
    %7 = tpu.matmul %5, %6, %cst {dimension_numbers = #tpu.dot_dimension_numbers<[1], [0], [0], [1], [0, 0, 1, 1], [], []>} : vector<8x32xbf16>, vector<32x32xbf16>, vector<8x32xf32> -> vector<8x32xf32>
    %c0_5 = arith.constant 0 : index
    %c0_6 = arith.constant 0 : index
    %8 = vector.load %arg6[%c0_5, %c0_6] : memref<1x32xf32, #tpu.memory_space<vmem>>, vector<1x32xf32>
    %9 = vector.broadcast %8 : vector<1x32xf32> to vector<8x32xf32>
    %10 = arith.addf %7, %9 : vector<8x32xf32>
    %cst_7 = arith.constant 0.353553385 : f32
    %11 = vector.broadcast %cst_7 : f32 to vector<8x32xf32>
    %12 = arith.mulf %10, %11 : vector<8x32xf32>
    %13 = arith.truncf %12 : vector<8x32xf32> to vector<8x32xbf16>
    %c0_8 = arith.constant 0 : index
    %c0_9 = arith.constant 0 : index
    %c0_10 = arith.constant 0 : index
    %14 = vector.load %arg4[%c0_8, %c0_9, %c0_10] : memref<1x1x8xf32, #tpu.memory_space<vmem>>, vector<1x1x8xf32>
    %15 = vector.shape_cast %14 : vector<1x1x8xf32> to vector<1x8xf32>
    %cst_11 = arith.constant 1.000000e+00 : f32
    %16 = vector.broadcast %cst_11 : f32 to vector<1x8xf32>
    %17 = arith.subf %15, %16 : vector<1x8xf32>
    %cst_12 = arith.constant 1.000000e+09 : f32
    %18 = vector.broadcast %cst_12 : f32 to vector<1x8xf32>
    %19 = arith.mulf %17, %18 : vector<1x8xf32>
    %20 = vector.extract_strided_slice %13 {offsets = [0, 0], sizes = [8, 8], strides = [1, 1]} : vector<8x32xbf16> to vector<8x8xbf16>
    %c0_13 = arith.constant 0 : index
    %c0_14 = arith.constant 0 : index
    %21 = vector.load %arg14[%c0_13, %c0_14] : memref<8x64xbf16, #tpu.memory_space<vmem>>, vector<8x8xbf16>
    %cst_15 = arith.constant dense<0.000000e+00> : vector<8x8xf32>
    %22 = tpu.matmul %20, %21, %cst_15 {dimension_numbers = #tpu.dot_dimension_numbers<[1], [1], [0], [0], [0, 0, 1, 0], [], []>} : vector<8x8xbf16>, vector<8x8xbf16>, vector<8x8xf32> -> vector<8x8xf32>
    %23 = vector.broadcast %19 : vector<1x8xf32> to vector<8x8xf32>
    %24 = arith.addf %22, %23 : vector<8x8xf32>
    %cst_16 = arith.constant dense<0xFF800000> : vector<8xf32>
    %25 = vector.multi_reduction <maximumf>, %24, %cst_16 [1] : vector<8x8xf32> to vector<8xf32>
    %26 = vector.shape_cast %25 : vector<8xf32> to vector<8x1xf32>
    %27 = vector.broadcast %26 : vector<8x1xf32> to vector<8x8xf32>
    %28 = arith.subf %24, %27 : vector<8x8xf32>
    %29 = math.exp %28 : vector<8x8xf32>
    %cst_17 = arith.constant dense<0.000000e+00> : vector<8xf32>
    %30 = vector.multi_reduction <add>, %29, %cst_17 [1] : vector<8x8xf32> to vector<8xf32>
    %31 = vector.shape_cast %30 : vector<8xf32> to vector<8x1xf32>
    %32 = arith.truncf %29 : vector<8x8xf32> to vector<8x8xbf16>
    %c0_18 = arith.constant 0 : index
    %c32 = arith.constant 32 : index
    %33 = vector.load %arg14[%c0_18, %c32] : memref<8x64xbf16, #tpu.memory_space<vmem>>, vector<8x8xbf16>
    %cst_19 = arith.constant dense<0.000000e+00> : vector<8x8xf32>
    %34 = tpu.matmul %32, %33, %cst_19 {dimension_numbers = #tpu.dot_dimension_numbers<[1], [0], [0], [1], [0, 0, 1, 1], [], []>} : vector<8x8xbf16>, vector<8x8xbf16>, vector<8x8xf32> -> vector<8x8xf32>
    %35 = tpu.reciprocal %31 {approx = true} : vector<8x1xf32> -> vector<8x1xf32>
    %36 = vector.broadcast %35 : vector<8x1xf32> to vector<8x8xf32>
    %37 = arith.mulf %34, %36 : vector<8x8xf32>
    %c0_20 = arith.constant 0 : index
    %c0_21 = arith.constant 0 : index
    %38 = vector.load %arg15[%c0_20, %c0_21] : memref<8x32xf32, #tpu.memory_space<vmem>>, vector<8x8xf32>
    tpu.vector_store %arg15[%c0_20, %c0_21], %37 {strides = array<i32>} : memref<8x32xf32, #tpu.memory_space<vmem>>, vector<8x8xf32>,
    %39 = vector.extract_strided_slice %13 {offsets = [0, 8], sizes = [8, 8], strides = [1, 1]} : vector<8x32xbf16> to vector<8x8xbf16>
    %c0_22 = arith.constant 0 : index
    %c8 = arith.constant 8 : index
    %40 = vector.load %arg14[%c0_22, %c8] : memref<8x64xbf16, #tpu.memory_space<vmem>>, vector<8x8xbf16>
    %cst_23 = arith.constant dense<0.000000e+00> : vector<8x8xf32>
    %41 = tpu.matmul %39, %40, %cst_23 {dimension_numbers = #tpu.dot_dimension_numbers<[1], [1], [0], [0], [0, 0, 1, 0], [], []>} : vector<8x8xbf16>, vector<8x8xbf16>, vector<8x8xf32> -> vector<8x8xf32>
    %42 = vector.broadcast %19 : vector<1x8xf32> to vector<8x8xf32>
    %43 = arith.addf %41, %42 : vector<8x8xf32>
    %cst_24 = arith.constant dense<0xFF800000> : vector<8xf32>
    %44 = vector.multi_reduction <maximumf>, %43, %cst_24 [1] : vector<8x8xf32> to vector<8xf32>
    %45 = vector.shape_cast %44 : vector<8xf32> to vector<8x1xf32>
    %46 = vector.broadcast %45 : vector<8x1xf32> to vector<8x8xf32>
    %47 = arith.subf %43, %46 : vector<8x8xf32>
    %48 = math.exp %47 : vector<8x8xf32>
    %cst_25 = arith.constant dense<0.000000e+00> : vector<8xf32>
    %49 = vector.multi_reduction <add>, %48, %cst_25 [1] : vector<8x8xf32> to vector<8xf32>
    %50 = vector.shape_cast %49 : vector<8xf32> to vector<8x1xf32>
    %51 = arith.truncf %48 : vector<8x8xf32> to vector<8x8xbf16>
    %c0_26 = arith.constant 0 : index
    %c40 = arith.constant 40 : index
    %52 = vector.load %arg14[%c0_26, %c40] : memref<8x64xbf16, #tpu.memory_space<vmem>>, vector<8x8xbf16>
    %cst_27 = arith.constant dense<0.000000e+00> : vector<8x8xf32>
    %53 = tpu.matmul %51, %52, %cst_27 {dimension_numbers = #tpu.dot_dimension_numbers<[1], [0], [0], [1], [0, 0, 1, 1], [], []>} : vector<8x8xbf16>, vector<8x8xbf16>, vector<8x8xf32> -> vector<8x8xf32>
    %54 = tpu.reciprocal %50 {approx = true} : vector<8x1xf32> -> vector<8x1xf32>
    %55 = vector.broadcast %54 : vector<8x1xf32> to vector<8x8xf32>
    %56 = arith.mulf %53, %55 : vector<8x8xf32>
    %c0_28 = arith.constant 0 : index
    %c8_29 = arith.constant 8 : index
    %57 = vector.load %arg15[%c0_28, %c8_29] : memref<8x32xf32, #tpu.memory_space<vmem>>, vector<8x8xf32>
    tpu.vector_store %arg15[%c0_28, %c8_29], %56 {strides = array<i32>} : memref<8x32xf32, #tpu.memory_space<vmem>>, vector<8x8xf32>,
    %58 = vector.extract_strided_slice %13 {offsets = [0, 16], sizes = [8, 8], strides = [1, 1]} : vector<8x32xbf16> to vector<8x8xbf16>
    %c0_30 = arith.constant 0 : index
    %c16 = arith.constant 16 : index
    %59 = vector.load %arg14[%c0_30, %c16] : memref<8x64xbf16, #tpu.memory_space<vmem>>, vector<8x8xbf16>
    %cst_31 = arith.constant dense<0.000000e+00> : vector<8x8xf32>
    %60 = tpu.matmul %58, %59, %cst_31 {dimension_numbers = #tpu.dot_dimension_numbers<[1], [1], [0], [0], [0, 0, 1, 0], [], []>} : vector<8x8xbf16>, vector<8x8xbf16>, vector<8x8xf32> -> vector<8x8xf32>
    %61 = vector.broadcast %19 : vector<1x8xf32> to vector<8x8xf32>
    %62 = arith.addf %60, %61 : vector<8x8xf32>
    %cst_32 = arith.constant dense<0xFF800000> : vector<8xf32>
    %63 = vector.multi_reduction <maximumf>, %62, %cst_32 [1] : vector<8x8xf32> to vector<8xf32>
    %64 = vector.shape_cast %63 : vector<8xf32> to vector<8x1xf32>
    %65 = vector.broadcast %64 : vector<8x1xf32> to vector<8x8xf32>
    %66 = arith.subf %62, %65 : vector<8x8xf32>
    %67 = math.exp %66 : vector<8x8xf32>
    %cst_33 = arith.constant dense<0.000000e+00> : vector<8xf32>
    %68 = vector.multi_reduction <add>, %67, %cst_33 [1] : vector<8x8xf32> to vector<8xf32>
    %69 = vector.shape_cast %68 : vector<8xf32> to vector<8x1xf32>
    %70 = arith.truncf %67 : vector<8x8xf32> to vector<8x8xbf16>
    %c0_34 = arith.constant 0 : index
    %c48 = arith.constant 48 : index
    %71 = vector.load %arg14[%c0_34, %c48] : memref<8x64xbf16, #tpu.memory_space<vmem>>, vector<8x8xbf16>
    %cst_35 = arith.constant dense<0.000000e+00> : vector<8x8xf32>
    %72 = tpu.matmul %70, %71, %cst_35 {dimension_numbers = #tpu.dot_dimension_numbers<[1], [0], [0], [1], [0, 0, 1, 1], [], []>} : vector<8x8xbf16>, vector<8x8xbf16>, vector<8x8xf32> -> vector<8x8xf32>
    %73 = tpu.reciprocal %69 {approx = true} : vector<8x1xf32> -> vector<8x1xf32>
    %74 = vector.broadcast %73 : vector<8x1xf32> to vector<8x8xf32>
    %75 = arith.mulf %72, %74 : vector<8x8xf32>
    %c0_36 = arith.constant 0 : index
    %c16_37 = arith.constant 16 : index
    %76 = vector.load %arg15[%c0_36, %c16_37] : memref<8x32xf32, #tpu.memory_space<vmem>>, vector<8x8xf32>
    tpu.vector_store %arg15[%c0_36, %c16_37], %75 {strides = array<i32>} : memref<8x32xf32, #tpu.memory_space<vmem>>, vector<8x8xf32>,
    %77 = vector.extract_strided_slice %13 {offsets = [0, 24], sizes = [8, 8], strides = [1, 1]} : vector<8x32xbf16> to vector<8x8xbf16>
    %c0_38 = arith.constant 0 : index
    %c24 = arith.constant 24 : index
    %78 = vector.load %arg14[%c0_38, %c24] : memref<8x64xbf16, #tpu.memory_space<vmem>>, vector<8x8xbf16>
    %cst_39 = arith.constant dense<0.000000e+00> : vector<8x8xf32>
    %79 = tpu.matmul %77, %78, %cst_39 {dimension_numbers = #tpu.dot_dimension_numbers<[1], [1], [0], [0], [0, 0, 1, 0], [], []>} : vector<8x8xbf16>, vector<8x8xbf16>, vector<8x8xf32> -> vector<8x8xf32>
    %80 = vector.broadcast %19 : vector<1x8xf32> to vector<8x8xf32>
    %81 = arith.addf %79, %80 : vector<8x8xf32>
    %cst_40 = arith.constant dense<0xFF800000> : vector<8xf32>
    %82 = vector.multi_reduction <maximumf>, %81, %cst_40 [1] : vector<8x8xf32> to vector<8xf32>
    %83 = vector.shape_cast %82 : vector<8xf32> to vector<8x1xf32>
    %84 = vector.broadcast %83 : vector<8x1xf32> to vector<8x8xf32>
    %85 = arith.subf %81, %84 : vector<8x8xf32>
    %86 = math.exp %85 : vector<8x8xf32>
    %cst_41 = arith.constant dense<0.000000e+00> : vector<8xf32>
    %87 = vector.multi_reduction <add>, %86, %cst_41 [1] : vector<8x8xf32> to vector<8xf32>
    %88 = vector.shape_cast %87 : vector<8xf32> to vector<8x1xf32>
    %89 = arith.truncf %86 : vector<8x8xf32> to vector<8x8xbf16>
    %c0_42 = arith.constant 0 : index
    %c56 = arith.constant 56 : index
    %90 = vector.load %arg14[%c0_42, %c56] : memref<8x64xbf16, #tpu.memory_space<vmem>>, vector<8x8xbf16>
    %cst_43 = arith.constant dense<0.000000e+00> : vector<8x8xf32>
    %91 = tpu.matmul %89, %90, %cst_43 {dimension_numbers = #tpu.dot_dimension_numbers<[1], [0], [0], [1], [0, 0, 1, 1], [], []>} : vector<8x8xbf16>, vector<8x8xbf16>, vector<8x8xf32> -> vector<8x8xf32>
    %92 = tpu.reciprocal %88 {approx = true} : vector<8x1xf32> -> vector<8x1xf32>
    %93 = vector.broadcast %92 : vector<8x1xf32> to vector<8x8xf32>
    %94 = arith.mulf %91, %93 : vector<8x8xf32>
    %c0_44 = arith.constant 0 : index
    %c24_45 = arith.constant 24 : index
    %95 = vector.load %arg15[%c0_44, %c24_45] : memref<8x32xf32, #tpu.memory_space<vmem>>, vector<8x8xf32>
    tpu.vector_store %arg15[%c0_44, %c24_45], %94 {strides = array<i32>} : memref<8x32xf32, #tpu.memory_space<vmem>>, vector<8x8xf32>,
    %c0_46 = arith.constant 0 : index
    %c0_47 = arith.constant 0 : index
    %96 = vector.load %arg15[%c0_46, %c0_47] : memref<8x32xf32, #tpu.memory_space<vmem>>, vector<8x32xf32>
    %97 = arith.truncf %96 : vector<8x32xf32> to vector<8x32xbf16>
    %c0_48 = arith.constant 0 : index
    %c0_49 = arith.constant 0 : index
    %98 = vector.load %arg9[%c0_48, %c0_49] : memref<32x32xbf16, #tpu.memory_space<vmem>>, vector<32x32xbf16>
    %cst_50 = arith.constant dense<0.000000e+00> : vector<8x32xf32>
    %99 = tpu.matmul %97, %98, %cst_50 {dimension_numbers = #tpu.dot_dimension_numbers<[1], [0], [0], [1], [0, 0, 1, 1], [], []>} : vector<8x32xbf16>, vector<32x32xbf16>, vector<8x32xf32> -> vector<8x32xf32>
    %c0_51 = arith.constant 0 : index
    %c0_52 = arith.constant 0 : index
    %100 = vector.load %arg10[%c0_51, %c0_52] : memref<1x32xf32, #tpu.memory_space<vmem>>, vector<1x32xf32>
    %101 = vector.broadcast %100 : vector<1x32xf32> to vector<8x32xf32>
    %102 = arith.addf %99, %101 : vector<8x32xf32>
    %103 = arith.addf %4, %102 : vector<8x32xf32>
    %cst_53 = arith.constant dense<0.000000e+00> : vector<8xf32>
    %104 = vector.multi_reduction <add>, %103, %cst_53 [1] : vector<8x32xf32> to vector<8xf32>
    %105 = vector.shape_cast %104 : vector<8xf32> to vector<8x1xf32>
    %cst_54 = arith.constant 3.200000e+01 : f32
    %106 = vector.broadcast %cst_54 : f32 to vector<8x1xf32>
    %107 = arith.divf %105, %106 : vector<8x1xf32>
    %108 = vector.broadcast %107 : vector<8x1xf32> to vector<8x32xf32>
    %109 = arith.subf %103, %108 : vector<8x32xf32>
    %110 = arith.mulf %109, %109 : vector<8x32xf32>
    %cst_55 = arith.constant dense<0.000000e+00> : vector<8xf32>
    %111 = vector.multi_reduction <add>, %110, %cst_55 [1] : vector<8x32xf32> to vector<8xf32>
    %112 = vector.shape_cast %111 : vector<8xf32> to vector<8x1xf32>
    %cst_56 = arith.constant 3.200000e+01 : f32
    %113 = vector.broadcast %cst_56 : f32 to vector<8x1xf32>
    %114 = arith.divf %112, %113 : vector<8x1xf32>
    %115 = vector.broadcast %107 : vector<8x1xf32> to vector<8x32xf32>
    %116 = arith.subf %103, %115 : vector<8x32xf32>
    %cst_57 = arith.constant 9.99999974E-6 : f32
    %117 = vector.broadcast %cst_57 : f32 to vector<8x1xf32>
    %118 = arith.addf %114, %117 : vector<8x1xf32>
    %119 = math.rsqrt %118 : vector<8x1xf32>
    %120 = vector.broadcast %119 : vector<8x1xf32> to vector<8x32xf32>
    %121 = arith.mulf %116, %120 : vector<8x32xf32>
    %c0_58 = arith.constant 0 : index
    %c0_59 = arith.constant 0 : index
    %122 = vector.load %arg11[%c0_58, %c0_59] : memref<1x32xf32, #tpu.memory_space<vmem>>, vector<1x32xf32>
    %123 = vector.broadcast %122 : vector<1x32xf32> to vector<8x32xf32>
    %124 = arith.mulf %121, %123 : vector<8x32xf32>
    %c0_60 = arith.constant 0 : index
    %c0_61 = arith.constant 0 : index
    %125 = vector.load %arg12[%c0_60, %c0_61] : memref<1x32xf32, #tpu.memory_space<vmem>>, vector<1x32xf32>
    %126 = vector.broadcast %125 : vector<1x32xf32> to vector<8x32xf32>
    %127 = arith.addf %124, %126 : vector<8x32xf32>
    %c0_62 = arith.constant 0 : index
    %c0_63 = arith.constant 0 : index
    %c0_64 = arith.constant 0 : index
    %128 = vector.load %arg13[%c0_62, %c0_63, %c0_64] : memref<1x8x32xf32, #tpu.memory_space<vmem>>, vector<1x8x32xf32>
    %129 = vector.shape_cast %128 : vector<1x8x32xf32> to vector<8x32xf32>
    %130 = vector.shape_cast %127 : vector<8x32xf32> to vector<1x8x32xf32>
    tpu.vector_store %arg13[%c0_62, %c0_63, %c0_64], %130 {strides = array<i32>} : memref<1x8x32xf32, #tpu.memory_space<vmem>>, vector<1x8x32xf32>,
    return
  }
  func.func @transform_0(%arg0: i32, %arg1: i32) -> (i32, i32, i32) {
    %c0_i32 = arith.constant 0 : i32
    %c0_i32_0 = arith.constant 0 : i32
    return %arg0, %arg1, %c0_i32 : i32, i32, i32
  }
  func.func @transform_1(%arg0: i32, %arg1: i32) -> (i32, i32, i32) {
    %c0_i32 = arith.constant 0 : i32
    %c0_i32_0 = arith.constant 0 : i32
    %c0_i32_1 = arith.constant 0 : i32
    return %arg0, %c0_i32, %c0_i32_0 : i32, i32, i32
  }
  func.func @transform_2(%arg0: i32, %arg1: i32) -> (i32, i32, i32) {
    %c0_i32 = arith.constant 0 : i32
    %c0_i32_0 = arith.constant 0 : i32
    %c0_i32_1 = arith.constant 0 : i32
    return %arg0, %c0_i32, %c0_i32_0 : i32, i32, i32
  }
  func.func @transform_3(%arg0: i32, %arg1: i32) -> (i32, i32) {
    %c0_i32 = arith.constant 0 : i32
    %c0_i32_0 = arith.constant 0 : i32
    %c0_i32_1 = arith.constant 0 : i32
    return %c0_i32, %c0_i32_0 : i32, i32
  }
  func.func @transform_4(%arg0: i32, %arg1: i32) -> (i32, i32) {
    %c0_i32 = arith.constant 0 : i32
    %c0_i32_0 = arith.constant 0 : i32
    %c0_i32_1 = arith.constant 0 : i32
    return %c0_i32, %c0_i32_0 : i32, i32
  }
  func.func @transform_5(%arg0: i32, %arg1: i32) -> (i32, i32) {
    %c0_i32 = arith.constant 0 : i32
    %c0_i32_0 = arith.constant 0 : i32
    %c0_i32_1 = arith.constant 0 : i32
    return %c0_i32, %c0_i32_0 : i32, i32
  }
  func.func @transform_6(%arg0: i32, %arg1: i32) -> (i32, i32) {
    %c0_i32 = arith.constant 0 : i32
    %c0_i32_0 = arith.constant 0 : i32
    %c0_i32_1 = arith.constant 0 : i32
    return %c0_i32, %c0_i32_0 : i32, i32
  }
  func.func @transform_7(%arg0: i32, %arg1: i32) -> (i32, i32) {
    %c0_i32 = arith.constant 0 : i32
    %c0_i32_0 = arith.constant 0 : i32
    %c0_i32_1 = arith.constant 0 : i32
    return %c0_i32, %c0_i32_0 : i32, i32
  }
  func.func @transform_8(%arg0: i32, %arg1: i32) -> (i32, i32) {
    %c0_i32 = arith.constant 0 : i32
    %c0_i32_0 = arith.constant 0 : i32
    %c0_i32_1 = arith.constant 0 : i32
    return %c0_i32, %c0_i32_0 : i32, i32
  }
  func.func @transform_9(%arg0: i32, %arg1: i32) -> (i32, i32) {
    %c0_i32 = arith.constant 0 : i32
    %c0_i32_0 = arith.constant 0 : i32
    %c0_i32_1 = arith.constant 0 : i32
    return %c0_i32, %c0_i32_0 : i32, i32
  }
  func.func @transform_10(%arg0: i32, %arg1: i32) -> (i32, i32) {
    %c0_i32 = arith.constant 0 : i32
    %c0_i32_0 = arith.constant 0 : i32
    %c0_i32_1 = arith.constant 0 : i32
    return %c0_i32, %c0_i32_0 : i32, i32
  }
  func.func @transform_11(%arg0: i32, %arg1: i32) -> (i32, i32, i32) {
    %c0_i32 = arith.constant 0 : i32
    %c0_i32_0 = arith.constant 0 : i32
    return %arg0, %arg1, %c0_i32 : i32, i32, i32
  }
}

module attributes {stable_mosaic.version = 11 : i64} {
  func.func @_logits_kernel(%arg0: i32, %arg1: i32, %arg2: memref<16x32xf32, #tpu.memory_space<vmem>>, %arg3: memref<128x32xbf16, #tpu.memory_space<vmem>>, %arg4: memref<16x128xf32, #tpu.memory_space<vmem>>) attributes {dimension_semantics = [#tpu.dimension_semantics<parallel>, #tpu.dimension_semantics<parallel>], iteration_bounds = array<i64: 1, 1>, scalar_prefetch = 0 : i64, scratch_operands = 0 : i64, tpu.core_type = #tpu.core_type<tc>, window_params = [{transform_indices = @transform_0, window_bounds = array<i64: 16, 32>}, {transform_indices = @transform_1, window_bounds = array<i64: 128, 32>}, {transform_indices = @transform_2, window_bounds = array<i64: 16, 128>}]} {
    %c0 = arith.constant 0 : index
    %c0_0 = arith.constant 0 : index
    %0 = vector.load %arg2[%c0, %c0_0] : memref<16x32xf32, #tpu.memory_space<vmem>>, vector<16x32xf32>
    %1 = arith.truncf %0 : vector<16x32xf32> to vector<16x32xbf16>
    %c0_1 = arith.constant 0 : index
    %c0_2 = arith.constant 0 : index
    %2 = vector.load %arg3[%c0_1, %c0_2] : memref<128x32xbf16, #tpu.memory_space<vmem>>, vector<128x32xbf16>
    %cst = arith.constant dense<0.000000e+00> : vector<16x128xf32>
    %3 = tpu.matmul %1, %2, %cst {dimension_numbers = #tpu.dot_dimension_numbers<[1], [1], [0], [0], [0, 0, 1, 0], [], []>} : vector<16x32xbf16>, vector<128x32xbf16>, vector<16x128xf32> -> vector<16x128xf32>
    %c0_3 = arith.constant 0 : index
    %c0_4 = arith.constant 0 : index
    %4 = vector.load %arg4[%c0_3, %c0_4] : memref<16x128xf32, #tpu.memory_space<vmem>>, vector<16x128xf32>
    tpu.vector_store %arg4[%c0_3, %c0_4], %3 {strides = array<i32>} : memref<16x128xf32, #tpu.memory_space<vmem>>, vector<16x128xf32>,
    return
  }
  func.func @transform_0(%arg0: i32, %arg1: i32) -> (i32, i32) {
    %c0_i32 = arith.constant 0 : i32
    %c0_i32_0 = arith.constant 0 : i32
    return %arg0, %c0_i32 : i32, i32
  }
  func.func @transform_1(%arg0: i32, %arg1: i32) -> (i32, i32) {
    %c0_i32 = arith.constant 0 : i32
    %c0_i32_0 = arith.constant 0 : i32
    return %arg1, %c0_i32 : i32, i32
  }
  func.func @transform_2(%arg0: i32, %arg1: i32) -> (i32, i32) {
    %c0_i32 = arith.constant 0 : i32
    return %arg0, %arg1 : i32, i32
  }
}

</mosaic_0001>

<llo_original>
// kernel: tpu_custom_call.1
$region0: #{tpu_custom_call.1}
  #allocation0 [shape = 'u32[]', space=smem, size = 0x4, offset = 0x4, fixed_abs, tag = 'smem constant byte address 0x4 - core index']
  #allocation1 [shape = 'u32[144,128]{1,0:T(1,128)}', space=vmem, size = 0x12000, scoped, tag = 'internal scratch']
  %s0 = inlined_call_operand.hbm [shape: f32[8,128], index: 0, kind: input, shape index: {}]
  %s1 = inlined_call_operand.hbm [shape: f32[8,128], index: 1, kind: output, shape index: {}]
  %s2 = sld [smem:[#allocation0]]
  $region18: #{tpu_custom_call.1} parent=0
    _
  %s4 = ssub.s32 1, %s2
  %s5 = scalar_select 0, %s4, %s2
  $region1: #{tpu_custom_call.1} parent=0
    #allocation2 [shape = 'u8[4096]{0}', space=vmem, size = 0x1000, scoped, tag = 'input window, operand 0, single buffered']
    #allocation3 [shape = 's32[1]{0}', space=sflag, size = 0x4, scoped, tag = 'scoped memory for tpu_custom_call.1']
    #allocation4 [shape = 's32[1]{0}', space=sflag, size = 0x4, scoped, tag = 'scoped memory for tpu_custom_call.1']
    #allocation5 [shape = 'u8[4096]{0}', space=vmem, size = 0x1000, scoped, tag = 'output window, operand 0, single buffered']
    %6 = vsyncpa [#allocation3], 0
    %7 = vsyncpa [#allocation4], 0
    // Predicated region
    $region2: #{tpu_custom_call.1} parent=1 // pred_check
      _
    $region3: #{tpu_custom_call.1} parent=1 // pred_check_branch
      %9 = sbr.rel (0) target = $region5
    $region4: #{tpu_custom_call.1} parent=1 // pred_region
      %s11 = ssub.s32 128, 128
      %12 = vsyncadd [#allocation3], %s11
      %s14 = sshll.u32 [#allocation2], 4
      %s15 = int_to_ptr.vmem [resolvable:$true] %s14
      %17 = dma.hbm_to_vmem [thread:$0]  %s0, 128, %s15, [#allocation3]
    $region5: #{tpu_custom_call.1} parent=1 // pred_fallthru
      _
    // Predicated region
    $region6: #{tpu_custom_call.1} parent=1 // pred_check
      _
    $region7: #{tpu_custom_call.1} parent=1 // pred_check_branch
      %19 = sbr.rel (0) target = $region9
    $region8: #{tpu_custom_call.1} parent=1 // pred_region
      %20 = dma.done [#allocation3], 128
    $region9: #{tpu_custom_call.1} parent=1 // pred_fallthru
      _
    %v21 = vld [vmem:[#allocation2] sm:$0xff]
    %22 = vst [vmem:[#allocation5] sm:$0xff] %v21
    // Predicated region
    $region10: #{tpu_custom_call.1} parent=1 // pred_check
      _
    $region11: #{tpu_custom_call.1} parent=1 // pred_check_branch
      %24 = sbr.rel (0) target = $region13
    $region12: #{tpu_custom_call.1} parent=1 // pred_region
      %s26 = ssub.s32 128, 128
      %27 = vsyncadd [#allocation4], %s26
      %s29 = sshll.u32 [#allocation5], 4
      %s30 = int_to_ptr.vmem [resolvable:$true] %s29
      %32 = dma.vmem_to_hbm [thread:$0]  %s30, 128, %s1, [#allocation4]
    $region13: #{tpu_custom_call.1} parent=1 // pred_fallthru
      _
    // Predicated region
    $region14: #{tpu_custom_call.1} parent=1 // pred_check
      _
    $region15: #{tpu_custom_call.1} parent=1 // pred_check_branch
      %34 = sbr.rel (0) target = $region17
    $region16: #{tpu_custom_call.1} parent=1 // pred_region
      %35 = dma.done [#allocation4], 128
    $region17: #{tpu_custom_call.1} parent=1 // pred_fallthru
      _
    %36 = vsyncpa [#allocation3], 1
    %37 = vsyncpa [#allocation4], 1

// kernel: transformer_forward.12
$region0: #{transformer_forward.12}
  #allocation0 [shape = 'u32[]', space=smem, size = 0x4, offset = 0x4, fixed_abs, tag = 'smem constant byte address 0x4 - core index']
  #allocation1 [shape = 'u32[144,128]{1,0:T(1,128)}', space=vmem, size = 0x12000, scoped, tag = 'internal scratch']
  %s0 = inlined_call_operand.vmem [shape: f32[16,32], index: 0, kind: input, shape index: {}]
  %s1 = inlined_call_operand.vmem [shape: bf16[32,64], index: 1, kind: input, shape index: {}]
  %s2 = inlined_call_operand.vmem [shape: f32[1,64], index: 2, kind: input, shape index: {}]
  %s3 = inlined_call_operand.vmem [shape: bf16[64,32], index: 3, kind: input, shape index: {}]
  %s4 = inlined_call_operand.vmem [shape: f32[1,32], index: 4, kind: input, shape index: {}]
  %s5 = inlined_call_operand.vmem [shape: f32[1,32], index: 5, kind: input, shape index: {}]
  %s6 = inlined_call_operand.vmem [shape: f32[1,32], index: 6, kind: input, shape index: {}]
  %s7 = inlined_call_operand.vmem [shape: f32[16,32], index: 7, kind: output, shape index: {}]
  %s8 = sld [smem:[#allocation0]]
  $region38: #{transformer_forward.12} parent=0
    _
  %s10 = ssub.s32 1, %s8
  %s11 = scalar_select 0, %s10, %s8
  // Predicated region
  $region2: #{transformer_forward.12} parent=0 // pred_check
    _
  $region3: #{transformer_forward.12} parent=0 // pred_check_branch
    %13 = sbr.rel (0) target = $region5
  $region4: #{transformer_forward.12} parent=0 // pred_region
    _
  $region5: #{transformer_forward.12} parent=0 // pred_fallthru
    _
  // Predicated region
  $region6: #{transformer_forward.12} parent=0 // pred_check
    _
  $region7: #{transformer_forward.12} parent=0 // pred_check_branch
    %15 = sbr.rel (0) target = $region9
  $region8: #{transformer_forward.12} parent=0 // pred_region
    _
  $region9: #{transformer_forward.12} parent=0 // pred_fallthru
    _
  // Predicated region
  $region10: #{transformer_forward.12} parent=0 // pred_check
    _
  $region11: #{transformer_forward.12} parent=0 // pred_check_branch
    %17 = sbr.rel (0) target = $region13
  $region12: #{transformer_forward.12} parent=0 // pred_region
    _
  $region13: #{transformer_forward.12} parent=0 // pred_fallthru
    _
  // Predicated region
  $region14: #{transformer_forward.12} parent=0 // pred_check
    _
  $region15: #{transformer_forward.12} parent=0 // pred_check_branch
    %19 = sbr.rel (0) target = $region17
  $region16: #{transformer_forward.12} parent=0 // pred_region
    _
  $region17: #{transformer_forward.12} parent=0 // pred_fallthru
    _
  // Predicated region
  $region18: #{transformer_forward.12} parent=0 // pred_check
    _
  $region19: #{transformer_forward.12} parent=0 // pred_check_branch
    %21 = sbr.rel (0) target = $region21
  $region20: #{transformer_forward.12} parent=0 // pred_region
    _
  $region21: #{transformer_forward.12} parent=0 // pred_fallthru
    _
  // Predicated region
  $region22: #{transformer_forward.12} parent=0 // pred_check
    _
  $region23: #{transformer_forward.12} parent=0 // pred_check_branch
    %23 = sbr.rel (0) target = $region25
  $region24: #{transformer_forward.12} parent=0 // pred_region
    _
  $region25: #{transformer_forward.12} parent=0 // pred_fallthru
    _
  // Predicated region
  $region26: #{transformer_forward.12} parent=0 // pred_check
    _
  $region27: #{transformer_forward.12} parent=0 // pred_check_branch
    %25 = sbr.rel (0) target = $region29
  $region28: #{transformer_forward.12} parent=0 // pred_region
    _
  $region29: #{transformer_forward.12} parent=0 // pred_fallthru
    _
  %v27 = vld [vmem:[%s0] sm:$0xff]
  %v28 = vld [vmem:[%s0 + $0x8] sm:$0xff]
  %v29 = vpack.c.bf16 %v28, %v27
  %v30 = vld [vmem:[%s1] sm:$0xf]
  %v31 = vld [vmem:[%s1 + $0x4] sm:$0xf]
  %v32 = vld [vmem:[%s1 + $0x8] sm:$0xf]
  %v33 = vld [vmem:[%s1 + $0xc] sm:$0xf]
  %v34 = vld [vmem:[%s2] sm:$0x1]
  %v36 = vlaneseq
  %v37 = vshrl.u32 %v36, 7
  %v38 = vsub.s32 0, %v37
  %v39 = vrot.slane %v34, %v38
  %v45 = vunpack.c.l.b16 %v30
  %v46 = vunpack.c.l.b16 %v31
  %v47 = vunpack.c.l.b16 %v32
  %v48 = vunpack.c.l.b16 %v33
  %v49 = vpack.c.b16 %v46, %v45
  %v50 = vpack.c.b16 %v48, %v47
  %vm53 = vcmask 261120
  %v55 = vsel %vm53, %v29, 0
  %57 = vmatprep.subr.bf16.mxu0 0
  %58 = vmatpush1.bf16.msra.mxu0 %v49
  %59 = vmatprep.subr.bf16.mxu0 0
  %60 = vmatpush1.bf16.msra.mxu0 %v50
  %61 = vmatprep.subr.bf16.mxu0 0
  %62 = vmatpush1.bf16.msra.mxu0 0
  %63 = vmatprep.subr.bf16.mxu0 0
  %64 = vmatpush1.bf16.msra.mxu0 0
  %65 = vmatprep.subr.bf16.mxu0 0
  %66 = vmatpush1.bf16.msra.mxu0 0
  %67 = vmatprep.subr.bf16.mxu0 0
  %68 = vmatpush1.bf16.msra.mxu0 0
  %69 = vmatprep.subr.bf16.mxu0 0
  %70 = vmatpush1.bf16.msra.mxu0 0
  %71 = vmatprep.subr.bf16.mxu0 0
  %72 = vmatpush1.bf16.msra.mxu0 0
  %73 = vmatprep.subr.bf16.mxu0 0
  %74 = vmatpush1.bf16.msra.mxu0 0
  %75 = vmatprep.subr.bf16.mxu0 0
  %76 = vmatpush1.bf16.msra.mxu0 0
  %77 = vmatprep.subr.bf16.mxu0 0
  %78 = vmatpush1.bf16.msra.mxu0 0
  %79 = vmatprep.subr.bf16.mxu0 0
  %80 = vmatpush1.bf16.msra.mxu0 0
  %81 = vmatprep.subr.bf16.mxu0 0
  %82 = vmatpush1.bf16.msra.mxu0 0
  %83 = vmatprep.subr.bf16.mxu0 0
  %84 = vmatpush1.bf16.msra.mxu0 0
  %85 = vmatprep.subr.bf16.mxu0 0
  %86 = vmatpush1.bf16.msra.mxu0 0
  %87 = vmatprep.subr.bf16.mxu0 0
  %88 = vmatpush1.bf16.msra.mxu0 0
  %89 = vmatprep.mubr.bf16.mxu0 0
  %90 = vmatmul.mubr.bf16.gmra.mrb[0].mxu0 %v55
  %v91 = vpop.f32.mrb[0].mxu0
  %v92 = vadd.f32 %v39, %v91
  %v93 = vpop.f32.mrb[0].mxu0
  %v94 = vpop.f32.mrb[0].mxu0
  %v95 = vadd.f32 %v39, %v94
  %v96 = vpop.f32.mrb[0].mxu0
  %97 = vdwg.mxu0
  %v98 = vmax.f32 %v92, 0.0
  %v99 = vmax.f32 %v95, 0.0
  %v100 = vpack.c.bf16 %v99, %v98
  %v101 = vld [vmem:[%s3] sm:$0xf]
  %v102 = vld [vmem:[%s3 + $0x4] sm:$0xf]
  %v103 = vld [vmem:[%s3 + $0x8] sm:$0xf]
  %v104 = vld [vmem:[%s3 + $0xc] sm:$0xf]
  %v105 = vld [vmem:[%s3 + $0x10] sm:$0xf]
  %v106 = vld [vmem:[%s3 + $0x14] sm:$0xf]
  %v107 = vld [vmem:[%s3 + $0x18] sm:$0xf]
  %v108 = vld [vmem:[%s3 + $0x1c] sm:$0xf]
  %v109 = vld [vmem:[%s4] sm:$0x1]
  %v111 = vlaneseq
  %v112 = vshrl.u32 %v111, 7
  %v113 = vsub.s32 0, %v112
  %v114 = vrot.slane %v109, %v113
  %v124 = vunpack.c.l.b16 %v101
  %v125 = vunpack.c.l.b16 %v102
  %v126 = vunpack.c.l.b16 %v103
  %v127 = vunpack.c.l.b16 %v104
  %v128 = vunpack.c.l.b16 %v105
  %v129 = vunpack.c.l.b16 %v106
  %v130 = vunpack.c.l.b16 %v107
  %v131 = vunpack.c.l.b16 %v108
  %v132 = vpack.c.b16 %v125, %v124
  %v133 = vpack.c.b16 %v127, %v126
  %v134 = vpack.c.b16 %v129, %v128
  %v135 = vpack.c.b16 %v131, %v130
  %vm140 = vcmask 523264
  %v142 = vsel %vm140, %v100, 0
  %144 = vmatprep.subr.bf16.mxu0 0
  %145 = vmatpush1.bf16.msra.mxu0 %v132
  %146 = vmatprep.subr.bf16.mxu0 0
  %147 = vmatpush1.bf16.msra.mxu0 %v133
  %148 = vmatprep.subr.bf16.mxu0 0
  %149 = vmatpush1.bf16.msra.mxu0 %v134
  %150 = vmatprep.subr.bf16.mxu0 0
  %151 = vmatpush1.bf16.msra.mxu0 %v135
  %152 = vmatprep.subr.bf16.mxu0 0
  %153 = vmatpush1.bf16.msra.mxu0 0
  %154 = vmatprep.subr.bf16.mxu0 0
  %155 = vmatpush1.bf16.msra.mxu0 0
  %156 = vmatprep.subr.bf16.mxu0 0
  %157 = vmatpush1.bf16.msra.mxu0 0
  %158 = vmatprep.subr.bf16.mxu0 0
  %159 = vmatpush1.bf16.msra.mxu0 0
  %160 = vmatprep.subr.bf16.mxu0 0
  %161 = vmatpush1.bf16.msra.mxu0 0
  %162 = vmatprep.subr.bf16.mxu0 0
  %163 = vmatpush1.bf16.msra.mxu0 0
  %164 = vmatprep.subr.bf16.mxu0 0
  %165 = vmatpush1.bf16.msra.mxu0 0
  %166 = vmatprep.subr.bf16.mxu0 0
  %167 = vmatpush1.bf16.msra.mxu0 0
  %168 = vmatprep.subr.bf16.mxu0 0
  %169 = vmatpush1.bf16.msra.mxu0 0
  %170 = vmatprep.subr.bf16.mxu0 0
  %171 = vmatpush1.bf16.msra.mxu0 0
  %172 = vmatprep.subr.bf16.mxu0 0
  %173 = vmatpush1.bf16.msra.mxu0 0
  %174 = vmatprep.subr.bf16.mxu0 0
  %175 = vmatpush1.bf16.msra.mxu0 0
  %176 = vmatprep.mubr.bf16.mxu0 0
  %177 = vmatmul.mubr.bf16.gmra.mrb[0].mxu0 %v142
  %v178 = vpop.f32.mrb[0].mxu0
  %v179 = vadd.f32 %v114, %v178
  %v180 = vpop.f32.mrb[0].mxu0
  %v181 = vpop.f32.mrb[0].mxu0
  %v182 = vadd.f32 %v114, %v181
  %v183 = vpop.f32.mrb[0].mxu0
  %184 = vdwg.mxu0
  %v185 = vadd.f32 %v27, %v179
  %v186 = vadd.f32 %v28, %v182
  %v187 = vsel %vm53, %v185, 0.0
  %188 = vadd.xlane.f32.xlu0 %v187
  %v189 = vpop.xlane.xlu0 %188
  %v190 = vsel %vm53, %v186, 0.0
  %191 = vadd.xlane.f32.xlu0 %v190
  %v192 = vpop.xlane.xlu0 %191
  %v193 = vrcp.pop 32.0
  %v194 = vmul.f32 %v189, %v193
  %v195 = vmul.f32 %v192, %v193
  %v196 = vsub.f32 %v185, %v194
  %v197 = vsub.f32 %v186, %v195
  %v198 = vmul.f32 %v196, %v196
  %v199 = vmul.f32 %v197, %v197
  %v200 = vsel %vm53, %v198, 0.0
  %201 = vadd.xlane.f32.xlu0 %v200
  %v202 = vpop.xlane.xlu0 %201
  %v203 = vsel %vm53, %v199, 0.0
  %204 = vadd.xlane.f32.xlu0 %v203
  %v205 = vpop.xlane.xlu0 %204
  %v206 = vmul.f32 %v202, %v193
  %v207 = vmul.f32 %v205, %v193
  %v208 = vadd.f32 %v206, 1e-05
  %v209 = vadd.f32 %v207, 1e-05
  %v210 = vrsqrt.pop %v208
  %v211 = vrsqrt.pop %v209
  %v212 = vmul.f32 %v196, %v210
  %v213 = vmul.f32 %v197, %v211
  %v214 = vld [vmem:[%s5] sm:$0x1]
  %v216 = vlaneseq
  %v217 = vshrl.u32 %v216, 7
  %v218 = vsub.s32 0, %v217
  %v219 = vrot.slane %v214, %v218
  %v221 = vmul.f32 %v212, %v219
  %v222 = vmul.f32 %v213, %v219
  %v223 = vld [vmem:[%s6] sm:$0x1]
  %v225 = vlaneseq
  %v226 = vshrl.u32 %v225, 7
  %v227 = vsub.s32 0, %v226
  %v228 = vrot.slane %v223, %v227
  %v230 = vadd.f32 %v221, %v228
  %v231 = vadd.f32 %v222, %v228
  %232 = vst.msk [vmem:[%s7] sm:$0xff] %vm53, %v230
  %233 = vst.msk [vmem:[%s7 + $0x8] sm:$0xff] %vm53, %v231
  // Predicated region
  $region30: #{transformer_forward.12} parent=0 // pred_check
    _
  $region31: #{transformer_forward.12} parent=0 // pred_check_branch
    %235 = sbr.rel (0) target = $region33
  $region32: #{transformer_forward.12} parent=0 // pred_region
    _
  $region33: #{transformer_forward.12} parent=0 // pred_fallthru
    _
  // Predicated region
  $region34: #{transformer_forward.12} parent=0 // pred_check
    _
  $region35: #{transformer_forward.12} parent=0 // pred_check_branch
    %237 = sbr.rel (0) target = $region37
  $region36: #{transformer_forward.12} parent=0 // pred_region
    _
  $region37: #{transformer_forward.12} parent=0 // pred_fallthru
    _

// kernel: transformer_forward.15
$region0: #{transformer_forward.15}
  #allocation0 [shape = 'u32[]', space=smem, size = 0x4, offset = 0x4, fixed_abs, tag = 'smem constant byte address 0x4 - core index']
  #allocation1 [shape = 'u32[144,128]{1,0:T(1,128)}', space=vmem, size = 0x12000, scoped, tag = 'internal scratch']
  #allocation2 [shape = 'bf16[8,64]{1,0:T(8,128)(2,1)}', space=vmem, size = 0x800, scoped, tag = 'scratch operand']
  #allocation3 [shape = 'f32[8,32]{1,0:T(8,128)}', space=vmem, size = 0x1000, scoped, tag = 'scratch operand']
  %s0 = inlined_call_operand.vmem [shape: f32[2,8,32], index: 0, kind: input, shape index: {}]
  %s1 = inlined_call_operand.vmem [shape: f32[2,1,8], index: 1, kind: input, shape index: {}]
  %s2 = inlined_call_operand.vmem [shape: bf16[32,32], index: 2, kind: input, shape index: {}]
  %s3 = inlined_call_operand.vmem [shape: f32[1,32], index: 3, kind: input, shape index: {}]
  %s4 = inlined_call_operand.vmem [shape: bf16[32,64], index: 4, kind: input, shape index: {}]
  %s5 = inlined_call_operand.vmem [shape: f32[1,64], index: 5, kind: input, shape index: {}]
  %s6 = inlined_call_operand.vmem [shape: bf16[32,32], index: 6, kind: input, shape index: {}]
  %s7 = inlined_call_operand.vmem [shape: f32[1,32], index: 7, kind: input, shape index: {}]
  %s8 = inlined_call_operand.vmem [shape: f32[1,32], index: 8, kind: input, shape index: {}]
  %s9 = inlined_call_operand.vmem [shape: f32[1,32], index: 9, kind: input, shape index: {}]
  %s10 = inlined_call_operand.vmem [shape: f32[2,8,32], index: 10, kind: output, shape index: {}]
  %s11 = sld [smem:[#allocation0]]
  $region77: #{transformer_forward.15} parent=0
    _
  %s13 = ssub.s32 1, %s11
  %s14 = scalar_select 0, %s13, %s11
  loop: start=0, step=1, limit=4
  $region2: #{transformer_forward.15} parent=0 // loop_pre_header
    _
  $region3: #{transformer_forward.15} parent=0 // loop_header
    %s16 = sphi 0, %s20
    %p17 = scmp.ge.s32.totalorder %s16, 4
    %s23 = sphi 0, %s35
    %s24 = sphi 0, %s31
    %s25 = sphi 0, %s23
    %s26 = sphi 0, %s24
    %s27 = sphi 0, %s25
    %s28 = sphi 0, %s26
    %s38 = sphi 0, %s40
    %s41 = sphi 0, %s38
    %s42 = sphi 0, %s41
    %s58 = sphi 0, %s42
    %s64 = sphi 0, %s66
    %s67 = sphi 0, %s64
    %s68 = sphi 0, %s67
    %s84 = sphi 0, %s68
    %s88 = sphi 0, %s88
    %s90 = sphi 0, %s88
    %s91 = sphi 0, %s90
    %s105 = sphi 0, %s91
    %s109 = sphi 0, %s109
    %s111 = sphi 0, %s109
    %s112 = sphi 0, %s111
    %s126 = sphi 0, %s112
    %s130 = sphi 0, %s130
    %s132 = sphi 0, %s130
    %s133 = sphi 0, %s132
    %s147 = sphi 0, %s133
    %s151 = sphi 0, %s151
    %s153 = sphi 0, %s151
    %s154 = sphi 0, %s153
    %s168 = sphi 0, %s154
    %s172 = sphi 0, %s172
    %s174 = sphi 0, %s172
    %s175 = sphi 0, %s174
    %s189 = sphi 0, %s175
    %s193 = sphi 0, %s193
    %s195 = sphi 0, %s193
    %s196 = sphi 0, %s195
    %s210 = sphi 0, %s196
    %s214 = sphi 0, %s214
    %s216 = sphi 0, %s214
    %s217 = sphi 0, %s216
    %s231 = sphi 0, %s217
    %s235 = sphi 0, %s235
    %s237 = sphi 0, %s235
    %s238 = sphi 0, %s237
    %s252 = sphi 0, %s238
    %s260 = sphi 0, %s262
    %s263 = sphi 0, %s260
    %s264 = sphi 0, %s263
    %s280 = sphi 0, %s264
  $region4: #{transformer_forward.15} parent=0 // loop_header_branch
    %19 = sbr.rel (%p17) target = $region8
  $region5: #{transformer_forward.15} parent=0 // loop_body
    %s21 = ssub.s32 %s16, 1
    %s22 = ssub.s32 %s16, 2
    %s29 = sadd.s32 1, %s24
    %p30 = scmp.ge.s32.totalorder %s29, 1
    %s31 = scalar_select %p30, 0, %s29
    %s32 = sadd.s32 1, %s23
    %s33 = scalar_select %p30, %s32, %s23
    %p34 = scmp.ge.s32.totalorder %s33, 2
    %s35 = scalar_select %p34, 0, %s33
    %s36 = ssub.s32 %s23, %s35
    %p37 = scmp.eq.s32.totalorder %s36, 0
    %s39 = sadd.s32 %s38, 1
    %s40 = scalar_select %p37, %s38, %s39
    %p43 = pneg %p37
    %p44 = scmp.eq.s32.totalorder %s16, 1
    %p45 = por %p43, %p44
    %p46 = scmp.ne.s32.totalorder %s38, %s41
    %p47 = scmp.eq.s32.totalorder %s16, 0
    %p48 = por %p46, %p47
    %p49 = scmp.ne.s32.totalorder %s38, %s41
    %p50 = scmp.eq.s32.totalorder %s21, 1
    %p51 = por %p49, %p50
    %p52 = scmp.ne.s32.totalorder %s41, %s42
    %p53 = scmp.eq.s32.totalorder %s21, 0
    %p54 = por %p52, %p53
    %p55 = scmp.ne.s32.totalorder %s41, %s42
    %p56 = scmp.eq.s32.totalorder %s22, 1
    %p57 = por %p55, %p56
    %p59 = scmp.ne.s32.totalorder %s42, %s58
    %p60 = scmp.eq.s32.totalorder %s22, 0
    %p61 = por %p59, %p60
    %s62 = ssub.s32 %s23, %s35
    %p63 = scmp.eq.s32.totalorder %s62, 0
    %s65 = sadd.s32 %s64, 1
    %s66 = scalar_select %p63, %s64, %s65
    %p69 = pneg %p63
    %p70 = scmp.eq.s32.totalorder %s16, 1
    %p71 = por %p69, %p70
    %p72 = scmp.ne.s32.totalorder %s64, %s67
    %p73 = scmp.eq.s32.totalorder %s16, 0
    %p74 = por %p72, %p73
    %p75 = scmp.ne.s32.totalorder %s64, %s67
    %p76 = scmp.eq.s32.totalorder %s21, 1
    %p77 = por %p75, %p76
    %p78 = scmp.ne.s32.totalorder %s67, %s68
    %p79 = scmp.eq.s32.totalorder %s21, 0
    %p80 = por %p78, %p79
    %p81 = scmp.ne.s32.totalorder %s67, %s68
    %p82 = scmp.eq.s32.totalorder %s22, 1
    %p83 = por %p81, %p82
    %p85 = scmp.ne.s32.totalorder %s68, %s84
    %p86 = scmp.eq.s32.totalorder %s22, 0
    %p87 = por %p85, %p86
    %s89 = sadd.s32 %s88, 1
    %p92 = scmp.eq.s32.totalorder %s16, 1
    %p93 = scmp.ne.s32.totalorder %s88, %s90
    %p94 = scmp.eq.s32.totalorder %s16, 0
    %p95 = por %p93, %p94
    %p96 = scmp.ne.s32.totalorder %s88, %s90
    %p97 = scmp.eq.s32.totalorder %s21, 1
    %p98 = por %p96, %p97
    %p99 = scmp.ne.s32.totalorder %s90, %s91
    %p100 = scmp.eq.s32.totalorder %s21, 0
    %p101 = por %p99, %p100
    %p102 = scmp.ne.s32.totalorder %s90, %s91
    %p103 = scmp.eq.s32.totalorder %s22, 1
    %p104 = por %p102, %p103
    %p106 = scmp.ne.s32.totalorder %s91, %s105
    %p107 = scmp.eq.s32.totalorder %s22, 0
    %p108 = por %p106, %p107
    %s110 = sadd.s32 %s109, 1
    %p113 = scmp.eq.s32.totalorder %s16, 1
    %p114 = scmp.ne.s32.totalorder %s109, %s111
    %p115 = scmp.eq.s32.totalorder %s16, 0
    %p116 = por %p114, %p115
    %p117 = scmp.ne.s32.totalorder %s109, %s111
    %p118 = scmp.eq.s32.totalorder %s21, 1
    %p119 = por %p117, %p118
    %p120 = scmp.ne.s32.totalorder %s111, %s112
    %p121 = scmp.eq.s32.totalorder %s21, 0
    %p122 = por %p120, %p121
    %p123 = scmp.ne.s32.totalorder %s111, %s112
    %p124 = scmp.eq.s32.totalorder %s22, 1
    %p125 = por %p123, %p124
    %p127 = scmp.ne.s32.totalorder %s112, %s126
    %p128 = scmp.eq.s32.totalorder %s22, 0
    %p129 = por %p127, %p128
    %s131 = sadd.s32 %s130, 1
    %p134 = scmp.eq.s32.totalorder %s16, 1
    %p135 = scmp.ne.s32.totalorder %s130, %s132
    %p136 = scmp.eq.s32.totalorder %s16, 0
    %p137 = por %p135, %p136
    %p138 = scmp.ne.s32.totalorder %s130, %s132
    %p139 = scmp.eq.s32.totalorder %s21, 1
    %p140 = por %p138, %p139
    %p141 = scmp.ne.s32.totalorder %s132, %s133
    %p142 = scmp.eq.s32.totalorder %s21, 0
    %p143 = por %p141, %p142
    %p144 = scmp.ne.s32.totalorder %s132, %s133
    %p145 = scmp.eq.s32.totalorder %s22, 1
    %p146 = por %p144, %p145
    %p148 = scmp.ne.s32.totalorder %s133, %s147
    %p149 = scmp.eq.s32.totalorder %s22, 0
    %p150 = por %p148, %p149
    %s152 = sadd.s32 %s151, 1
    %p155 = scmp.eq.s32.totalorder %s16, 1
    %p156 = scmp.ne.s32.totalorder %s151, %s153
    %p157 = scmp.eq.s32.totalorder %s16, 0
    %p158 = por %p156, %p157
    %p159 = scmp.ne.s32.totalorder %s151, %s153
    %p160 = scmp.eq.s32.totalorder %s21, 1
    %p161 = por %p159, %p160
    %p162 = scmp.ne.s32.totalorder %s153, %s154
    %p163 = scmp.eq.s32.totalorder %s21, 0
    %p164 = por %p162, %p163
    %p165 = scmp.ne.s32.totalorder %s153, %s154
    %p166 = scmp.eq.s32.totalorder %s22, 1
    %p167 = por %p165, %p166
    %p169 = scmp.ne.s32.totalorder %s154, %s168
    %p170 = scmp.eq.s32.totalorder %s22, 0
    %p171 = por %p169, %p170
    %s173 = sadd.s32 %s172, 1
    %p176 = scmp.eq.s32.totalorder %s16, 1
    %p177 = scmp.ne.s32.totalorder %s172, %s174
    %p178 = scmp.eq.s32.totalorder %s16, 0
    %p179 = por %p177, %p178
    %p180 = scmp.ne.s32.totalorder %s172, %s174
    %p181 = scmp.eq.s32.totalorder %s21, 1
    %p182 = por %p180, %p181
    %p183 = scmp.ne.s32.totalorder %s174, %s175
    %p184 = scmp.eq.s32.totalorder %s21, 0
    %p185 = por %p183, %p184
    %p186 = scmp.ne.s32.totalorder %s174, %s175
    %p187 = scmp.eq.s32.totalorder %s22, 1
    %p188 = por %p186, %p187
    %p190 = scmp.ne.s32.totalorder %s175, %s189
    %p191 = scmp.eq.s32.totalorder %s22, 0
    %p192 = por %p190, %p191
    %s194 = sadd.s32 %s193, 1
    %p197 = scmp.eq.s32.totalorder %s16, 1
    %p198 = scmp.ne.s32.totalorder %s193, %s195
    %p199 = scmp.eq.s32.totalorder %s16, 0
    %p200 = por %p198, %p199
    %p201 = scmp.ne.s32.totalorder %s193, %s195
    %p202 = scmp.eq.s32.totalorder %s21, 1
    %p203 = por %p201, %p202
    %p204 = scmp.ne.s32.totalorder %s195, %s196
    %p205 = scmp.eq.s32.totalorder %s21, 0
    %p206 = por %p204, %p205
    %p207 = scmp.ne.s32.totalorder %s195, %s196
    %p208 = scmp.eq.s32.totalorder %s22, 1
    %p209 = por %p207, %p208
    %p211 = scmp.ne.s32.totalorder %s196, %s210
    %p212 = scmp.eq.s32.totalorder %s22, 0
    %p213 = por %p211, %p212
    %s215 = sadd.s32 %s214, 1
    %p218 = scmp.eq.s32.totalorder %s16, 1
    %p219 = scmp.ne.s32.totalorder %s214, %s216
    %p220 = scmp.eq.s32.totalorder %s16, 0
    %p221 = por %p219, %p220
    %p222 = scmp.ne.s32.totalorder %s214, %s216
    %p223 = scmp.eq.s32.totalorder %s21, 1
    %p224 = por %p222, %p223
    %p225 = scmp.ne.s32.totalorder %s216, %s217
    %p226 = scmp.eq.s32.totalorder %s21, 0
    %p227 = por %p225, %p226
    %p228 = scmp.ne.s32.totalorder %s216, %s217
    %p229 = scmp.eq.s32.totalorder %s22, 1
    %p230 = por %p228, %p229
    %p232 = scmp.ne.s32.totalorder %s217, %s231
    %p233 = scmp.eq.s32.totalorder %s22, 0
    %p234 = por %p232, %p233
    %s236 = sadd.s32 %s235, 1
    %p239 = scmp.eq.s32.totalorder %s16, 1
    %p240 = scmp.ne.s32.totalorder %s235, %s237
    %p241 = scmp.eq.s32.totalorder %s16, 0
    %p242 = por %p240, %p241
    %p243 = scmp.ne.s32.totalorder %s235, %s237
    %p244 = scmp.eq.s32.totalorder %s21, 1
    %p245 = por %p243, %p244
    %p246 = scmp.ne.s32.totalorder %s237, %s238
    %p247 = scmp.eq.s32.totalorder %s21, 0
    %p248 = por %p246, %p247
    %p249 = scmp.ne.s32.totalorder %s237, %s238
    %p250 = scmp.eq.s32.totalorder %s22, 1
    %p251 = por %p249, %p250
    %p253 = scmp.ne.s32.totalorder %s238, %s252
    %p254 = scmp.eq.s32.totalorder %s22, 0
    %p255 = por %p253, %p254
    %s256 = ssub.s32 %s23, %s35
    %s257 = ssub.s32 %s24, %s31
    %s258 = sor.u32 %s256, %s257
    %p259 = scmp.eq.s32.totalorder %s258, 0
    %s261 = sadd.s32 %s260, 1
    %s262 = scalar_select %p259, %s260, %s261
    %p265 = pneg %p259
    %p266 = scmp.eq.s32.totalorder %s16, 1
    %p267 = por %p265, %p266
    %p268 = scmp.ne.s32.totalorder %s260, %s263
    %p269 = scmp.eq.s32.totalorder %s16, 0
    %p270 = por %p268, %p269
    %p271 = scmp.ne.s32.totalorder %s260, %s263
    %p272 = scmp.eq.s32.totalorder %s21, 1
    %p273 = por %p271, %p272
    %p274 = scmp.ne.s32.totalorder %s263, %s264
    %p275 = scmp.eq.s32.totalorder %s21, 0
    %p276 = por %p274, %p275
    %p277 = scmp.ne.s32.totalorder %s263, %s264
    %p278 = scmp.eq.s32.totalorder %s22, 1
    %p279 = por %p277, %p278
    %p281 = scmp.ne.s32.totalorder %s264, %s280
    %p282 = scmp.eq.s32.totalorder %s22, 0
    %p283 = por %p281, %p282
    %p284 = scmp.le.s32.totalorder 1, %s16
    %p285 = scmp.lt.s32.totalorder %s16, 3
    %p286 = pnand %p284, %p285
    %p287 = pneg %p286
    // Predicated region
    $region9: #{transformer_forward.15} parent=5 // pred_check
      _
    $region10: #{transformer_forward.15} parent=5 // pred_check_branch
      %289 = sbr.rel (%p286) target = $region12
    $region11: #{transformer_forward.15} parent=5 // pred_region
      %s290 = ssub.s32 %s16, 1
      // Predicated region
      $region13: #{transformer_forward.15} parent=11 // pred_check
        %p291 = pneg %p101
      $region14: #{transformer_forward.15} parent=11 // pred_check_branch
        %293 = sbr.rel (%p291) target = $region16
      $region15: #{transformer_forward.15} parent=11 // pred_region
        _
      $region16: #{transformer_forward.15} parent=11 // pred_fallthru
        _
      // Predicated region
      $region17: #{transformer_forward.15} parent=11 // pred_check
        %p294 = pneg %p122
      $region18: #{transformer_forward.15} parent=11 // pred_check_branch
        %296 = sbr.rel (%p294) target = $region20
      $region19: #{transformer_forward.15} parent=11 // pred_region
        _
      $region20: #{transformer_forward.15} parent=11 // pred_fallthru
        _
      // Predicated region
      $region21: #{transformer_forward.15} parent=11 // pred_check
        %p297 = pneg %p143
      $region22: #{transformer_forward.15} parent=11 // pred_check_branch
        %299 = sbr.rel (%p297) target = $region24
      $region23: #{transformer_forward.15} parent=11 // pred_region
        _
      $region24: #{transformer_forward.15} parent=11 // pred_fallthru
        _
      // Predicated region
      $region25: #{transformer_forward.15} parent=11 // pred_check
        %p300 = pneg %p164
      $region26: #{transformer_forward.15} parent=11 // pred_check_branch
        %302 = sbr.rel (%p300) target = $region28
      $region27: #{transformer_forward.15} parent=11 // pred_region
        _
      $region28: #{transformer_forward.15} parent=11 // pred_fallthru
        _
      // Predicated region
      $region29: #{transformer_forward.15} parent=11 // pred_check
        %p303 = pneg %p185
      $region30: #{transformer_forward.15} parent=11 // pred_check_branch
        %305 = sbr.rel (%p303) target = $region32
      $region31: #{transformer_forward.15} parent=11 // pred_region
        _
      $region32: #{transformer_forward.15} parent=11 // pred_fallthru
        _
      // Predicated region
      $region33: #{transformer_forward.15} parent=11 // pred_check
        %p306 = pneg %p206
      $region34: #{transformer_forward.15} parent=11 // pred_check_branch
        %308 = sbr.rel (%p306) target = $region36
      $region35: #{transformer_forward.15} parent=11 // pred_region
        _
      $region36: #{transformer_forward.15} parent=11 // pred_fallthru
        _
      // Predicated region
      $region37: #{transformer_forward.15} parent=11 // pred_check
        %p309 = pneg %p227
      $region38: #{transformer_forward.15} parent=11 // pred_check_branch
        %311 = sbr.rel (%p309) target = $region40
      $region39: #{transformer_forward.15} parent=11 // pred_region
        _
      $region40: #{transformer_forward.15} parent=11 // pred_fallthru
        _
      // Predicated region
      $region41: #{transformer_forward.15} parent=11 // pred_check
        %p312 = pneg %p248
      $region42: #{transformer_forward.15} parent=11 // pred_check_branch
        %314 = sbr.rel (%p312) target = $region44
      $region43: #{transformer_forward.15} parent=11 // pred_region
        _
      $region44: #{transformer_forward.15} parent=11 // pred_fallthru
        _
    $region12: #{transformer_forward.15} parent=5 // pred_fallthru
      _
    %p315 = scmp.lt.s32.totalorder %s16, 2
    // Predicated region
    $region45: #{transformer_forward.15} parent=5 // pred_check
      %p316 = pneg %p315
    $region46: #{transformer_forward.15} parent=5 // pred_check_branch
      %318 = sbr.rel (%p316) target = $region48
    $region47: #{transformer_forward.15} parent=5 // pred_region
      // Predicated region
      $region49: #{transformer_forward.15} parent=47 // pred_check
        %p319 = pneg %p48
      $region50: #{transformer_forward.15} parent=47 // pred_check_branch
        %321 = sbr.rel (%p319) target = $region52
      $region51: #{transformer_forward.15} parent=47 // pred_region
        %p322 = scmp.lt.s32.totalorder %s23, 1
        %s323 = scalar_select %p322, %s23, 1
        %s324 = smul.addr %s323, 8
        %s325 = scalar_lea.vmem %s0, %s324
      $region52: #{transformer_forward.15} parent=47 // pred_fallthru
        _
      // Predicated region
      $region53: #{transformer_forward.15} parent=47 // pred_check
        %p326 = pneg %p74
      $region54: #{transformer_forward.15} parent=47 // pred_check_branch
        %328 = sbr.rel (%p326) target = $region56
      $region55: #{transformer_forward.15} parent=47 // pred_region
        %p329 = scmp.lt.s32.totalorder %s23, 1
        %s330 = scalar_select %p329, %s23, 1
        %s331 = scalar_lea.vmem %s1, %s330
      $region56: #{transformer_forward.15} parent=47 // pred_fallthru
        _
    $region48: #{transformer_forward.15} parent=5 // pred_fallthru
      _
    %p332 = scmp.le.s32.totalorder 1, %s16
    %p333 = scmp.lt.s32.totalorder %s16, 3
    %p334 = pnand %p332, %p333
    %p335 = pneg %p334
    // Predicated region
    $region57: #{transformer_forward.15} parent=5 // pred_check
      _
    $region58: #{transformer_forward.15} parent=5 // pred_check_branch
      %337 = sbr.rel (%p334) target = $region60
    $region59: #{transformer_forward.15} parent=5 // pred_region
      %s338 = ssub.s32 %s16, 1
      %p339 = scmp.lt.s32.totalorder %s25, 1
      %s340 = scalar_select %p339, %s25, 1
      %s341 = smul.addr %s340, 8
      %s342 = scalar_lea.vmem %s0, %s341
      %p343 = pneg %p54
      %p344 = pneg %p51
      %p345 = scmp.lt.s32.totalorder %s25, 1
      %s346 = scalar_select %p345, %s25, 1
      %s347 = scalar_lea.vmem %s1, %s346
      %p348 = pneg %p80
      %p349 = pneg %p77
      %p350 = pneg %p101
      %p351 = pneg %p98
      %p352 = pneg %p122
      %p353 = pneg %p119
      %p354 = pneg %p143
      %p355 = pneg %p140
      %p356 = pneg %p164
      %p357 = pneg %p161
      %p358 = pneg %p185
      %p359 = pneg %p182
      %p360 = pneg %p206
      %p361 = pneg %p203
      %p362 = pneg %p227
      %p363 = pneg %p224
      %p364 = pneg %p248
      %p365 = pneg %p245
      %p366 = pneg %p276
      %p367 = pneg %p273
      %p368 = scmp.lt.s32.totalorder %s25, 1
      %s369 = scalar_select %p368, %s25, 1
      %p370 = scmp.lt.s32.totalorder %s26, 0
      %s371 = scalar_select %p370, %s26, 0
      %s372 = sadd.s32 %s371, %s369
      %s373 = smul.addr %s372, 8
      %s374 = scalar_lea.vmem %s10, %s373
      %p375 = scmp.lt.s32.totalorder %s25, 1
      %s376 = scalar_select %p375, %s25, 1
      %s377 = smul.addr %s376, 8
      %s378 = scalar_lea.vmem %s0, %s377
      %p379 = scmp.lt.s32.totalorder %s25, 1
      %s380 = scalar_select %p379, %s25, 1
      %s381 = scalar_lea.vmem %s1, %s380
      %p382 = scmp.lt.s32.totalorder %s25, 1
      %s383 = scalar_select %p382, %s25, 1
      %p384 = scmp.lt.s32.totalorder %s26, 0
      %s385 = scalar_select %p384, %s26, 0
      %s386 = sadd.s32 %s385, %s383
      %s387 = smul.addr %s386, 8
      %s388 = scalar_lea.vmem %s10, %s387
      %p390 = scmp.eq.s32.totalorder %s26, 0
      // Predicated region
      $region61: #{transformer_forward.15} parent=59 // pred_check
        %p391 = pneg %p390
      $region62: #{transformer_forward.15} parent=59 // pred_check_branch
        %393 = sbr.rel (%p391) target = $region64
      $region63: #{transformer_forward.15} parent=59 // pred_region
        %v394 = vld [vmem:[%s378] sm:$0xff]
        %v395 = vpack.c.bf16 %v394, %v394
        %v396 = vld [vmem:[%s4] sm:$0xf]
        %v397 = vld [vmem:[%s4 + $0x4] sm:$0xf]
        %v398 = vld [vmem:[%s4 + $0x8] sm:$0xf]
        %v399 = vld [vmem:[%s4 + $0xc] sm:$0xf]
        %v400 = vld [vmem:[%s5] sm:$0x1]
        %v402 = vlaneseq
        %v403 = vshrl.u32 %v402, 7
        %v404 = vsub.s32 0, %v403
        %v405 = vrot.slane %v400, %v404
        %v411 = vunpack.c.l.b16 %v396
        %v412 = vunpack.c.l.b16 %v397
        %v413 = vunpack.c.l.b16 %v398
        %v414 = vunpack.c.l.b16 %v399
        %v415 = vpack.c.b16 %v412, %v411
        %v416 = vpack.c.b16 %v414, %v413
        %vm419 = vcmask 261120
        %v421 = vsel %vm419, %v395, 0
        %423 = vmatprep.subr.bf16.mxu0 0
        %424 = vmatpush1.bf16.msra.mxu0 %v415
        %425 = vmatprep.subr.bf16.mxu0 0
        %426 = vmatpush1.bf16.msra.mxu0 %v416
        %427 = vmatprep.subr.bf16.mxu0 0
        %428 = vmatpush1.bf16.msra.mxu0 0
        %429 = vmatprep.subr.bf16.mxu0 0
        %430 = vmatpush1.bf16.msra.mxu0 0
        %431 = vmatprep.subr.bf16.mxu0 0
        %432 = vmatpush1.bf16.msra.mxu0 0
        %433 = vmatprep.subr.bf16.mxu0 0
        %434 = vmatpush1.bf16.msra.mxu0 0
        %435 = vmatprep.subr.bf16.mxu0 0
        %436 = vmatpush1.bf16.msra.mxu0 0
        %437 = vmatprep.subr.bf16.mxu0 0
        %438 = vmatpush1.bf16.msra.mxu0 0
        %439 = vmatprep.subr.bf16.mxu0 0
        %440 = vmatpush1.bf16.msra.mxu0 0
        %441 = vmatprep.subr.bf16.mxu0 0
        %442 = vmatpush1.bf16.msra.mxu0 0
        %443 = vmatprep.subr.bf16.mxu0 0
        %444 = vmatpush1.bf16.msra.mxu0 0
        %445 = vmatprep.subr.bf16.mxu0 0
        %446 = vmatpush1.bf16.msra.mxu0 0
        %447 = vmatprep.subr.bf16.mxu0 0
        %448 = vmatpush1.bf16.msra.mxu0 0
        %449 = vmatprep.subr.bf16.mxu0 0
        %450 = vmatpush1.bf16.msra.mxu0 0
        %451 = vmatprep.subr.bf16.mxu0 0
        %452 = vmatpush1.bf16.msra.mxu0 0
        %453 = vmatprep.subr.bf16.mxu0 0
        %454 = vmatpush1.bf16.msra.mxu0 0
        %455 = vmatprep.mubr.bf16.mxu0 0
        %456 = vmatmul.mubr.bf16.gmra.mrb[0].mxu0 %v421
        %v457 = vpop.f32.mrb[0].mxu0
        %v458 = vadd.f32 %v405, %v457
        %v459 = vpop.f32.mrb[0].mxu0
        %v460 = vpop.f32.mrb[0].mxu0
        %v461 = vpop.f32.mrb[0].mxu0
        %462 = vdwg.mxu0
        %v463 = vpack.c.bf16 %v458, %v458
        %vm464 = vcmask 519168
        %465 = vst.msk [vmem:[#allocation2] sm:$0xf] %vm464, %v463
      $region64: #{transformer_forward.15} parent=59 // pred_fallthru
        _
      %s466 = smul.u32 %s26, 8
      %s467 = scalar_lea.vmem %s378, %s466
      %v468 = vld [vmem:[%s467] sm:$0xff]
      %v469 = vpack.c.bf16 %v468, %v468
      %v470 = vld [vmem:[%s2] sm:$0xf]
      %v471 = vld [vmem:[%s2 + $0x4] sm:$0xf]
      %v472 = vld [vmem:[%s2 + $0x8] sm:$0xf]
      %v473 = vld [vmem:[%s2 + $0xc] sm:$0xf]
      %v474 = vld [vmem:[%s3] sm:$0x1]
      %v476 = vlaneseq
      %v477 = vshrl.u32 %v476, 7
      %v478 = vsub.s32 0, %v477
      %v479 = vrot.slane %v474, %v478
      %v485 = vunpack.c.l.b16 %v470
      %v486 = vunpack.c.l.b16 %v471
      %v487 = vunpack.c.l.b16 %v472
      %v488 = vunpack.c.l.b16 %v473
      %v489 = vpack.c.b16 %v486, %v485
      %v490 = vpack.c.b16 %v488, %v487
      %vm493 = vcmask 261120
      %v495 = vsel %vm493, %v469, 0
      %497 = vmatprep.subr.bf16.mxu0 0
      %498 = vmatpush1.bf16.msra.mxu0 %v489
      %499 = vmatprep.subr.bf16.mxu0 0
      %500 = vmatpush1.bf16.msra.mxu0 %v490
      %501 = vmatprep.subr.bf16.mxu0 0
      %502 = vmatpush1.bf16.msra.mxu0 0
      %503 = vmatprep.subr.bf16.mxu0 0
      %504 = vmatpush1.bf16.msra.mxu0 0
      %505 = vmatprep.subr.bf16.mxu0 0
      %506 = vmatpush1.bf16.msra.mxu0 0
      %507 = vmatprep.subr.bf16.mxu0 0
      %508 = vmatpush1.bf16.msra.mxu0 0
      %509 = vmatprep.subr.bf16.mxu0 0
      %510 = vmatpush1.bf16.msra.mxu0 0
      %511 = vmatprep.subr.bf16.mxu0 0
      %512 = vmatpush1.bf16.msra.mxu0 0
      %513 = vmatprep.subr.bf16.mxu0 0
      %514 = vmatpush1.bf16.msra.mxu0 0
      %515 = vmatprep.subr.bf16.mxu0 0
      %516 = vmatpush1.bf16.msra.mxu0 0
      %517 = vmatprep.subr.bf16.mxu0 0
      %518 = vmatpush1.bf16.msra.mxu0 0
      %519 = vmatprep.subr.bf16.mxu0 0
      %520 = vmatpush1.bf16.msra.mxu0 0
      %521 = vmatprep.subr.bf16.mxu0 0
      %522 = vmatpush1.bf16.msra.mxu0 0
      %523 = vmatprep.subr.bf16.mxu0 0
      %524 = vmatpush1.bf16.msra.mxu0 0
      %525 = vmatprep.subr.bf16.mxu0 0
      %526 = vmatpush1.bf16.msra.mxu0 0
      %527 = vmatprep.subr.bf16.mxu0 0
      %528 = vmatpush1.bf16.msra.mxu0 0
      %529 = vmatprep.mubr.bf16.mxu0 0
      %530 = vmatmul.mubr.bf16.gmra.mrb[0].mxu0 %v495
      %v531 = vpop.f32.mrb[0].mxu0
      %v532 = vadd.f32 %v479, %v531
      %v533 = vpop.f32.mrb[0].mxu0
      %v534 = vpop.f32.mrb[0].mxu0
      %v535 = vpop.f32.mrb[0].mxu0
      %536 = vdwg.mxu0
      %v537 = vmul.f32 %v532, 0.35355338
      %v538 = vpack.c.bf16 %v537, %v537
      %v539 = vld [vmem:[%s381] sm:$0x1]
      %v540 = vsub.f32 %v539, 1.0
      %v541 = vmul.f32 %v540, 1e+09
      %v542 = vlaneseq
      %v543 = vshrl.u32 %v542, 7
      %v544 = vstv %s466
      %v545 = vadd.s32 %v543, %v544
      %v546 = vlaneseq
      %v547 = vand.u32 %v546, 127
      %vm548 = vcmp.le.s32.totalorder %v547, %v545
      %v550 = vlaneseq
      %v551 = vshrl.u32 %v550, 7
      %v552 = vsub.s32 0, %v551
      %v553 = vrot.slane %v541, %v552
      %v555 = vsel %vm548, %v553, -1e+09
      %v556 = vld [vmem:[#allocation2] sm:$0xf]
      %vm557 = vcmask 64512
      %v559 = vsel %vm557, %v538, 0
      %v562 = vsel %vm557, %v556, 0
      %564 = vmatprep.subr.bf16.mxu0 0
      %565 = vmatpush1.bf16.xpose.msra.mxu0 %v562
      %566 = vmatprep.subr.bf16.mxu0 0
      %567 = vmatpush1.bf16.xpose.msra.mxu0 0
      %568 = vmatprep.subr.bf16.mxu0 0
      %569 = vmatpush1.bf16.xpose.msra.mxu0 0
      %570 = vmatprep.subr.bf16.mxu0 0
      %571 = vmatpush1.bf16.xpose.msra.mxu0 0
      %572 = vmatprep.subr.bf16.mxu0 0
      %573 = vmatpush1.bf16.xpose.msra.mxu0 0
      %574 = vmatprep.subr.bf16.mxu0 0
      %575 = vmatpush1.bf16.xpose.msra.mxu0 0
      %576 = vmatprep.subr.bf16.mxu0 0
      %577 = vmatpush1.bf16.xpose.msra.mxu0 0
      %578 = vmatprep.subr.bf16.mxu0 0
      %579 = vmatpush1.bf16.xpose.msra.mxu0 0
      %580 = vmatprep.subr.bf16.mxu0 0
      %581 = vmatpush1.bf16.xpose.msra.mxu0 0
      %582 = vmatprep.subr.bf16.mxu0 0
      %583 = vmatpush1.bf16.xpose.msra.mxu0 0
      %584 = vmatprep.subr.bf16.mxu0 0
      %585 = vmatpush1.bf16.xpose.msra.mxu0 0
      %586 = vmatprep.subr.bf16.mxu0 0
      %587 = vmatpush1.bf16.xpose.msra.mxu0 0
      %588 = vmatprep.subr.bf16.mxu0 0
      %589 = vmatpush1.bf16.xpose.msra.mxu0 0
      %590 = vmatprep.subr.bf16.mxu0 0
      %591 = vmatpush1.bf16.xpose.msra.mxu0 0
      %592 = vmatprep.subr.bf16.mxu0 0
      %593 = vmatpush1.bf16.xpose.msra.mxu0 0
      %594 = vmatprep.subr.bf16.mxu0 0
      %595 = vmatpush1.bf16.xpose.msra.mxu0 0
      %596 = vmatprep.mubr.bf16.mxu0 0
      %597 = vmatmul.mubr.bf16.gmra.mrb[0].mxu0 %v559
      %v598 = vpop.f32.mrb[0].mxu0
      %v599 = vadd.f32 %v555, %v598
      %v600 = vpop.f32.mrb[0].mxu0
      %v601 = vpop.f32.mrb[0].mxu0
      %v602 = vpop.f32.mrb[0].mxu0
      %603 = vdwg.mxu0
      %v604 = vsel %vm557, %v599, -inf
      %605 = vmax.xlane.f32.xlu0 %v604
      %v606 = vpop.xlane.xlu0 %605
      %v607 = vsub.f32 %v599, %v606
      %v608 = vmul.f32 %v607, 1.442695
      %v609 = vpow.pop %v608
      %v610 = vsel %vm557, %v609, 0.0
      %611 = vadd.xlane.f32.xlu0 %v610
      %v612 = vpop.xlane.xlu0 %611
      %v613 = vpack.c.bf16 %v609, %v609
      %v615 = vunpack.c.l.b16 %v556
      %v616 = vpack.c.b16 %v615, %v615
      %617 = vrot.lane.b32.xlu0 %v616, 96
      %v618 = vpop.permute.xlu0 %617
      %v620 = vsel %vm557, %v613, 0
      %vm622 = vcmask 1043456
      %v624 = vsel %vm622, %v618, 0
      %626 = vmatprep.subr.bf16.mxu0 0
      %627 = vmatpush1.bf16.msra.mxu0 %v624
      %628 = vmatprep.subr.bf16.mxu0 0
      %629 = vmatpush1.bf16.msra.mxu0 0
      %630 = vmatprep.subr.bf16.mxu0 0
      %631 = vmatpush1.bf16.msra.mxu0 0
      %632 = vmatprep.subr.bf16.mxu0 0
      %633 = vmatpush1.bf16.msra.mxu0 0
      %634 = vmatprep.subr.bf16.mxu0 0
      %635 = vmatpush1.bf16.msra.mxu0 0
      %636 = vmatprep.subr.bf16.mxu0 0
      %637 = vmatpush1.bf16.msra.mxu0 0
      %638 = vmatprep.subr.bf16.mxu0 0
      %639 = vmatpush1.bf16.msra.mxu0 0
      %640 = vmatprep.subr.bf16.mxu0 0
      %641 = vmatpush1.bf16.msra.mxu0 0
      %642 = vmatprep.subr.bf16.mxu0 0
      %643 = vmatpush1.bf16.msra.mxu0 0
      %644 = vmatprep.subr.bf16.mxu0 0
      %645 = vmatpush1.bf16.msra.mxu0 0
      %646 = vmatprep.subr.bf16.mxu0 0
      %647 = vmatpush1.bf16.msra.mxu0 0
      %648 = vmatprep.subr.bf16.mxu0 0
      %649 = vmatpush1.bf16.msra.mxu0 0
      %650 = vmatprep.subr.bf16.mxu0 0
      %651 = vmatpush1.bf16.msra.mxu0 0
      %652 = vmatprep.subr.bf16.mxu0 0
      %653 = vmatpush1.bf16.msra.mxu0 0
      %654 = vmatprep.subr.bf16.mxu0 0
      %655 = vmatpush1.bf16.msra.mxu0 0
      %656 = vmatprep.subr.bf16.mxu0 0
      %657 = vmatpush1.bf16.msra.mxu0 0
      %658 = vmatprep.mubr.bf16.mxu0 0
      %659 = vmatmul.mubr.bf16.gmra.mrb[0].mxu0 %v620
      %v660 = vpop.f32.mrb[0].mxu0
      %v661 = vadd.f32 0.0, %v660
      %v662 = vpop.f32.mrb[0].mxu0
      %v663 = vpop.f32.mrb[0].mxu0
      %v664 = vpop.f32.mrb[0].mxu0
      %665 = vdwg.mxu0
      %v666 = vrcp.pop %v612
      %v667 = vmul.f32 %v661, %v666
      %668 = vst.msk [vmem:[#allocation3] sm:$0xff] %vm557, %v667
      %v669 = vld [vmem:[#allocation2] sm:$0xf]
      %671 = vrot.lane.b32.xlu0 %v538, 120
      %v672 = vpop.permute.xlu0 %671
      %v674 = vunpack.c.l.b16 %v669
      %v675 = vpack.c.b16 %v674, %v674
      %676 = vrot.lane.b32.xlu0 %v675, 120
      %v677 = vpop.permute.xlu0 %676
      %v679 = vsel %vm557, %v672, 0
      %v682 = vsel %vm557, %v677, 0
      %684 = vmatprep.subr.bf16.mxu0 0
      %685 = vmatpush1.bf16.xpose.msra.mxu0 %v682
      %686 = vmatprep.subr.bf16.mxu0 0
      %687 = vmatpush1.bf16.xpose.msra.mxu0 0
      %688 = vmatprep.subr.bf16.mxu0 0
      %689 = vmatpush1.bf16.xpose.msra.mxu0 0
      %690 = vmatprep.subr.bf16.mxu0 0
      %691 = vmatpush1.bf16.xpose.msra.mxu0 0
      %692 = vmatprep.subr.bf16.mxu0 0
      %693 = vmatpush1.bf16.xpose.msra.mxu0 0
      %694 = vmatprep.subr.bf16.mxu0 0
      %695 = vmatpush1.bf16.xpose.msra.mxu0 0
      %696 = vmatprep.subr.bf16.mxu0 0
      %697 = vmatpush1.bf16.xpose.msra.mxu0 0
      %698 = vmatprep.subr.bf16.mxu0 0
      %699 = vmatpush1.bf16.xpose.msra.mxu0 0
      %700 = vmatprep.subr.bf16.mxu0 0
      %701 = vmatpush1.bf16.xpose.msra.mxu0 0
      %702 = vmatprep.subr.bf16.mxu0 0
      %703 = vmatpush1.bf16.xpose.msra.mxu0 0
      %704 = vmatprep.subr.bf16.mxu0 0
      %705 = vmatpush1.bf16.xpose.msra.mxu0 0
      %706 = vmatprep.subr.bf16.mxu0 0
      %707 = vmatpush1.bf16.xpose.msra.mxu0 0
      %708 = vmatprep.subr.bf16.mxu0 0
      %709 = vmatpush1.bf16.xpose.msra.mxu0 0
      %710 = vmatprep.subr.bf16.mxu0 0
      %711 = vmatpush1.bf16.xpose.msra.mxu0 0
      %712 = vmatprep.subr.bf16.mxu0 0
      %713 = vmatpush1.bf16.xpose.msra.mxu0 0
      %714 = vmatprep.subr.bf16.mxu0 0
      %715 = vmatpush1.bf16.xpose.msra.mxu0 0
      %716 = vmatprep.mubr.bf16.mxu0 0
      %717 = vmatmul.mubr.bf16.gmra.mrb[0].mxu0 %v679
      %v718 = vpop.f32.mrb[0].mxu0
      %v719 = vadd.f32 %v555, %v718
      %v720 = vpop.f32.mrb[0].mxu0
      %v721 = vpop.f32.mrb[0].mxu0
      %v722 = vpop.f32.mrb[0].mxu0
      %723 = vdwg.mxu0
      %v724 = vsel %vm557, %v719, -inf
      %725 = vmax.xlane.f32.xlu0 %v724
      %v726 = vpop.xlane.xlu0 %725
      %v727 = vsub.f32 %v719, %v726
      %v728 = vmul.f32 %v727, 1.442695
      %v729 = vpow.pop %v728
      %v730 = vsel %vm557, %v729, 0.0
      %731 = vadd.xlane.f32.xlu0 %v730
      %v732 = vpop.xlane.xlu0 %731
      %v733 = vpack.c.bf16 %v729, %v729
      %734 = vrot.lane.b32.xlu0 %v675, 88
      %v735 = vpop.permute.xlu0 %734
      %v737 = vsel %vm557, %v733, 0
      %v740 = vsel %vm622, %v735, 0
      %742 = vmatprep.subr.bf16.mxu0 0
      %743 = vmatpush1.bf16.msra.mxu0 %v740
      %744 = vmatprep.subr.bf16.mxu0 0
      %745 = vmatpush1.bf16.msra.mxu0 0
      %746 = vmatprep.subr.bf16.mxu0 0
      %747 = vmatpush1.bf16.msra.mxu0 0
      %748 = vmatprep.subr.bf16.mxu0 0
      %749 = vmatpush1.bf16.msra.mxu0 0
      %750 = vmatprep.subr.bf16.mxu0 0
      %751 = vmatpush1.bf16.msra.mxu0 0
      %752 = vmatprep.subr.bf16.mxu0 0
      %753 = vmatpush1.bf16.msra.mxu0 0
      %754 = vmatprep.subr.bf16.mxu0 0
      %755 = vmatpush1.bf16.msra.mxu0 0
      %756 = vmatprep.subr.bf16.mxu0 0
      %757 = vmatpush1.bf16.msra.mxu0 0
      %758 = vmatprep.subr.bf16.mxu0 0
      %759 = vmatpush1.bf16.msra.mxu0 0
      %760 = vmatprep.subr.bf16.mxu0 0
      %761 = vmatpush1.bf16.msra.mxu0 0
      %762 = vmatprep.subr.bf16.mxu0 0
      %763 = vmatpush1.bf16.msra.mxu0 0
      %764 = vmatprep.subr.bf16.mxu0 0
      %765 = vmatpush1.bf16.msra.mxu0 0
      %766 = vmatprep.subr.bf16.mxu0 0
      %767 = vmatpush1.bf16.msra.mxu0 0
      %768 = vmatprep.subr.bf16.mxu0 0
      %769 = vmatpush1.bf16.msra.mxu0 0
      %770 = vmatprep.subr.bf16.mxu0 0
      %771 = vmatpush1.bf16.msra.mxu0 0
      %772 = vmatprep.subr.bf16.mxu0 0
      %773 = vmatpush1.bf16.msra.mxu0 0
      %774 = vmatprep.mubr.bf16.mxu0 0
      %775 = vmatmul.mubr.bf16.gmra.mrb[0].mxu0 %v737
      %v776 = vpop.f32.mrb[0].mxu0
      %v777 = vadd.f32 0.0, %v776
      %v778 = vpop.f32.mrb[0].mxu0
      %v779 = vpop.f32.mrb[0].mxu0
      %v780 = vpop.f32.mrb[0].mxu0
      %781 = vdwg.mxu0
      %v782 = vrcp.pop %v732
      %v783 = vmul.f32 %v777, %v782
      %785 = vrot.lane.b32.xlu0 %v783, 8
      %v786 = vpop.permute.xlu0 %785
      %vm788 = vcmask 130112
      %789 = vst.msk [vmem:[#allocation3] sm:$0xff] %vm788, %v786
      %v790 = vld [vmem:[#allocation2] sm:$0xf]
      %791 = vrot.lane.b32.xlu0 %v538, 112
      %v792 = vpop.permute.xlu0 %791
      %v794 = vunpack.c.l.b16 %v790
      %v795 = vpack.c.b16 %v794, %v794
      %796 = vrot.lane.b32.xlu0 %v795, 112
      %v797 = vpop.permute.xlu0 %796
      %v799 = vsel %vm557, %v792, 0
      %v802 = vsel %vm557, %v797, 0
      %804 = vmatprep.subr.bf16.mxu0 0
      %805 = vmatpush1.bf16.xpose.msra.mxu0 %v802
      %806 = vmatprep.subr.bf16.mxu0 0
      %807 = vmatpush1.bf16.xpose.msra.mxu0 0
      %808 = vmatprep.subr.bf16.mxu0 0
      %809 = vmatpush1.bf16.xpose.msra.mxu0 0
      %810 = vmatprep.subr.bf16.mxu0 0
      %811 = vmatpush1.bf16.xpose.msra.mxu0 0
      %812 = vmatprep.subr.bf16.mxu0 0
      %813 = vmatpush1.bf16.xpose.msra.mxu0 0
      %814 = vmatprep.subr.bf16.mxu0 0
      %815 = vmatpush1.bf16.xpose.msra.mxu0 0
      %816 = vmatprep.subr.bf16.mxu0 0
      %817 = vmatpush1.bf16.xpose.msra.mxu0 0
      %818 = vmatprep.subr.bf16.mxu0 0
      %819 = vmatpush1.bf16.xpose.msra.mxu0 0
      %820 = vmatprep.subr.bf16.mxu0 0
      %821 = vmatpush1.bf16.xpose.msra.mxu0 0
      %822 = vmatprep.subr.bf16.mxu0 0
      %823 = vmatpush1.bf16.xpose.msra.mxu0 0
      %824 = vmatprep.subr.bf16.mxu0 0
      %825 = vmatpush1.bf16.xpose.msra.mxu0 0
      %826 = vmatprep.subr.bf16.mxu0 0
      %827 = vmatpush1.bf16.xpose.msra.mxu0 0
      %828 = vmatprep.subr.bf16.mxu0 0
      %829 = vmatpush1.bf16.xpose.msra.mxu0 0
      %830 = vmatprep.subr.bf16.mxu0 0
      %831 = vmatpush1.bf16.xpose.msra.mxu0 0
      %832 = vmatprep.subr.bf16.mxu0 0
      %833 = vmatpush1.bf16.xpose.msra.mxu0 0
      %834 = vmatprep.subr.bf16.mxu0 0
      %835 = vmatpush1.bf16.xpose.msra.mxu0 0
      %836 = vmatprep.mubr.bf16.mxu0 0
      %837 = vmatmul.mubr.bf16.gmra.mrb[0].mxu0 %v799
      %v838 = vpop.f32.mrb[0].mxu0
      %v839 = vadd.f32 %v555, %v838
      %v840 = vpop.f32.mrb[0].mxu0
      %v841 = vpop.f32.mrb[0].mxu0
      %v842 = vpop.f32.mrb[0].mxu0
      %843 = vdwg.mxu0
      %v844 = vsel %vm557, %v839, -inf
      %845 = vmax.xlane.f32.xlu0 %v844
      %v846 = vpop.xlane.xlu0 %845
      %v847 = vsub.f32 %v839, %v846
      %v848 = vmul.f32 %v847, 1.442695
      %v849 = vpow.pop %v848
      %v850 = vsel %vm557, %v849, 0.0
      %851 = vadd.xlane.f32.xlu0 %v850
      %v852 = vpop.xlane.xlu0 %851
      %v853 = vpack.c.bf16 %v849, %v849
      %854 = vrot.lane.b32.xlu0 %v795, 80
      %v855 = vpop.permute.xlu0 %854
      %v857 = vsel %vm557, %v853, 0
      %v860 = vsel %vm622, %v855, 0
      %862 = vmatprep.subr.bf16.mxu0 0
      %863 = vmatpush1.bf16.msra.mxu0 %v860
      %864 = vmatprep.subr.bf16.mxu0 0
      %865 = vmatpush1.bf16.msra.mxu0 0
      %866 = vmatprep.subr.bf16.mxu0 0
      %867 = vmatpush1.bf16.msra.mxu0 0
      %868 = vmatprep.subr.bf16.mxu0 0
      %869 = vmatpush1.bf16.msra.mxu0 0
      %870 = vmatprep.subr.bf16.mxu0 0
      %871 = vmatpush1.bf16.msra.mxu0 0
      %872 = vmatprep.subr.bf16.mxu0 0
      %873 = vmatpush1.bf16.msra.mxu0 0
      %874 = vmatprep.subr.bf16.mxu0 0
      %875 = vmatpush1.bf16.msra.mxu0 0
      %876 = vmatprep.subr.bf16.mxu0 0
      %877 = vmatpush1.bf16.msra.mxu0 0
      %878 = vmatprep.subr.bf16.mxu0 0
      %879 = vmatpush1.bf16.msra.mxu0 0
      %880 = vmatprep.subr.bf16.mxu0 0
      %881 = vmatpush1.bf16.msra.mxu0 0
      %882 = vmatprep.subr.bf16.mxu0 0
      %883 = vmatpush1.bf16.msra.mxu0 0
      %884 = vmatprep.subr.bf16.mxu0 0
      %885 = vmatpush1.bf16.msra.mxu0 0
      %886 = vmatprep.subr.bf16.mxu0 0
      %887 = vmatpush1.bf16.msra.mxu0 0
      %888 = vmatprep.subr.bf16.mxu0 0
      %889 = vmatpush1.bf16.msra.mxu0 0
      %890 = vmatprep.subr.bf16.mxu0 0
      %891 = vmatpush1.bf16.msra.mxu0 0
      %892 = vmatprep.subr.bf16.mxu0 0
      %893 = vmatpush1.bf16.msra.mxu0 0
      %894 = vmatprep.mubr.bf16.mxu0 0
      %895 = vmatmul.mubr.bf16.gmra.mrb[0].mxu0 %v857
      %v896 = vpop.f32.mrb[0].mxu0
      %v897 = vadd.f32 0.0, %v896
      %v898 = vpop.f32.mrb[0].mxu0
      %v899 = vpop.f32.mrb[0].mxu0
      %v900 = vpop.f32.mrb[0].mxu0
      %901 = vdwg.mxu0
      %v902 = vrcp.pop %v852
      %v903 = vmul.f32 %v897, %v902
      %905 = vrot.lane.b32.xlu0 %v903, 16
      %v906 = vpop.permute.xlu0 %905
      %vm908 = vcmask 195712
      %909 = vst.msk [vmem:[#allocation3] sm:$0xff] %vm908, %v906
      %v910 = vld [vmem:[#allocation2] sm:$0xf]
      %911 = vrot.lane.b32.xlu0 %v538, 104
      %v912 = vpop.permute.xlu0 %911
      %v914 = vunpack.c.l.b16 %v910
      %v915 = vpack.c.b16 %v914, %v914
      %916 = vrot.lane.b32.xlu0 %v915, 104
      %v917 = vpop.permute.xlu0 %916
      %v919 = vsel %vm557, %v912, 0
      %v922 = vsel %vm557, %v917, 0
      %924 = vmatprep.subr.bf16.mxu0 0
      %925 = vmatpush1.bf16.xpose.msra.mxu0 %v922
      %926 = vmatprep.subr.bf16.mxu0 0
      %927 = vmatpush1.bf16.xpose.msra.mxu0 0
      %928 = vmatprep.subr.bf16.mxu0 0
      %929 = vmatpush1.bf16.xpose.msra.mxu0 0
      %930 = vmatprep.subr.bf16.mxu0 0
      %931 = vmatpush1.bf16.xpose.msra.mxu0 0
      %932 = vmatprep.subr.bf16.mxu0 0
      %933 = vmatpush1.bf16.xpose.msra.mxu0 0
      %934 = vmatprep.subr.bf16.mxu0 0
      %935 = vmatpush1.bf16.xpose.msra.mxu0 0
      %936 = vmatprep.subr.bf16.mxu0 0
      %937 = vmatpush1.bf16.xpose.msra.mxu0 0
      %938 = vmatprep.subr.bf16.mxu0 0
      %939 = vmatpush1.bf16.xpose.msra.mxu0 0
      %940 = vmatprep.subr.bf16.mxu0 0
      %941 = vmatpush1.bf16.xpose.msra.mxu0 0
      %942 = vmatprep.subr.bf16.mxu0 0
      %943 = vmatpush1.bf16.xpose.msra.mxu0 0
      %944 = vmatprep.subr.bf16.mxu0 0
      %945 = vmatpush1.bf16.xpose.msra.mxu0 0
      %946 = vmatprep.subr.bf16.mxu0 0
      %947 = vmatpush1.bf16.xpose.msra.mxu0 0
      %948 = vmatprep.subr.bf16.mxu0 0
      %949 = vmatpush1.bf16.xpose.msra.mxu0 0
      %950 = vmatprep.subr.bf16.mxu0 0
      %951 = vmatpush1.bf16.xpose.msra.mxu0 0
      %952 = vmatprep.subr.bf16.mxu0 0
      %953 = vmatpush1.bf16.xpose.msra.mxu0 0
      %954 = vmatprep.subr.bf16.mxu0 0
      %955 = vmatpush1.bf16.xpose.msra.mxu0 0
      %956 = vmatprep.mubr.bf16.mxu0 0
      %957 = vmatmul.mubr.bf16.gmra.mrb[0].mxu0 %v919
      %v958 = vpop.f32.mrb[0].mxu0
      %v959 = vadd.f32 %v555, %v958
      %v960 = vpop.f32.mrb[0].mxu0
      %v961 = vpop.f32.mrb[0].mxu0
      %v962 = vpop.f32.mrb[0].mxu0
      %963 = vdwg.mxu0
      %v964 = vsel %vm557, %v959, -inf
      %965 = vmax.xlane.f32.xlu0 %v964
      %v966 = vpop.xlane.xlu0 %965
      %v967 = vsub.f32 %v959, %v966
      %v968 = vmul.f32 %v967, 1.442695
      %v969 = vpow.pop %v968
      %v970 = vsel %vm557, %v969, 0.0
      %971 = vadd.xlane.f32.xlu0 %v970
      %v972 = vpop.xlane.xlu0 %971
      %v973 = vpack.c.bf16 %v969, %v969
      %974 = vrot.lane.b32.xlu0 %v915, 72
      %v975 = vpop.permute.xlu0 %974
      %v977 = vsel %vm557, %v973, 0
      %v980 = vsel %vm622, %v975, 0
      %982 = vmatprep.subr.bf16.mxu0 0
      %983 = vmatpush1.bf16.msra.mxu0 %v980
      %984 = vmatprep.subr.bf16.mxu0 0
      %985 = vmatpush1.bf16.msra.mxu0 0
      %986 = vmatprep.subr.bf16.mxu0 0
      %987 = vmatpush1.bf16.msra.mxu0 0
      %988 = vmatprep.subr.bf16.mxu0 0
      %989 = vmatpush1.bf16.msra.mxu0 0
      %990 = vmatprep.subr.bf16.mxu0 0
      %991 = vmatpush1.bf16.msra.mxu0 0
      %992 = vmatprep.subr.bf16.mxu0 0
      %993 = vmatpush1.bf16.msra.mxu0 0
      %994 = vmatprep.subr.bf16.mxu0 0
      %995 = vmatpush1.bf16.msra.mxu0 0
      %996 = vmatprep.subr.bf16.mxu0 0
      %997 = vmatpush1.bf16.msra.mxu0 0
      %998 = vmatprep.subr.bf16.mxu0 0
      %999 = vmatpush1.bf16.msra.mxu0 0
      %1000 = vmatprep.subr.bf16.mxu0 0
      %1001 = vmatpush1.bf16.msra.mxu0 0
      %1002 = vmatprep.subr.bf16.mxu0 0
      %1003 = vmatpush1.bf16.msra.mxu0 0
      %1004 = vmatprep.subr.bf16.mxu0 0
      %1005 = vmatpush1.bf16.msra.mxu0 0
      %1006 = vmatprep.subr.bf16.mxu0 0
      %1007 = vmatpush1.bf16.msra.mxu0 0
      %1008 = vmatprep.subr.bf16.mxu0 0
      %1009 = vmatpush1.bf16.msra.mxu0 0
      %1010 = vmatprep.subr.bf16.mxu0 0
      %1011 = vmatpush1.bf16.msra.mxu0 0
      %1012 = vmatprep.subr.bf16.mxu0 0
      %1013 = vmatpush1.bf16.msra.mxu0 0
      %1014 = vmatprep.mubr.bf16.mxu0 0
      %1015 = vmatmul.mubr.bf16.gmra.mrb[0].mxu0 %v977
      %v1016 = vpop.f32.mrb[0].mxu0
      %v1017 = vadd.f32 0.0, %v1016
      %v1018 = vpop.f32.mrb[0].mxu0
      %v1019 = vpop.f32.mrb[0].mxu0
      %v1020 = vpop.f32.mrb[0].mxu0
      %1021 = vdwg.mxu0
      %v1022 = vrcp.pop %v972
      %v1023 = vmul.f32 %v1017, %v1022
      %1025 = vrot.lane.b32.xlu0 %v1023, 24
      %v1026 = vpop.permute.xlu0 %1025
      %vm1028 = vcmask 261312
      %1029 = vst.msk [vmem:[#allocation3] sm:$0xff] %vm1028, %v1026
      %v1030 = vld [vmem:[#allocation3] sm:$0xff]
      %v1031 = vpack.c.bf16 %v1030, %v1030
      %v1032 = vld [vmem:[%s6] sm:$0xf]
      %v1033 = vld [vmem:[%s6 + $0x4] sm:$0xf]
      %v1034 = vld [vmem:[%s6 + $0x8] sm:$0xf]
      %v1035 = vld [vmem:[%s6 + $0xc] sm:$0xf]
      %v1036 = vld [vmem:[%s7] sm:$0x1]
      %v1038 = vlaneseq
      %v1039 = vshrl.u32 %v1038, 7
      %v1040 = vsub.s32 0, %v1039
      %v1041 = vrot.slane %v1036, %v1040
      %v1047 = vunpack.c.l.b16 %v1032
      %v1048 = vunpack.c.l.b16 %v1033
      %v1049 = vunpack.c.l.b16 %v1034
      %v1050 = vunpack.c.l.b16 %v1035
      %v1051 = vpack.c.b16 %v1048, %v1047
      %v1052 = vpack.c.b16 %v1050, %v1049
      %v1056 = vsel %vm493, %v1031, 0
      %1058 = vmatprep.subr.bf16.mxu0 0
      %1059 = vmatpush1.bf16.msra.mxu0 %v1051
      %1060 = vmatprep.subr.bf16.mxu0 0
      %1061 = vmatpush1.bf16.msra.mxu0 %v1052
      %1062 = vmatprep.subr.bf16.mxu0 0
      %1063 = vmatpush1.bf16.msra.mxu0 0
      %1064 = vmatprep.subr.bf16.mxu0 0
      %1065 = vmatpush1.bf16.msra.mxu0 0
      %1066 = vmatprep.subr.bf16.mxu0 0
      %1067 = vmatpush1.bf16.msra.mxu0 0
      %1068 = vmatprep.subr.bf16.mxu0 0
      %1069 = vmatpush1.bf16.msra.mxu0 0
      %1070 = vmatprep.subr.bf16.mxu0 0
      %1071 = vmatpush1.bf16.msra.mxu0 0
      %1072 = vmatprep.subr.bf16.mxu0 0
      %1073 = vmatpush1.bf16.msra.mxu0 0
      %1074 = vmatprep.subr.bf16.mxu0 0
      %1075 = vmatpush1.bf16.msra.mxu0 0
      %1076 = vmatprep.subr.bf16.mxu0 0
      %1077 = vmatpush1.bf16.msra.mxu0 0
      %1078 = vmatprep.subr.bf16.mxu0 0
      %1079 = vmatpush1.bf16.msra.mxu0 0
      %1080 = vmatprep.subr.bf16.mxu0 0
      %1081 = vmatpush1.bf16.msra.mxu0 0
      %1082 = vmatprep.subr.bf16.mxu0 0
      %1083 = vmatpush1.bf16.msra.mxu0 0
      %1084 = vmatprep.subr.bf16.mxu0 0
      %1085 = vmatpush1.bf16.msra.mxu0 0
      %1086 = vmatprep.subr.bf16.mxu0 0
      %1087 = vmatpush1.bf16.msra.mxu0 0
      %1088 = vmatprep.subr.bf16.mxu0 0
      %1089 = vmatpush1.bf16.msra.mxu0 0
      %1090 = vmatprep.mubr.bf16.mxu0 0
      %1091 = vmatmul.mubr.bf16.gmra.mrb[0].mxu0 %v1056
      %v1092 = vpop.f32.mrb[0].mxu0
      %v1093 = vadd.f32 %v1041, %v1092
      %v1094 = vpop.f32.mrb[0].mxu0
      %v1095 = vpop.f32.mrb[0].mxu0
      %v1096 = vpop.f32.mrb[0].mxu0
      %1097 = vdwg.mxu0
      %v1098 = vadd.f32 %v468, %v1093
      %v1099 = vsel %vm493, %v1098, 0.0
      %1100 = vadd.xlane.f32.xlu0 %v1099
      %v1101 = vpop.xlane.xlu0 %1100
      %v1102 = vrcp.pop 32.0
      %v1103 = vmul.f32 %v1101, %v1102
      %v1104 = vsub.f32 %v1098, %v1103
      %v1105 = vmul.f32 %v1104, %v1104
      %v1106 = vsel %vm493, %v1105, 0.0
      %1107 = vadd.xlane.f32.xlu0 %v1106
      %v1108 = vpop.xlane.xlu0 %1107
      %v1109 = vmul.f32 %v1108, %v1102
      %v1110 = vadd.f32 %v1109, 1e-05
      %v1111 = vrsqrt.pop %v1110
      %v1112 = vmul.f32 %v1104, %v1111
      %v1113 = vld [vmem:[%s8] sm:$0x1]
      %v1115 = vlaneseq
      %v1116 = vshrl.u32 %v1115, 7
      %v1117 = vsub.s32 0, %v1116
      %v1118 = vrot.slane %v1113, %v1117
      %v1120 = vmul.f32 %v1112, %v1118
      %v1121 = vld [vmem:[%s9] sm:$0x1]
      %v1123 = vlaneseq
      %v1124 = vshrl.u32 %v1123, 7
      %v1125 = vsub.s32 0, %v1124
      %v1126 = vrot.slane %v1121, %v1125
      %v1128 = vadd.f32 %v1120, %v1126
      %1129 = vst.msk [vmem:[%s388] sm:$0xff] %vm493, %v1128
      %p1130 = scmp.lt.s32.totalorder %s25, 1
      %s1131 = scalar_select %p1130, %s25, 1
      %p1132 = scmp.lt.s32.totalorder %s26, 0
      %s1133 = scalar_select %p1132, %s26, 0
      %s1134 = sadd.s32 %s1133, %s1131
      %s1135 = smul.addr %s1134, 8
      %s1136 = scalar_lea.vmem %s10, %s1135
      // Predicated region
      $region65: #{transformer_forward.15} parent=59 // pred_check
        %p1137 = pneg %p273
      $region66: #{transformer_forward.15} parent=59 // pred_check_branch
        %1139 = sbr.rel (%p1137) target = $region68
      $region67: #{transformer_forward.15} parent=59 // pred_region
        _
      $region68: #{transformer_forward.15} parent=59 // pred_fallthru
        _
    $region60: #{transformer_forward.15} parent=5 // pred_fallthru
      _
    %p1140 = scmp.le.s32.totalorder 2, %s16
    // Predicated region
    $region69: #{transformer_forward.15} parent=5 // pred_check
      %p1141 = pneg %p1140
    $region70: #{transformer_forward.15} parent=5 // pred_check_branch
      %1143 = sbr.rel (%p1141) target = $region72
    $region71: #{transformer_forward.15} parent=5 // pred_region
      %s1144 = ssub.s32 %s16, 2
      // Predicated region
      $region73: #{transformer_forward.15} parent=71 // pred_check
        %p1145 = pneg %p279
      $region74: #{transformer_forward.15} parent=71 // pred_check_branch
        %1147 = sbr.rel (%p1145) target = $region76
      $region75: #{transformer_forward.15} parent=71 // pred_region
        %p1148 = scmp.lt.s32.totalorder %s27, 1
        %s1149 = scalar_select %p1148, %s27, 1
        %p1150 = scmp.lt.s32.totalorder %s28, 0
        %s1151 = scalar_select %p1150, %s28, 0
        %s1152 = sadd.s32 %s1151, %s1149
        %s1153 = smul.addr %s1152, 8
        %s1154 = scalar_lea.vmem %s10, %s1153
      $region76: #{transformer_forward.15} parent=71 // pred_fallthru
        _
    $region72: #{transformer_forward.15} parent=5 // pred_fallthru
      _
  $region6: #{transformer_forward.15} parent=0 // loop_footer
    %s20 = sadd.s32 1, %s16
  $region7: #{transformer_forward.15} parent=0 // loop_footer_branch
    %15 = sbr.rel target = $region3
  $region8: #{transformer_forward.15} parent=0 // loop_exit
    _

// kernel: transformer_forward.11
$region0: #{transformer_forward.11}
  #allocation0 [shape = 'u32[]', space=smem, size = 0x4, offset = 0x4, fixed_abs, tag = 'smem constant byte address 0x4 - core index']
  #allocation1 [shape = 'u32[144,128]{1,0:T(1,128)}', space=vmem, size = 0x12000, scoped, tag = 'internal scratch']
  #allocation2 [shape = 'bf16[8,64]{1,0:T(8,128)(2,1)}', space=vmem, size = 0x800, scoped, tag = 'scratch operand']
  #allocation3 [shape = 'f32[8,32]{1,0:T(8,128)}', space=vmem, size = 0x1000, scoped, tag = 'scratch operand']
  %s0 = inlined_call_operand.vmem [shape: f32[2,8,32], index: 0, kind: input, shape index: {}]
  %s1 = inlined_call_operand.vmem [shape: f32[2,1,8], index: 1, kind: input, shape index: {}]
  %s2 = inlined_call_operand.vmem [shape: bf16[32,32], index: 2, kind: input, shape index: {}]
  %s3 = inlined_call_operand.vmem [shape: f32[1,32], index: 3, kind: input, shape index: {}]
  %s4 = inlined_call_operand.vmem [shape: bf16[32,64], index: 4, kind: input, shape index: {}]
  %s5 = inlined_call_operand.vmem [shape: f32[1,64], index: 5, kind: input, shape index: {}]
  %s6 = inlined_call_operand.vmem [shape: bf16[32,32], index: 6, kind: input, shape index: {}]
  %s7 = inlined_call_operand.vmem [shape: f32[1,32], index: 7, kind: input, shape index: {}]
  %s8 = inlined_call_operand.vmem [shape: f32[1,32], index: 8, kind: input, shape index: {}]
  %s9 = inlined_call_operand.vmem [shape: f32[1,32], index: 9, kind: input, shape index: {}]
  %s10 = inlined_call_operand.vmem [shape: f32[2,8,32], index: 10, kind: output, shape index: {}]
  %s11 = sld [smem:[#allocation0]]
  $region77: #{transformer_forward.11} parent=0
    _
  %s13 = ssub.s32 1, %s11
  %s14 = scalar_select 0, %s13, %s11
  loop: start=0, step=1, limit=4
  $region2: #{transformer_forward.11} parent=0 // loop_pre_header
    _
  $region3: #{transformer_forward.11} parent=0 // loop_header
    %s16 = sphi 0, %s20
    %p17 = scmp.ge.s32.totalorder %s16, 4
    %s23 = sphi 0, %s35
    %s24 = sphi 0, %s31
    %s25 = sphi 0, %s23
    %s26 = sphi 0, %s24
    %s27 = sphi 0, %s25
    %s28 = sphi 0, %s26
    %s38 = sphi 0, %s40
    %s41 = sphi 0, %s38
    %s42 = sphi 0, %s41
    %s58 = sphi 0, %s42
    %s64 = sphi 0, %s66
    %s67 = sphi 0, %s64
    %s68 = sphi 0, %s67
    %s84 = sphi 0, %s68
    %s88 = sphi 0, %s88
    %s90 = sphi 0, %s88
    %s91 = sphi 0, %s90
    %s105 = sphi 0, %s91
    %s109 = sphi 0, %s109
    %s111 = sphi 0, %s109
    %s112 = sphi 0, %s111
    %s126 = sphi 0, %s112
    %s130 = sphi 0, %s130
    %s132 = sphi 0, %s130
    %s133 = sphi 0, %s132
    %s147 = sphi 0, %s133
    %s151 = sphi 0, %s151
    %s153 = sphi 0, %s151
    %s154 = sphi 0, %s153
    %s168 = sphi 0, %s154
    %s172 = sphi 0, %s172
    %s174 = sphi 0, %s172
    %s175 = sphi 0, %s174
    %s189 = sphi 0, %s175
    %s193 = sphi 0, %s193
    %s195 = sphi 0, %s193
    %s196 = sphi 0, %s195
    %s210 = sphi 0, %s196
    %s214 = sphi 0, %s214
    %s216 = sphi 0, %s214
    %s217 = sphi 0, %s216
    %s231 = sphi 0, %s217
    %s235 = sphi 0, %s235
    %s237 = sphi 0, %s235
    %s238 = sphi 0, %s237
    %s252 = sphi 0, %s238
    %s260 = sphi 0, %s262
    %s263 = sphi 0, %s260
    %s264 = sphi 0, %s263
    %s280 = sphi 0, %s264
  $region4: #{transformer_forward.11} parent=0 // loop_header_branch
    %19 = sbr.rel (%p17) target = $region8
  $region5: #{transformer_forward.11} parent=0 // loop_body
    %s21 = ssub.s32 %s16, 1
    %s22 = ssub.s32 %s16, 2
    %s29 = sadd.s32 1, %s24
    %p30 = scmp.ge.s32.totalorder %s29, 1
    %s31 = scalar_select %p30, 0, %s29
    %s32 = sadd.s32 1, %s23
    %s33 = scalar_select %p30, %s32, %s23
    %p34 = scmp.ge.s32.totalorder %s33, 2
    %s35 = scalar_select %p34, 0, %s33
    %s36 = ssub.s32 %s23, %s35
    %p37 = scmp.eq.s32.totalorder %s36, 0
    %s39 = sadd.s32 %s38, 1
    %s40 = scalar_select %p37, %s38, %s39
    %p43 = pneg %p37
    %p44 = scmp.eq.s32.totalorder %s16, 1
    %p45 = por %p43, %p44
    %p46 = scmp.ne.s32.totalorder %s38, %s41
    %p47 = scmp.eq.s32.totalorder %s16, 0
    %p48 = por %p46, %p47
    %p49 = scmp.ne.s32.totalorder %s38, %s41
    %p50 = scmp.eq.s32.totalorder %s21, 1
    %p51 = por %p49, %p50
    %p52 = scmp.ne.s32.totalorder %s41, %s42
    %p53 = scmp.eq.s32.totalorder %s21, 0
    %p54 = por %p52, %p53
    %p55 = scmp.ne.s32.totalorder %s41, %s42
    %p56 = scmp.eq.s32.totalorder %s22, 1
    %p57 = por %p55, %p56
    %p59 = scmp.ne.s32.totalorder %s42, %s58
    %p60 = scmp.eq.s32.totalorder %s22, 0
    %p61 = por %p59, %p60
    %s62 = ssub.s32 %s23, %s35
    %p63 = scmp.eq.s32.totalorder %s62, 0
    %s65 = sadd.s32 %s64, 1
    %s66 = scalar_select %p63, %s64, %s65
    %p69 = pneg %p63
    %p70 = scmp.eq.s32.totalorder %s16, 1
    %p71 = por %p69, %p70
    %p72 = scmp.ne.s32.totalorder %s64, %s67
    %p73 = scmp.eq.s32.totalorder %s16, 0
    %p74 = por %p72, %p73
    %p75 = scmp.ne.s32.totalorder %s64, %s67
    %p76 = scmp.eq.s32.totalorder %s21, 1
    %p77 = por %p75, %p76
    %p78 = scmp.ne.s32.totalorder %s67, %s68
    %p79 = scmp.eq.s32.totalorder %s21, 0
    %p80 = por %p78, %p79
    %p81 = scmp.ne.s32.totalorder %s67, %s68
    %p82 = scmp.eq.s32.totalorder %s22, 1
    %p83 = por %p81, %p82
    %p85 = scmp.ne.s32.totalorder %s68, %s84
    %p86 = scmp.eq.s32.totalorder %s22, 0
    %p87 = por %p85, %p86
    %s89 = sadd.s32 %s88, 1
    %p92 = scmp.eq.s32.totalorder %s16, 1
    %p93 = scmp.ne.s32.totalorder %s88, %s90
    %p94 = scmp.eq.s32.totalorder %s16, 0
    %p95 = por %p93, %p94
    %p96 = scmp.ne.s32.totalorder %s88, %s90
    %p97 = scmp.eq.s32.totalorder %s21, 1
    %p98 = por %p96, %p97
    %p99 = scmp.ne.s32.totalorder %s90, %s91
    %p100 = scmp.eq.s32.totalorder %s21, 0
    %p101 = por %p99, %p100
    %p102 = scmp.ne.s32.totalorder %s90, %s91
    %p103 = scmp.eq.s32.totalorder %s22, 1
    %p104 = por %p102, %p103
    %p106 = scmp.ne.s32.totalorder %s91, %s105
    %p107 = scmp.eq.s32.totalorder %s22, 0
    %p108 = por %p106, %p107
    %s110 = sadd.s32 %s109, 1
    %p113 = scmp.eq.s32.totalorder %s16, 1
    %p114 = scmp.ne.s32.totalorder %s109, %s111
    %p115 = scmp.eq.s32.totalorder %s16, 0
    %p116 = por %p114, %p115
    %p117 = scmp.ne.s32.totalorder %s109, %s111
    %p118 = scmp.eq.s32.totalorder %s21, 1
    %p119 = por %p117, %p118
    %p120 = scmp.ne.s32.totalorder %s111, %s112
    %p121 = scmp.eq.s32.totalorder %s21, 0
    %p122 = por %p120, %p121
    %p123 = scmp.ne.s32.totalorder %s111, %s112
    %p124 = scmp.eq.s32.totalorder %s22, 1
    %p125 = por %p123, %p124
    %p127 = scmp.ne.s32.totalorder %s112, %s126
    %p128 = scmp.eq.s32.totalorder %s22, 0
    %p129 = por %p127, %p128
    %s131 = sadd.s32 %s130, 1
    %p134 = scmp.eq.s32.totalorder %s16, 1
    %p135 = scmp.ne.s32.totalorder %s130, %s132
    %p136 = scmp.eq.s32.totalorder %s16, 0
    %p137 = por %p135, %p136
    %p138 = scmp.ne.s32.totalorder %s130, %s132
    %p139 = scmp.eq.s32.totalorder %s21, 1
    %p140 = por %p138, %p139
    %p141 = scmp.ne.s32.totalorder %s132, %s133
    %p142 = scmp.eq.s32.totalorder %s21, 0
    %p143 = por %p141, %p142
    %p144 = scmp.ne.s32.totalorder %s132, %s133
    %p145 = scmp.eq.s32.totalorder %s22, 1
    %p146 = por %p144, %p145
    %p148 = scmp.ne.s32.totalorder %s133, %s147
    %p149 = scmp.eq.s32.totalorder %s22, 0
    %p150 = por %p148, %p149
    %s152 = sadd.s32 %s151, 1
    %p155 = scmp.eq.s32.totalorder %s16, 1
    %p156 = scmp.ne.s32.totalorder %s151, %s153
    %p157 = scmp.eq.s32.totalorder %s16, 0
    %p158 = por %p156, %p157
    %p159 = scmp.ne.s32.totalorder %s151, %s153
    %p160 = scmp.eq.s32.totalorder %s21, 1
    %p161 = por %p159, %p160
    %p162 = scmp.ne.s32.totalorder %s153, %s154
    %p163 = scmp.eq.s32.totalorder %s21, 0
    %p164 = por %p162, %p163
    %p165 = scmp.ne.s32.totalorder %s153, %s154
    %p166 = scmp.eq.s32.totalorder %s22, 1
    %p167 = por %p165, %p166
    %p169 = scmp.ne.s32.totalorder %s154, %s168
    %p170 = scmp.eq.s32.totalorder %s22, 0
    %p171 = por %p169, %p170
    %s173 = sadd.s32 %s172, 1
    %p176 = scmp.eq.s32.totalorder %s16, 1
    %p177 = scmp.ne.s32.totalorder %s172, %s174
    %p178 = scmp.eq.s32.totalorder %s16, 0
    %p179 = por %p177, %p178
    %p180 = scmp.ne.s32.totalorder %s172, %s174
    %p181 = scmp.eq.s32.totalorder %s21, 1
    %p182 = por %p180, %p181
    %p183 = scmp.ne.s32.totalorder %s174, %s175
    %p184 = scmp.eq.s32.totalorder %s21, 0
    %p185 = por %p183, %p184
    %p186 = scmp.ne.s32.totalorder %s174, %s175
    %p187 = scmp.eq.s32.totalorder %s22, 1
    %p188 = por %p186, %p187
    %p190 = scmp.ne.s32.totalorder %s175, %s189
    %p191 = scmp.eq.s32.totalorder %s22, 0
    %p192 = por %p190, %p191
    %s194 = sadd.s32 %s193, 1
    %p197 = scmp.eq.s32.totalorder %s16, 1
    %p198 = scmp.ne.s32.totalorder %s193, %s195
    %p199 = scmp.eq.s32.totalorder %s16, 0
    %p200 = por %p198, %p199
    %p201 = scmp.ne.s32.totalorder %s193, %s195
    %p202 = scmp.eq.s32.totalorder %s21, 1
    %p203 = por %p201, %p202
    %p204 = scmp.ne.s32.totalorder %s195, %s196
    %p205 = scmp.eq.s32.totalorder %s21, 0
    %p206 = por %p204, %p205
    %p207 = scmp.ne.s32.totalorder %s195, %s196
    %p208 = scmp.eq.s32.totalorder %s22, 1
    %p209 = por %p207, %p208
    %p211 = scmp.ne.s32.totalorder %s196, %s210
    %p212 = scmp.eq.s32.totalorder %s22, 0
    %p213 = por %p211, %p212
    %s215 = sadd.s32 %s214, 1
    %p218 = scmp.eq.s32.totalorder %s16, 1
    %p219 = scmp.ne.s32.totalorder %s214, %s216
    %p220 = scmp.eq.s32.totalorder %s16, 0
    %p221 = por %p219, %p220
    %p222 = scmp.ne.s32.totalorder %s214, %s216
    %p223 = scmp.eq.s32.totalorder %s21, 1
    %p224 = por %p222, %p223
    %p225 = scmp.ne.s32.totalorder %s216, %s217
    %p226 = scmp.eq.s32.totalorder %s21, 0
    %p227 = por %p225, %p226
    %p228 = scmp.ne.s32.totalorder %s216, %s217
    %p229 = scmp.eq.s32.totalorder %s22, 1
    %p230 = por %p228, %p229
    %p232 = scmp.ne.s32.totalorder %s217, %s231
    %p233 = scmp.eq.s32.totalorder %s22, 0
    %p234 = por %p232, %p233
    %s236 = sadd.s32 %s235, 1
    %p239 = scmp.eq.s32.totalorder %s16, 1
    %p240 = scmp.ne.s32.totalorder %s235, %s237
    %p241 = scmp.eq.s32.totalorder %s16, 0
    %p242 = por %p240, %p241
    %p243 = scmp.ne.s32.totalorder %s235, %s237
    %p244 = scmp.eq.s32.totalorder %s21, 1
    %p245 = por %p243, %p244
    %p246 = scmp.ne.s32.totalorder %s237, %s238
    %p247 = scmp.eq.s32.totalorder %s21, 0
    %p248 = por %p246, %p247
    %p249 = scmp.ne.s32.totalorder %s237, %s238
    %p250 = scmp.eq.s32.totalorder %s22, 1
    %p251 = por %p249, %p250
    %p253 = scmp.ne.s32.totalorder %s238, %s252
    %p254 = scmp.eq.s32.totalorder %s22, 0
    %p255 = por %p253, %p254
    %s256 = ssub.s32 %s23, %s35
    %s257 = ssub.s32 %s24, %s31
    %s258 = sor.u32 %s256, %s257
    %p259 = scmp.eq.s32.totalorder %s258, 0
    %s261 = sadd.s32 %s260, 1
    %s262 = scalar_select %p259, %s260, %s261
    %p265 = pneg %p259
    %p266 = scmp.eq.s32.totalorder %s16, 1
    %p267 = por %p265, %p266
    %p268 = scmp.ne.s32.totalorder %s260, %s263
    %p269 = scmp.eq.s32.totalorder %s16, 0
    %p270 = por %p268, %p269
    %p271 = scmp.ne.s32.totalorder %s260, %s263
    %p272 = scmp.eq.s32.totalorder %s21, 1
    %p273 = por %p271, %p272
    %p274 = scmp.ne.s32.totalorder %s263, %s264
    %p275 = scmp.eq.s32.totalorder %s21, 0
    %p276 = por %p274, %p275
    %p277 = scmp.ne.s32.totalorder %s263, %s264
    %p278 = scmp.eq.s32.totalorder %s22, 1
    %p279 = por %p277, %p278
    %p281 = scmp.ne.s32.totalorder %s264, %s280
    %p282 = scmp.eq.s32.totalorder %s22, 0
    %p283 = por %p281, %p282
    %p284 = scmp.le.s32.totalorder 1, %s16
    %p285 = scmp.lt.s32.totalorder %s16, 3
    %p286 = pnand %p284, %p285
    %p287 = pneg %p286
    // Predicated region
    $region9: #{transformer_forward.11} parent=5 // pred_check
      _
    $region10: #{transformer_forward.11} parent=5 // pred_check_branch
      %289 = sbr.rel (%p286) target = $region12
    $region11: #{transformer_forward.11} parent=5 // pred_region
      %s290 = ssub.s32 %s16, 1
      // Predicated region
      $region13: #{transformer_forward.11} parent=11 // pred_check
        %p291 = pneg %p101
      $region14: #{transformer_forward.11} parent=11 // pred_check_branch
        %293 = sbr.rel (%p291) target = $region16
      $region15: #{transformer_forward.11} parent=11 // pred_region
        _
      $region16: #{transformer_forward.11} parent=11 // pred_fallthru
        _
      // Predicated region
      $region17: #{transformer_forward.11} parent=11 // pred_check
        %p294 = pneg %p122
      $region18: #{transformer_forward.11} parent=11 // pred_check_branch
        %296 = sbr.rel (%p294) target = $region20
      $region19: #{transformer_forward.11} parent=11 // pred_region
        _
      $region20: #{transformer_forward.11} parent=11 // pred_fallthru
        _
      // Predicated region
      $region21: #{transformer_forward.11} parent=11 // pred_check
        %p297 = pneg %p143
      $region22: #{transformer_forward.11} parent=11 // pred_check_branch
        %299 = sbr.rel (%p297) target = $region24
      $region23: #{transformer_forward.11} parent=11 // pred_region
        _
      $region24: #{transformer_forward.11} parent=11 // pred_fallthru
        _
      // Predicated region
      $region25: #{transformer_forward.11} parent=11 // pred_check
        %p300 = pneg %p164
      $region26: #{transformer_forward.11} parent=11 // pred_check_branch
        %302 = sbr.rel (%p300) target = $region28
      $region27: #{transformer_forward.11} parent=11 // pred_region
        _
      $region28: #{transformer_forward.11} parent=11 // pred_fallthru
        _
      // Predicated region
      $region29: #{transformer_forward.11} parent=11 // pred_check
        %p303 = pneg %p185
      $region30: #{transformer_forward.11} parent=11 // pred_check_branch
        %305 = sbr.rel (%p303) target = $region32
      $region31: #{transformer_forward.11} parent=11 // pred_region
        _
      $region32: #{transformer_forward.11} parent=11 // pred_fallthru
        _
      // Predicated region
      $region33: #{transformer_forward.11} parent=11 // pred_check
        %p306 = pneg %p206
      $region34: #{transformer_forward.11} parent=11 // pred_check_branch
        %308 = sbr.rel (%p306) target = $region36
      $region35: #{transformer_forward.11} parent=11 // pred_region
        _
      $region36: #{transformer_forward.11} parent=11 // pred_fallthru
        _
      // Predicated region
      $region37: #{transformer_forward.11} parent=11 // pred_check
        %p309 = pneg %p227
      $region38: #{transformer_forward.11} parent=11 // pred_check_branch
        %311 = sbr.rel (%p309) target = $region40
      $region39: #{transformer_forward.11} parent=11 // pred_region
        _
      $region40: #{transformer_forward.11} parent=11 // pred_fallthru
        _
      // Predicated region
      $region41: #{transformer_forward.11} parent=11 // pred_check
        %p312 = pneg %p248
      $region42: #{transformer_forward.11} parent=11 // pred_check_branch
        %314 = sbr.rel (%p312) target = $region44
      $region43: #{transformer_forward.11} parent=11 // pred_region
        _
      $region44: #{transformer_forward.11} parent=11 // pred_fallthru
        _
    $region12: #{transformer_forward.11} parent=5 // pred_fallthru
      _
    %p315 = scmp.lt.s32.totalorder %s16, 2
    // Predicated region
    $region45: #{transformer_forward.11} parent=5 // pred_check
      %p316 = pneg %p315
    $region46: #{transformer_forward.11} parent=5 // pred_check_branch
      %318 = sbr.rel (%p316) target = $region48
    $region47: #{transformer_forward.11} parent=5 // pred_region
      // Predicated region
      $region49: #{transformer_forward.11} parent=47 // pred_check
        %p319 = pneg %p48
      $region50: #{transformer_forward.11} parent=47 // pred_check_branch
        %321 = sbr.rel (%p319) target = $region52
      $region51: #{transformer_forward.11} parent=47 // pred_region
        %p322 = scmp.lt.s32.totalorder %s23, 1
        %s323 = scalar_select %p322, %s23, 1
        %s324 = smul.addr %s323, 8
        %s325 = scalar_lea.vmem %s0, %s324
      $region52: #{transformer_forward.11} parent=47 // pred_fallthru
        _
      // Predicated region
      $region53: #{transformer_forward.11} parent=47 // pred_check
        %p326 = pneg %p74
      $region54: #{transformer_forward.11} parent=47 // pred_check_branch
        %328 = sbr.rel (%p326) target = $region56
      $region55: #{transformer_forward.11} parent=47 // pred_region
        %p329 = scmp.lt.s32.totalorder %s23, 1
        %s330 = scalar_select %p329, %s23, 1
        %s331 = scalar_lea.vmem %s1, %s330
      $region56: #{transformer_forward.11} parent=47 // pred_fallthru
        _
    $region48: #{transformer_forward.11} parent=5 // pred_fallthru
      _
    %p332 = scmp.le.s32.totalorder 1, %s16
    %p333 = scmp.lt.s32.totalorder %s16, 3
    %p334 = pnand %p332, %p333
    %p335 = pneg %p334
    // Predicated region
    $region57: #{transformer_forward.11} parent=5 // pred_check
      _
    $region58: #{transformer_forward.11} parent=5 // pred_check_branch
      %337 = sbr.rel (%p334) target = $region60
    $region59: #{transformer_forward.11} parent=5 // pred_region
      %s338 = ssub.s32 %s16, 1
      %p339 = scmp.lt.s32.totalorder %s25, 1
      %s340 = scalar_select %p339, %s25, 1
      %s341 = smul.addr %s340, 8
      %s342 = scalar_lea.vmem %s0, %s341
      %p343 = pneg %p54
      %p344 = pneg %p51
      %p345 = scmp.lt.s32.totalorder %s25, 1
      %s346 = scalar_select %p345, %s25, 1
      %s347 = scalar_lea.vmem %s1, %s346
      %p348 = pneg %p80
      %p349 = pneg %p77
      %p350 = pneg %p101
      %p351 = pneg %p98
      %p352 = pneg %p122
      %p353 = pneg %p119
      %p354 = pneg %p143
      %p355 = pneg %p140
      %p356 = pneg %p164
      %p357 = pneg %p161
      %p358 = pneg %p185
      %p359 = pneg %p182
      %p360 = pneg %p206
      %p361 = pneg %p203
      %p362 = pneg %p227
      %p363 = pneg %p224
      %p364 = pneg %p248
      %p365 = pneg %p245
      %p366 = pneg %p276
      %p367 = pneg %p273
      %p368 = scmp.lt.s32.totalorder %s25, 1
      %s369 = scalar_select %p368, %s25, 1
      %p370 = scmp.lt.s32.totalorder %s26, 0
      %s371 = scalar_select %p370, %s26, 0
      %s372 = sadd.s32 %s371, %s369
      %s373 = smul.addr %s372, 8
      %s374 = scalar_lea.vmem %s10, %s373
      %p375 = scmp.lt.s32.totalorder %s25, 1
      %s376 = scalar_select %p375, %s25, 1
      %s377 = smul.addr %s376, 8
      %s378 = scalar_lea.vmem %s0, %s377
      %p379 = scmp.lt.s32.totalorder %s25, 1
      %s380 = scalar_select %p379, %s25, 1
      %s381 = scalar_lea.vmem %s1, %s380
      %p382 = scmp.lt.s32.totalorder %s25, 1
      %s383 = scalar_select %p382, %s25, 1
      %p384 = scmp.lt.s32.totalorder %s26, 0
      %s385 = scalar_select %p384, %s26, 0
      %s386 = sadd.s32 %s385, %s383
      %s387 = smul.addr %s386, 8
      %s388 = scalar_lea.vmem %s10, %s387
      %p390 = scmp.eq.s32.totalorder %s26, 0
      // Predicated region
      $region61: #{transformer_forward.11} parent=59 // pred_check
        %p391 = pneg %p390
      $region62: #{transformer_forward.11} parent=59 // pred_check_branch
        %393 = sbr.rel (%p391) target = $region64
      $region63: #{transformer_forward.11} parent=59 // pred_region
        %v394 = vld [vmem:[%s378] sm:$0xff]
        %v395 = vpack.c.bf16 %v394, %v394
        %v396 = vld [vmem:[%s4] sm:$0xf]
        %v397 = vld [vmem:[%s4 + $0x4] sm:$0xf]
        %v398 = vld [vmem:[%s4 + $0x8] sm:$0xf]
        %v399 = vld [vmem:[%s4 + $0xc] sm:$0xf]
        %v400 = vld [vmem:[%s5] sm:$0x1]
        %v402 = vlaneseq
        %v403 = vshrl.u32 %v402, 7
        %v404 = vsub.s32 0, %v403
        %v405 = vrot.slane %v400, %v404
        %v411 = vunpack.c.l.b16 %v396
        %v412 = vunpack.c.l.b16 %v397
        %v413 = vunpack.c.l.b16 %v398
        %v414 = vunpack.c.l.b16 %v399
        %v415 = vpack.c.b16 %v412, %v411
        %v416 = vpack.c.b16 %v414, %v413
        %vm419 = vcmask 261120
        %v421 = vsel %vm419, %v395, 0
        %423 = vmatprep.subr.bf16.mxu0 0
        %424 = vmatpush1.bf16.msra.mxu0 %v415
        %425 = vmatprep.subr.bf16.mxu0 0
        %426 = vmatpush1.bf16.msra.mxu0 %v416
        %427 = vmatprep.subr.bf16.mxu0 0
        %428 = vmatpush1.bf16.msra.mxu0 0
        %429 = vmatprep.subr.bf16.mxu0 0
        %430 = vmatpush1.bf16.msra.mxu0 0
        %431 = vmatprep.subr.bf16.mxu0 0
        %432 = vmatpush1.bf16.msra.mxu0 0
        %433 = vmatprep.subr.bf16.mxu0 0
        %434 = vmatpush1.bf16.msra.mxu0 0
        %435 = vmatprep.subr.bf16.mxu0 0
        %436 = vmatpush1.bf16.msra.mxu0 0
        %437 = vmatprep.subr.bf16.mxu0 0
        %438 = vmatpush1.bf16.msra.mxu0 0
        %439 = vmatprep.subr.bf16.mxu0 0
        %440 = vmatpush1.bf16.msra.mxu0 0
        %441 = vmatprep.subr.bf16.mxu0 0
        %442 = vmatpush1.bf16.msra.mxu0 0
        %443 = vmatprep.subr.bf16.mxu0 0
        %444 = vmatpush1.bf16.msra.mxu0 0
        %445 = vmatprep.subr.bf16.mxu0 0
        %446 = vmatpush1.bf16.msra.mxu0 0
        %447 = vmatprep.subr.bf16.mxu0 0
        %448 = vmatpush1.bf16.msra.mxu0 0
        %449 = vmatprep.subr.bf16.mxu0 0
        %450 = vmatpush1.bf16.msra.mxu0 0
        %451 = vmatprep.subr.bf16.mxu0 0
        %452 = vmatpush1.bf16.msra.mxu0 0
        %453 = vmatprep.subr.bf16.mxu0 0
        %454 = vmatpush1.bf16.msra.mxu0 0
        %455 = vmatprep.mubr.bf16.mxu0 0
        %456 = vmatmul.mubr.bf16.gmra.mrb[0].mxu0 %v421
        %v457 = vpop.f32.mrb[0].mxu0
        %v458 = vadd.f32 %v405, %v457
        %v459 = vpop.f32.mrb[0].mxu0
        %v460 = vpop.f32.mrb[0].mxu0
        %v461 = vpop.f32.mrb[0].mxu0
        %462 = vdwg.mxu0
        %v463 = vpack.c.bf16 %v458, %v458
        %vm464 = vcmask 519168
        %465 = vst.msk [vmem:[#allocation2] sm:$0xf] %vm464, %v463
      $region64: #{transformer_forward.11} parent=59 // pred_fallthru
        _
      %s466 = smul.u32 %s26, 8
      %s467 = scalar_lea.vmem %s378, %s466
      %v468 = vld [vmem:[%s467] sm:$0xff]
      %v469 = vpack.c.bf16 %v468, %v468
      %v470 = vld [vmem:[%s2] sm:$0xf]
      %v471 = vld [vmem:[%s2 + $0x4] sm:$0xf]
      %v472 = vld [vmem:[%s2 + $0x8] sm:$0xf]
      %v473 = vld [vmem:[%s2 + $0xc] sm:$0xf]
      %v474 = vld [vmem:[%s3] sm:$0x1]
      %v476 = vlaneseq
      %v477 = vshrl.u32 %v476, 7
      %v478 = vsub.s32 0, %v477
      %v479 = vrot.slane %v474, %v478
      %v485 = vunpack.c.l.b16 %v470
      %v486 = vunpack.c.l.b16 %v471
      %v487 = vunpack.c.l.b16 %v472
      %v488 = vunpack.c.l.b16 %v473
      %v489 = vpack.c.b16 %v486, %v485
      %v490 = vpack.c.b16 %v488, %v487
      %vm493 = vcmask 261120
      %v495 = vsel %vm493, %v469, 0
      %497 = vmatprep.subr.bf16.mxu0 0
      %498 = vmatpush1.bf16.msra.mxu0 %v489
      %499 = vmatprep.subr.bf16.mxu0 0
      %500 = vmatpush1.bf16.msra.mxu0 %v490
      %501 = vmatprep.subr.bf16.mxu0 0
      %502 = vmatpush1.bf16.msra.mxu0 0
      %503 = vmatprep.subr.bf16.mxu0 0
      %504 = vmatpush1.bf16.msra.mxu0 0
      %505 = vmatprep.subr.bf16.mxu0 0
      %506 = vmatpush1.bf16.msra.mxu0 0
      %507 = vmatprep.subr.bf16.mxu0 0
      %508 = vmatpush1.bf16.msra.mxu0 0
      %509 = vmatprep.subr.bf16.mxu0 0
      %510 = vmatpush1.bf16.msra.mxu0 0
      %511 = vmatprep.subr.bf16.mxu0 0
      %512 = vmatpush1.bf16.msra.mxu0 0
      %513 = vmatprep.subr.bf16.mxu0 0
      %514 = vmatpush1.bf16.msra.mxu0 0
      %515 = vmatprep.subr.bf16.mxu0 0
      %516 = vmatpush1.bf16.msra.mxu0 0
      %517 = vmatprep.subr.bf16.mxu0 0
      %518 = vmatpush1.bf16.msra.mxu0 0
      %519 = vmatprep.subr.bf16.mxu0 0
      %520 = vmatpush1.bf16.msra.mxu0 0
      %521 = vmatprep.subr.bf16.mxu0 0
      %522 = vmatpush1.bf16.msra.mxu0 0
      %523 = vmatprep.subr.bf16.mxu0 0
      %524 = vmatpush1.bf16.msra.mxu0 0
      %525 = vmatprep.subr.bf16.mxu0 0
      %526 = vmatpush1.bf16.msra.mxu0 0
      %527 = vmatprep.subr.bf16.mxu0 0
      %528 = vmatpush1.bf16.msra.mxu0 0
      %529 = vmatprep.mubr.bf16.mxu0 0
      %530 = vmatmul.mubr.bf16.gmra.mrb[0].mxu0 %v495
      %v531 = vpop.f32.mrb[0].mxu0
      %v532 = vadd.f32 %v479, %v531
      %v533 = vpop.f32.mrb[0].mxu0
      %v534 = vpop.f32.mrb[0].mxu0
      %v535 = vpop.f32.mrb[0].mxu0
      %536 = vdwg.mxu0
      %v537 = vmul.f32 %v532, 0.35355338
      %v538 = vpack.c.bf16 %v537, %v537
      %v539 = vld [vmem:[%s381] sm:$0x1]
      %v540 = vsub.f32 %v539, 1.0
      %v541 = vmul.f32 %v540, 1e+09
      %v542 = vld [vmem:[#allocation2] sm:$0xf]
      %v544 = vlaneseq
      %v545 = vshrl.u32 %v544, 7
      %v546 = vsub.s32 0, %v545
      %v547 = vrot.slane %v541, %v546
      %vm549 = vcmask 64512
      %v551 = vsel %vm549, %v538, 0
      %v554 = vsel %vm549, %v542, 0
      %556 = vmatprep.subr.bf16.mxu0 0
      %557 = vmatpush1.bf16.xpose.msra.mxu0 %v554
      %558 = vmatprep.subr.bf16.mxu0 0
      %559 = vmatpush1.bf16.xpose.msra.mxu0 0
      %560 = vmatprep.subr.bf16.mxu0 0
      %561 = vmatpush1.bf16.xpose.msra.mxu0 0
      %562 = vmatprep.subr.bf16.mxu0 0
      %563 = vmatpush1.bf16.xpose.msra.mxu0 0
      %564 = vmatprep.subr.bf16.mxu0 0
      %565 = vmatpush1.bf16.xpose.msra.mxu0 0
      %566 = vmatprep.subr.bf16.mxu0 0
      %567 = vmatpush1.bf16.xpose.msra.mxu0 0
      %568 = vmatprep.subr.bf16.mxu0 0
      %569 = vmatpush1.bf16.xpose.msra.mxu0 0
      %570 = vmatprep.subr.bf16.mxu0 0
      %571 = vmatpush1.bf16.xpose.msra.mxu0 0
      %572 = vmatprep.subr.bf16.mxu0 0
      %573 = vmatpush1.bf16.xpose.msra.mxu0 0
      %574 = vmatprep.subr.bf16.mxu0 0
      %575 = vmatpush1.bf16.xpose.msra.mxu0 0
      %576 = vmatprep.subr.bf16.mxu0 0
      %577 = vmatpush1.bf16.xpose.msra.mxu0 0
      %578 = vmatprep.subr.bf16.mxu0 0
      %579 = vmatpush1.bf16.xpose.msra.mxu0 0
      %580 = vmatprep.subr.bf16.mxu0 0
      %581 = vmatpush1.bf16.xpose.msra.mxu0 0
      %582 = vmatprep.subr.bf16.mxu0 0
      %583 = vmatpush1.bf16.xpose.msra.mxu0 0
      %584 = vmatprep.subr.bf16.mxu0 0
      %585 = vmatpush1.bf16.xpose.msra.mxu0 0
      %586 = vmatprep.subr.bf16.mxu0 0
      %587 = vmatpush1.bf16.xpose.msra.mxu0 0
      %588 = vmatprep.mubr.bf16.mxu0 0
      %589 = vmatmul.mubr.bf16.gmra.mrb[0].mxu0 %v551
      %v590 = vpop.f32.mrb[0].mxu0
      %v591 = vadd.f32 %v547, %v590
      %v592 = vpop.f32.mrb[0].mxu0
      %v593 = vpop.f32.mrb[0].mxu0
      %v594 = vpop.f32.mrb[0].mxu0
      %595 = vdwg.mxu0
      %v596 = vsel %vm549, %v591, -inf
      %597 = vmax.xlane.f32.xlu0 %v596
      %v598 = vpop.xlane.xlu0 %597
      %v599 = vsub.f32 %v591, %v598
      %v600 = vmul.f32 %v599, 1.442695
      %v601 = vpow.pop %v600
      %v602 = vsel %vm549, %v601, 0.0
      %603 = vadd.xlane.f32.xlu0 %v602
      %v604 = vpop.xlane.xlu0 %603
      %v605 = vpack.c.bf16 %v601, %v601
      %v607 = vunpack.c.l.b16 %v542
      %v608 = vpack.c.b16 %v607, %v607
      %609 = vrot.lane.b32.xlu0 %v608, 96
      %v610 = vpop.permute.xlu0 %609
      %v612 = vsel %vm549, %v605, 0
      %vm614 = vcmask 1043456
      %v616 = vsel %vm614, %v610, 0
      %618 = vmatprep.subr.bf16.mxu0 0
      %619 = vmatpush1.bf16.msra.mxu0 %v616
      %620 = vmatprep.subr.bf16.mxu0 0
      %621 = vmatpush1.bf16.msra.mxu0 0
      %622 = vmatprep.subr.bf16.mxu0 0
      %623 = vmatpush1.bf16.msra.mxu0 0
      %624 = vmatprep.subr.bf16.mxu0 0
      %625 = vmatpush1.bf16.msra.mxu0 0
      %626 = vmatprep.subr.bf16.mxu0 0
      %627 = vmatpush1.bf16.msra.mxu0 0
      %628 = vmatprep.subr.bf16.mxu0 0
      %629 = vmatpush1.bf16.msra.mxu0 0
      %630 = vmatprep.subr.bf16.mxu0 0
      %631 = vmatpush1.bf16.msra.mxu0 0
      %632 = vmatprep.subr.bf16.mxu0 0
      %633 = vmatpush1.bf16.msra.mxu0 0
      %634 = vmatprep.subr.bf16.mxu0 0
      %635 = vmatpush1.bf16.msra.mxu0 0
      %636 = vmatprep.subr.bf16.mxu0 0
      %637 = vmatpush1.bf16.msra.mxu0 0
      %638 = vmatprep.subr.bf16.mxu0 0
      %639 = vmatpush1.bf16.msra.mxu0 0
      %640 = vmatprep.subr.bf16.mxu0 0
      %641 = vmatpush1.bf16.msra.mxu0 0
      %642 = vmatprep.subr.bf16.mxu0 0
      %643 = vmatpush1.bf16.msra.mxu0 0
      %644 = vmatprep.subr.bf16.mxu0 0
      %645 = vmatpush1.bf16.msra.mxu0 0
      %646 = vmatprep.subr.bf16.mxu0 0
      %647 = vmatpush1.bf16.msra.mxu0 0
      %648 = vmatprep.subr.bf16.mxu0 0
      %649 = vmatpush1.bf16.msra.mxu0 0
      %650 = vmatprep.mubr.bf16.mxu0 0
      %651 = vmatmul.mubr.bf16.gmra.mrb[0].mxu0 %v612
      %v652 = vpop.f32.mrb[0].mxu0
      %v653 = vadd.f32 0.0, %v652
      %v654 = vpop.f32.mrb[0].mxu0
      %v655 = vpop.f32.mrb[0].mxu0
      %v656 = vpop.f32.mrb[0].mxu0
      %657 = vdwg.mxu0
      %v658 = vrcp.pop %v604
      %v659 = vmul.f32 %v653, %v658
      %660 = vst.msk [vmem:[#allocation3] sm:$0xff] %vm549, %v659
      %v661 = vld [vmem:[#allocation2] sm:$0xf]
      %663 = vrot.lane.b32.xlu0 %v538, 120
      %v664 = vpop.permute.xlu0 %663
      %v666 = vunpack.c.l.b16 %v661
      %v667 = vpack.c.b16 %v666, %v666
      %668 = vrot.lane.b32.xlu0 %v667, 120
      %v669 = vpop.permute.xlu0 %668
      %v671 = vsel %vm549, %v664, 0
      %v674 = vsel %vm549, %v669, 0
      %676 = vmatprep.subr.bf16.mxu0 0
      %677 = vmatpush1.bf16.xpose.msra.mxu0 %v674
      %678 = vmatprep.subr.bf16.mxu0 0
      %679 = vmatpush1.bf16.xpose.msra.mxu0 0
      %680 = vmatprep.subr.bf16.mxu0 0
      %681 = vmatpush1.bf16.xpose.msra.mxu0 0
      %682 = vmatprep.subr.bf16.mxu0 0
      %683 = vmatpush1.bf16.xpose.msra.mxu0 0
      %684 = vmatprep.subr.bf16.mxu0 0
      %685 = vmatpush1.bf16.xpose.msra.mxu0 0
      %686 = vmatprep.subr.bf16.mxu0 0
      %687 = vmatpush1.bf16.xpose.msra.mxu0 0
      %688 = vmatprep.subr.bf16.mxu0 0
      %689 = vmatpush1.bf16.xpose.msra.mxu0 0
      %690 = vmatprep.subr.bf16.mxu0 0
      %691 = vmatpush1.bf16.xpose.msra.mxu0 0
      %692 = vmatprep.subr.bf16.mxu0 0
      %693 = vmatpush1.bf16.xpose.msra.mxu0 0
      %694 = vmatprep.subr.bf16.mxu0 0
      %695 = vmatpush1.bf16.xpose.msra.mxu0 0
      %696 = vmatprep.subr.bf16.mxu0 0
      %697 = vmatpush1.bf16.xpose.msra.mxu0 0
      %698 = vmatprep.subr.bf16.mxu0 0
      %699 = vmatpush1.bf16.xpose.msra.mxu0 0
      %700 = vmatprep.subr.bf16.mxu0 0
      %701 = vmatpush1.bf16.xpose.msra.mxu0 0
      %702 = vmatprep.subr.bf16.mxu0 0
      %703 = vmatpush1.bf16.xpose.msra.mxu0 0
      %704 = vmatprep.subr.bf16.mxu0 0
      %705 = vmatpush1.bf16.xpose.msra.mxu0 0
      %706 = vmatprep.subr.bf16.mxu0 0
      %707 = vmatpush1.bf16.xpose.msra.mxu0 0
      %708 = vmatprep.mubr.bf16.mxu0 0
      %709 = vmatmul.mubr.bf16.gmra.mrb[0].mxu0 %v671
      %v710 = vpop.f32.mrb[0].mxu0
      %v711 = vadd.f32 %v547, %v710
      %v712 = vpop.f32.mrb[0].mxu0
      %v713 = vpop.f32.mrb[0].mxu0
      %v714 = vpop.f32.mrb[0].mxu0
      %715 = vdwg.mxu0
      %v716 = vsel %vm549, %v711, -inf
      %717 = vmax.xlane.f32.xlu0 %v716
      %v718 = vpop.xlane.xlu0 %717
      %v719 = vsub.f32 %v711, %v718
      %v720 = vmul.f32 %v719, 1.442695
      %v721 = vpow.pop %v720
      %v722 = vsel %vm549, %v721, 0.0
      %723 = vadd.xlane.f32.xlu0 %v722
      %v724 = vpop.xlane.xlu0 %723
      %v725 = vpack.c.bf16 %v721, %v721
      %726 = vrot.lane.b32.xlu0 %v667, 88
      %v727 = vpop.permute.xlu0 %726
      %v729 = vsel %vm549, %v725, 0
      %v732 = vsel %vm614, %v727, 0
      %734 = vmatprep.subr.bf16.mxu0 0
      %735 = vmatpush1.bf16.msra.mxu0 %v732
      %736 = vmatprep.subr.bf16.mxu0 0
      %737 = vmatpush1.bf16.msra.mxu0 0
      %738 = vmatprep.subr.bf16.mxu0 0
      %739 = vmatpush1.bf16.msra.mxu0 0
      %740 = vmatprep.subr.bf16.mxu0 0
      %741 = vmatpush1.bf16.msra.mxu0 0
      %742 = vmatprep.subr.bf16.mxu0 0
      %743 = vmatpush1.bf16.msra.mxu0 0
      %744 = vmatprep.subr.bf16.mxu0 0
      %745 = vmatpush1.bf16.msra.mxu0 0
      %746 = vmatprep.subr.bf16.mxu0 0
      %747 = vmatpush1.bf16.msra.mxu0 0
      %748 = vmatprep.subr.bf16.mxu0 0
      %749 = vmatpush1.bf16.msra.mxu0 0
      %750 = vmatprep.subr.bf16.mxu0 0
      %751 = vmatpush1.bf16.msra.mxu0 0
      %752 = vmatprep.subr.bf16.mxu0 0
      %753 = vmatpush1.bf16.msra.mxu0 0
      %754 = vmatprep.subr.bf16.mxu0 0
      %755 = vmatpush1.bf16.msra.mxu0 0
      %756 = vmatprep.subr.bf16.mxu0 0
      %757 = vmatpush1.bf16.msra.mxu0 0
      %758 = vmatprep.subr.bf16.mxu0 0
      %759 = vmatpush1.bf16.msra.mxu0 0
      %760 = vmatprep.subr.bf16.mxu0 0
      %761 = vmatpush1.bf16.msra.mxu0 0
      %762 = vmatprep.subr.bf16.mxu0 0
      %763 = vmatpush1.bf16.msra.mxu0 0
      %764 = vmatprep.subr.bf16.mxu0 0
      %765 = vmatpush1.bf16.msra.mxu0 0
      %766 = vmatprep.mubr.bf16.mxu0 0
      %767 = vmatmul.mubr.bf16.gmra.mrb[0].mxu0 %v729
      %v768 = vpop.f32.mrb[0].mxu0
      %v769 = vadd.f32 0.0, %v768
      %v770 = vpop.f32.mrb[0].mxu0
      %v771 = vpop.f32.mrb[0].mxu0
      %v772 = vpop.f32.mrb[0].mxu0
      %773 = vdwg.mxu0
      %v774 = vrcp.pop %v724
      %v775 = vmul.f32 %v769, %v774
      %777 = vrot.lane.b32.xlu0 %v775, 8
      %v778 = vpop.permute.xlu0 %777
      %vm780 = vcmask 130112
      %781 = vst.msk [vmem:[#allocation3] sm:$0xff] %vm780, %v778
      %v782 = vld [vmem:[#allocation2] sm:$0xf]
      %783 = vrot.lane.b32.xlu0 %v538, 112
      %v784 = vpop.permute.xlu0 %783
      %v786 = vunpack.c.l.b16 %v782
      %v787 = vpack.c.b16 %v786, %v786
      %788 = vrot.lane.b32.xlu0 %v787, 112
      %v789 = vpop.permute.xlu0 %788
      %v791 = vsel %vm549, %v784, 0
      %v794 = vsel %vm549, %v789, 0
      %796 = vmatprep.subr.bf16.mxu0 0
      %797 = vmatpush1.bf16.xpose.msra.mxu0 %v794
      %798 = vmatprep.subr.bf16.mxu0 0
      %799 = vmatpush1.bf16.xpose.msra.mxu0 0
      %800 = vmatprep.subr.bf16.mxu0 0
      %801 = vmatpush1.bf16.xpose.msra.mxu0 0
      %802 = vmatprep.subr.bf16.mxu0 0
      %803 = vmatpush1.bf16.xpose.msra.mxu0 0
      %804 = vmatprep.subr.bf16.mxu0 0
      %805 = vmatpush1.bf16.xpose.msra.mxu0 0
      %806 = vmatprep.subr.bf16.mxu0 0
      %807 = vmatpush1.bf16.xpose.msra.mxu0 0
      %808 = vmatprep.subr.bf16.mxu0 0
      %809 = vmatpush1.bf16.xpose.msra.mxu0 0
      %810 = vmatprep.subr.bf16.mxu0 0
      %811 = vmatpush1.bf16.xpose.msra.mxu0 0
      %812 = vmatprep.subr.bf16.mxu0 0
      %813 = vmatpush1.bf16.xpose.msra.mxu0 0
      %814 = vmatprep.subr.bf16.mxu0 0
      %815 = vmatpush1.bf16.xpose.msra.mxu0 0
      %816 = vmatprep.subr.bf16.mxu0 0
      %817 = vmatpush1.bf16.xpose.msra.mxu0 0
      %818 = vmatprep.subr.bf16.mxu0 0
      %819 = vmatpush1.bf16.xpose.msra.mxu0 0
      %820 = vmatprep.subr.bf16.mxu0 0
      %821 = vmatpush1.bf16.xpose.msra.mxu0 0
      %822 = vmatprep.subr.bf16.mxu0 0
      %823 = vmatpush1.bf16.xpose.msra.mxu0 0
      %824 = vmatprep.subr.bf16.mxu0 0
      %825 = vmatpush1.bf16.xpose.msra.mxu0 0
      %826 = vmatprep.subr.bf16.mxu0 0
      %827 = vmatpush1.bf16.xpose.msra.mxu0 0
      %828 = vmatprep.mubr.bf16.mxu0 0
      %829 = vmatmul.mubr.bf16.gmra.mrb[0].mxu0 %v791
      %v830 = vpop.f32.mrb[0].mxu0
      %v831 = vadd.f32 %v547, %v830
      %v832 = vpop.f32.mrb[0].mxu0
      %v833 = vpop.f32.mrb[0].mxu0
      %v834 = vpop.f32.mrb[0].mxu0
      %835 = vdwg.mxu0
      %v836 = vsel %vm549, %v831, -inf
      %837 = vmax.xlane.f32.xlu0 %v836
      %v838 = vpop.xlane.xlu0 %837
      %v839 = vsub.f32 %v831, %v838
      %v840 = vmul.f32 %v839, 1.442695
      %v841 = vpow.pop %v840
      %v842 = vsel %vm549, %v841, 0.0
      %843 = vadd.xlane.f32.xlu0 %v842
      %v844 = vpop.xlane.xlu0 %843
      %v845 = vpack.c.bf16 %v841, %v841
      %846 = vrot.lane.b32.xlu0 %v787, 80
      %v847 = vpop.permute.xlu0 %846
      %v849 = vsel %vm549, %v845, 0
      %v852 = vsel %vm614, %v847, 0
      %854 = vmatprep.subr.bf16.mxu0 0
      %855 = vmatpush1.bf16.msra.mxu0 %v852
      %856 = vmatprep.subr.bf16.mxu0 0
      %857 = vmatpush1.bf16.msra.mxu0 0
      %858 = vmatprep.subr.bf16.mxu0 0
      %859 = vmatpush1.bf16.msra.mxu0 0
      %860 = vmatprep.subr.bf16.mxu0 0
      %861 = vmatpush1.bf16.msra.mxu0 0
      %862 = vmatprep.subr.bf16.mxu0 0
      %863 = vmatpush1.bf16.msra.mxu0 0
      %864 = vmatprep.subr.bf16.mxu0 0
      %865 = vmatpush1.bf16.msra.mxu0 0
      %866 = vmatprep.subr.bf16.mxu0 0
      %867 = vmatpush1.bf16.msra.mxu0 0
      %868 = vmatprep.subr.bf16.mxu0 0
      %869 = vmatpush1.bf16.msra.mxu0 0
      %870 = vmatprep.subr.bf16.mxu0 0
      %871 = vmatpush1.bf16.msra.mxu0 0
      %872 = vmatprep.subr.bf16.mxu0 0
      %873 = vmatpush1.bf16.msra.mxu0 0
      %874 = vmatprep.subr.bf16.mxu0 0
      %875 = vmatpush1.bf16.msra.mxu0 0
      %876 = vmatprep.subr.bf16.mxu0 0
      %877 = vmatpush1.bf16.msra.mxu0 0
      %878 = vmatprep.subr.bf16.mxu0 0
      %879 = vmatpush1.bf16.msra.mxu0 0
      %880 = vmatprep.subr.bf16.mxu0 0
      %881 = vmatpush1.bf16.msra.mxu0 0
      %882 = vmatprep.subr.bf16.mxu0 0
      %883 = vmatpush1.bf16.msra.mxu0 0
      %884 = vmatprep.subr.bf16.mxu0 0
      %885 = vmatpush1.bf16.msra.mxu0 0
      %886 = vmatprep.mubr.bf16.mxu0 0
      %887 = vmatmul.mubr.bf16.gmra.mrb[0].mxu0 %v849
      %v888 = vpop.f32.mrb[0].mxu0
      %v889 = vadd.f32 0.0, %v888
      %v890 = vpop.f32.mrb[0].mxu0
      %v891 = vpop.f32.mrb[0].mxu0
      %v892 = vpop.f32.mrb[0].mxu0
      %893 = vdwg.mxu0
      %v894 = vrcp.pop %v844
      %v895 = vmul.f32 %v889, %v894
      %897 = vrot.lane.b32.xlu0 %v895, 16
      %v898 = vpop.permute.xlu0 %897
      %vm900 = vcmask 195712
      %901 = vst.msk [vmem:[#allocation3] sm:$0xff] %vm900, %v898
      %v902 = vld [vmem:[#allocation2] sm:$0xf]
      %903 = vrot.lane.b32.xlu0 %v538, 104
      %v904 = vpop.permute.xlu0 %903
      %v906 = vunpack.c.l.b16 %v902
      %v907 = vpack.c.b16 %v906, %v906
      %908 = vrot.lane.b32.xlu0 %v907, 104
      %v909 = vpop.permute.xlu0 %908
      %v911 = vsel %vm549, %v904, 0
      %v914 = vsel %vm549, %v909, 0
      %916 = vmatprep.subr.bf16.mxu0 0
      %917 = vmatpush1.bf16.xpose.msra.mxu0 %v914
      %918 = vmatprep.subr.bf16.mxu0 0
      %919 = vmatpush1.bf16.xpose.msra.mxu0 0
      %920 = vmatprep.subr.bf16.mxu0 0
      %921 = vmatpush1.bf16.xpose.msra.mxu0 0
      %922 = vmatprep.subr.bf16.mxu0 0
      %923 = vmatpush1.bf16.xpose.msra.mxu0 0
      %924 = vmatprep.subr.bf16.mxu0 0
      %925 = vmatpush1.bf16.xpose.msra.mxu0 0
      %926 = vmatprep.subr.bf16.mxu0 0
      %927 = vmatpush1.bf16.xpose.msra.mxu0 0
      %928 = vmatprep.subr.bf16.mxu0 0
      %929 = vmatpush1.bf16.xpose.msra.mxu0 0
      %930 = vmatprep.subr.bf16.mxu0 0
      %931 = vmatpush1.bf16.xpose.msra.mxu0 0
      %932 = vmatprep.subr.bf16.mxu0 0
      %933 = vmatpush1.bf16.xpose.msra.mxu0 0
      %934 = vmatprep.subr.bf16.mxu0 0
      %935 = vmatpush1.bf16.xpose.msra.mxu0 0
      %936 = vmatprep.subr.bf16.mxu0 0
      %937 = vmatpush1.bf16.xpose.msra.mxu0 0
      %938 = vmatprep.subr.bf16.mxu0 0
      %939 = vmatpush1.bf16.xpose.msra.mxu0 0
      %940 = vmatprep.subr.bf16.mxu0 0
      %941 = vmatpush1.bf16.xpose.msra.mxu0 0
      %942 = vmatprep.subr.bf16.mxu0 0
      %943 = vmatpush1.bf16.xpose.msra.mxu0 0
      %944 = vmatprep.subr.bf16.mxu0 0
      %945 = vmatpush1.bf16.xpose.msra.mxu0 0
      %946 = vmatprep.subr.bf16.mxu0 0
      %947 = vmatpush1.bf16.xpose.msra.mxu0 0
      %948 = vmatprep.mubr.bf16.mxu0 0
      %949 = vmatmul.mubr.bf16.gmra.mrb[0].mxu0 %v911
      %v950 = vpop.f32.mrb[0].mxu0
      %v951 = vadd.f32 %v547, %v950
      %v952 = vpop.f32.mrb[0].mxu0
      %v953 = vpop.f32.mrb[0].mxu0
      %v954 = vpop.f32.mrb[0].mxu0
      %955 = vdwg.mxu0
      %v956 = vsel %vm549, %v951, -inf
      %957 = vmax.xlane.f32.xlu0 %v956
      %v958 = vpop.xlane.xlu0 %957
      %v959 = vsub.f32 %v951, %v958
      %v960 = vmul.f32 %v959, 1.442695
      %v961 = vpow.pop %v960
      %v962 = vsel %vm549, %v961, 0.0
      %963 = vadd.xlane.f32.xlu0 %v962
      %v964 = vpop.xlane.xlu0 %963
      %v965 = vpack.c.bf16 %v961, %v961
      %966 = vrot.lane.b32.xlu0 %v907, 72
      %v967 = vpop.permute.xlu0 %966
      %v969 = vsel %vm549, %v965, 0
      %v972 = vsel %vm614, %v967, 0
      %974 = vmatprep.subr.bf16.mxu0 0
      %975 = vmatpush1.bf16.msra.mxu0 %v972
      %976 = vmatprep.subr.bf16.mxu0 0
      %977 = vmatpush1.bf16.msra.mxu0 0
      %978 = vmatprep.subr.bf16.mxu0 0
      %979 = vmatpush1.bf16.msra.mxu0 0
      %980 = vmatprep.subr.bf16.mxu0 0
      %981 = vmatpush1.bf16.msra.mxu0 0
      %982 = vmatprep.subr.bf16.mxu0 0
      %983 = vmatpush1.bf16.msra.mxu0 0
      %984 = vmatprep.subr.bf16.mxu0 0
      %985 = vmatpush1.bf16.msra.mxu0 0
      %986 = vmatprep.subr.bf16.mxu0 0
      %987 = vmatpush1.bf16.msra.mxu0 0
      %988 = vmatprep.subr.bf16.mxu0 0
      %989 = vmatpush1.bf16.msra.mxu0 0
      %990 = vmatprep.subr.bf16.mxu0 0
      %991 = vmatpush1.bf16.msra.mxu0 0
      %992 = vmatprep.subr.bf16.mxu0 0
      %993 = vmatpush1.bf16.msra.mxu0 0
      %994 = vmatprep.subr.bf16.mxu0 0
      %995 = vmatpush1.bf16.msra.mxu0 0
      %996 = vmatprep.subr.bf16.mxu0 0
      %997 = vmatpush1.bf16.msra.mxu0 0
      %998 = vmatprep.subr.bf16.mxu0 0
      %999 = vmatpush1.bf16.msra.mxu0 0
      %1000 = vmatprep.subr.bf16.mxu0 0
      %1001 = vmatpush1.bf16.msra.mxu0 0
      %1002 = vmatprep.subr.bf16.mxu0 0
      %1003 = vmatpush1.bf16.msra.mxu0 0
      %1004 = vmatprep.subr.bf16.mxu0 0
      %1005 = vmatpush1.bf16.msra.mxu0 0
      %1006 = vmatprep.mubr.bf16.mxu0 0
      %1007 = vmatmul.mubr.bf16.gmra.mrb[0].mxu0 %v969
      %v1008 = vpop.f32.mrb[0].mxu0
      %v1009 = vadd.f32 0.0, %v1008
      %v1010 = vpop.f32.mrb[0].mxu0
      %v1011 = vpop.f32.mrb[0].mxu0
      %v1012 = vpop.f32.mrb[0].mxu0
      %1013 = vdwg.mxu0
      %v1014 = vrcp.pop %v964
      %v1015 = vmul.f32 %v1009, %v1014
      %1017 = vrot.lane.b32.xlu0 %v1015, 24
      %v1018 = vpop.permute.xlu0 %1017
      %vm1020 = vcmask 261312
      %1021 = vst.msk [vmem:[#allocation3] sm:$0xff] %vm1020, %v1018
      %v1022 = vld [vmem:[#allocation3] sm:$0xff]
      %v1023 = vpack.c.bf16 %v1022, %v1022
      %v1024 = vld [vmem:[%s6] sm:$0xf]
      %v1025 = vld [vmem:[%s6 + $0x4] sm:$0xf]
      %v1026 = vld [vmem:[%s6 + $0x8] sm:$0xf]
      %v1027 = vld [vmem:[%s6 + $0xc] sm:$0xf]
      %v1028 = vld [vmem:[%s7] sm:$0x1]
      %v1030 = vlaneseq
      %v1031 = vshrl.u32 %v1030, 7
      %v1032 = vsub.s32 0, %v1031
      %v1033 = vrot.slane %v1028, %v1032
      %v1039 = vunpack.c.l.b16 %v1024
      %v1040 = vunpack.c.l.b16 %v1025
      %v1041 = vunpack.c.l.b16 %v1026
      %v1042 = vunpack.c.l.b16 %v1027
      %v1043 = vpack.c.b16 %v1040, %v1039
      %v1044 = vpack.c.b16 %v1042, %v1041
      %v1048 = vsel %vm493, %v1023, 0
      %1050 = vmatprep.subr.bf16.mxu0 0
      %1051 = vmatpush1.bf16.msra.mxu0 %v1043
      %1052 = vmatprep.subr.bf16.mxu0 0
      %1053 = vmatpush1.bf16.msra.mxu0 %v1044
      %1054 = vmatprep.subr.bf16.mxu0 0
      %1055 = vmatpush1.bf16.msra.mxu0 0
      %1056 = vmatprep.subr.bf16.mxu0 0
      %1057 = vmatpush1.bf16.msra.mxu0 0
      %1058 = vmatprep.subr.bf16.mxu0 0
      %1059 = vmatpush1.bf16.msra.mxu0 0
      %1060 = vmatprep.subr.bf16.mxu0 0
      %1061 = vmatpush1.bf16.msra.mxu0 0
      %1062 = vmatprep.subr.bf16.mxu0 0
      %1063 = vmatpush1.bf16.msra.mxu0 0
      %1064 = vmatprep.subr.bf16.mxu0 0
      %1065 = vmatpush1.bf16.msra.mxu0 0
      %1066 = vmatprep.subr.bf16.mxu0 0
      %1067 = vmatpush1.bf16.msra.mxu0 0
      %1068 = vmatprep.subr.bf16.mxu0 0
      %1069 = vmatpush1.bf16.msra.mxu0 0
      %1070 = vmatprep.subr.bf16.mxu0 0
      %1071 = vmatpush1.bf16.msra.mxu0 0
      %1072 = vmatprep.subr.bf16.mxu0 0
      %1073 = vmatpush1.bf16.msra.mxu0 0
      %1074 = vmatprep.subr.bf16.mxu0 0
      %1075 = vmatpush1.bf16.msra.mxu0 0
      %1076 = vmatprep.subr.bf16.mxu0 0
      %1077 = vmatpush1.bf16.msra.mxu0 0
      %1078 = vmatprep.subr.bf16.mxu0 0
      %1079 = vmatpush1.bf16.msra.mxu0 0
      %1080 = vmatprep.subr.bf16.mxu0 0
      %1081 = vmatpush1.bf16.msra.mxu0 0
      %1082 = vmatprep.mubr.bf16.mxu0 0
      %1083 = vmatmul.mubr.bf16.gmra.mrb[0].mxu0 %v1048
      %v1084 = vpop.f32.mrb[0].mxu0
      %v1085 = vadd.f32 %v1033, %v1084
      %v1086 = vpop.f32.mrb[0].mxu0
      %v1087 = vpop.f32.mrb[0].mxu0
      %v1088 = vpop.f32.mrb[0].mxu0
      %1089 = vdwg.mxu0
      %v1090 = vadd.f32 %v468, %v1085
      %v1091 = vsel %vm493, %v1090, 0.0
      %1092 = vadd.xlane.f32.xlu0 %v1091
      %v1093 = vpop.xlane.xlu0 %1092
      %v1094 = vrcp.pop 32.0
      %v1095 = vmul.f32 %v1093, %v1094
      %v1096 = vsub.f32 %v1090, %v1095
      %v1097 = vmul.f32 %v1096, %v1096
      %v1098 = vsel %vm493, %v1097, 0.0
      %1099 = vadd.xlane.f32.xlu0 %v1098
      %v1100 = vpop.xlane.xlu0 %1099
      %v1101 = vmul.f32 %v1100, %v1094
      %v1102 = vadd.f32 %v1101, 1e-05
      %v1103 = vrsqrt.pop %v1102
      %v1104 = vmul.f32 %v1096, %v1103
      %v1105 = vld [vmem:[%s8] sm:$0x1]
      %v1107 = vlaneseq
      %v1108 = vshrl.u32 %v1107, 7
      %v1109 = vsub.s32 0, %v1108
      %v1110 = vrot.slane %v1105, %v1109
      %v1112 = vmul.f32 %v1104, %v1110
      %v1113 = vld [vmem:[%s9] sm:$0x1]
      %v1115 = vlaneseq
      %v1116 = vshrl.u32 %v1115, 7
      %v1117 = vsub.s32 0, %v1116
      %v1118 = vrot.slane %v1113, %v1117
      %v1120 = vadd.f32 %v1112, %v1118
      %1121 = vst.msk [vmem:[%s388] sm:$0xff] %vm493, %v1120
      %p1122 = scmp.lt.s32.totalorder %s25, 1
      %s1123 = scalar_select %p1122, %s25, 1
      %p1124 = scmp.lt.s32.totalorder %s26, 0
      %s1125 = scalar_select %p1124, %s26, 0
      %s1126 = sadd.s32 %s1125, %s1123
      %s1127 = smul.addr %s1126, 8
      %s1128 = scalar_lea.vmem %s10, %s1127
      // Predicated region
      $region65: #{transformer_forward.11} parent=59 // pred_check
        %p1129 = pneg %p273
      $region66: #{transformer_forward.11} parent=59 // pred_check_branch
        %1131 = sbr.rel (%p1129) target = $region68
      $region67: #{transformer_forward.11} parent=59 // pred_region
        _
      $region68: #{transformer_forward.11} parent=59 // pred_fallthru
        _
    $region60: #{transformer_forward.11} parent=5 // pred_fallthru
      _
    %p1132 = scmp.le.s32.totalorder 2, %s16
    // Predicated region
    $region69: #{transformer_forward.11} parent=5 // pred_check
      %p1133 = pneg %p1132
    $region70: #{transformer_forward.11} parent=5 // pred_check_branch
      %1135 = sbr.rel (%p1133) target = $region72
    $region71: #{transformer_forward.11} parent=5 // pred_region
      %s1136 = ssub.s32 %s16, 2
      // Predicated region
      $region73: #{transformer_forward.11} parent=71 // pred_check
        %p1137 = pneg %p279
      $region74: #{transformer_forward.11} parent=71 // pred_check_branch
        %1139 = sbr.rel (%p1137) target = $region76
      $region75: #{transformer_forward.11} parent=71 // pred_region
        %p1140 = scmp.lt.s32.totalorder %s27, 1
        %s1141 = scalar_select %p1140, %s27, 1
        %p1142 = scmp.lt.s32.totalorder %s28, 0
        %s1143 = scalar_select %p1142, %s28, 0
        %s1144 = sadd.s32 %s1143, %s1141
        %s1145 = smul.addr %s1144, 8
        %s1146 = scalar_lea.vmem %s10, %s1145
      $region76: #{transformer_forward.11} parent=71 // pred_fallthru
        _
    $region72: #{transformer_forward.11} parent=5 // pred_fallthru
      _
  $region6: #{transformer_forward.11} parent=0 // loop_footer
    %s20 = sadd.s32 1, %s16
  $region7: #{transformer_forward.11} parent=0 // loop_footer_branch
    %15 = sbr.rel target = $region3
  $region8: #{transformer_forward.11} parent=0 // loop_exit
    _

// kernel: transformer_forward.16
$region0: #{transformer_forward.16}
  #allocation0 [shape = 'u32[]', space=smem, size = 0x4, offset = 0x4, fixed_abs, tag = 'smem constant byte address 0x4 - core index']
  #allocation1 [shape = 'u32[144,128]{1,0:T(1,128)}', space=vmem, size = 0x12000, scoped, tag = 'internal scratch']
  #allocation2 [shape = 'bf16[8,64]{1,0:T(8,128)(2,1)}', space=vmem, size = 0x800, scoped, tag = 'scratch operand']
  #allocation3 [shape = 'f32[8,32]{1,0:T(8,128)}', space=vmem, size = 0x1000, scoped, tag = 'scratch operand']
  %s0 = inlined_call_operand.vmem [shape: f32[2,8,32], index: 0, kind: input, shape index: {}]
  %s1 = inlined_call_operand.vmem [shape: f32[2,8,32], index: 1, kind: input, shape index: {}]
  %s2 = inlined_call_operand.vmem [shape: f32[2,1,8], index: 2, kind: input, shape index: {}]
  %s3 = inlined_call_operand.vmem [shape: bf16[32,32], index: 3, kind: input, shape index: {}]
  %s4 = inlined_call_operand.vmem [shape: f32[1,32], index: 4, kind: input, shape index: {}]
  %s5 = inlined_call_operand.vmem [shape: bf16[32,64], index: 5, kind: input, shape index: {}]
  %s6 = inlined_call_operand.vmem [shape: f32[1,64], index: 6, kind: input, shape index: {}]
  %s7 = inlined_call_operand.vmem [shape: bf16[32,32], index: 7, kind: input, shape index: {}]
  %s8 = inlined_call_operand.vmem [shape: f32[1,32], index: 8, kind: input, shape index: {}]
  %s9 = inlined_call_operand.vmem [shape: f32[1,32], index: 9, kind: input, shape index: {}]
  %s10 = inlined_call_operand.vmem [shape: f32[1,32], index: 10, kind: input, shape index: {}]
  %s11 = inlined_call_operand.vmem [shape: f32[2,8,32], index: 11, kind: output, shape index: {}]
  %s12 = sld [smem:[#allocation0]]
  $region81: #{transformer_forward.16} parent=0
    _
  %s14 = ssub.s32 1, %s12
  %s15 = scalar_select 0, %s14, %s12
  loop: start=0, step=1, limit=4
  $region2: #{transformer_forward.16} parent=0 // loop_pre_header
    _
  $region3: #{transformer_forward.16} parent=0 // loop_header
    %s17 = sphi 0, %s21
    %p18 = scmp.ge.s32.totalorder %s17, 4
    %s24 = sphi 0, %s36
    %s25 = sphi 0, %s32
    %s26 = sphi 0, %s24
    %s27 = sphi 0, %s25
    %s28 = sphi 0, %s26
    %s29 = sphi 0, %s27
    %s41 = sphi 0, %s43
    %s44 = sphi 0, %s41
    %s45 = sphi 0, %s44
    %s61 = sphi 0, %s45
    %s67 = sphi 0, %s69
    %s70 = sphi 0, %s67
    %s71 = sphi 0, %s70
    %s87 = sphi 0, %s71
    %s93 = sphi 0, %s95
    %s96 = sphi 0, %s93
    %s97 = sphi 0, %s96
    %s113 = sphi 0, %s97
    %s117 = sphi 0, %s117
    %s119 = sphi 0, %s117
    %s120 = sphi 0, %s119
    %s134 = sphi 0, %s120
    %s138 = sphi 0, %s138
    %s140 = sphi 0, %s138
    %s141 = sphi 0, %s140
    %s155 = sphi 0, %s141
    %s159 = sphi 0, %s159
    %s161 = sphi 0, %s159
    %s162 = sphi 0, %s161
    %s176 = sphi 0, %s162
    %s180 = sphi 0, %s180
    %s182 = sphi 0, %s180
    %s183 = sphi 0, %s182
    %s197 = sphi 0, %s183
    %s201 = sphi 0, %s201
    %s203 = sphi 0, %s201
    %s204 = sphi 0, %s203
    %s218 = sphi 0, %s204
    %s222 = sphi 0, %s222
    %s224 = sphi 0, %s222
    %s225 = sphi 0, %s224
    %s239 = sphi 0, %s225
    %s243 = sphi 0, %s243
    %s245 = sphi 0, %s243
    %s246 = sphi 0, %s245
    %s260 = sphi 0, %s246
    %s264 = sphi 0, %s264
    %s266 = sphi 0, %s264
    %s267 = sphi 0, %s266
    %s281 = sphi 0, %s267
    %s289 = sphi 0, %s291
    %s292 = sphi 0, %s289
    %s293 = sphi 0, %s292
    %s309 = sphi 0, %s293
  $region4: #{transformer_forward.16} parent=0 // loop_header_branch
    %20 = sbr.rel (%p18) target = $region8
  $region5: #{transformer_forward.16} parent=0 // loop_body
    %s22 = ssub.s32 %s17, 1
    %s23 = ssub.s32 %s17, 2
    %s30 = sadd.s32 1, %s25
    %p31 = scmp.ge.s32.totalorder %s30, 1
    %s32 = scalar_select %p31, 0, %s30
    %s33 = sadd.s32 1, %s24
    %s34 = scalar_select %p31, %s33, %s24
    %p35 = scmp.ge.s32.totalorder %s34, 2
    %s36 = scalar_select %p35, 0, %s34
    %s37 = ssub.s32 %s24, %s36
    %s38 = ssub.s32 %s25, %s32
    %s39 = sor.u32 %s37, %s38
    %p40 = scmp.eq.s32.totalorder %s39, 0
    %s42 = sadd.s32 %s41, 1
    %s43 = scalar_select %p40, %s41, %s42
    %p46 = pneg %p40
    %p47 = scmp.eq.s32.totalorder %s17, 1
    %p48 = por %p46, %p47
    %p49 = scmp.ne.s32.totalorder %s41, %s44
    %p50 = scmp.eq.s32.totalorder %s17, 0
    %p51 = por %p49, %p50
    %p52 = scmp.ne.s32.totalorder %s41, %s44
    %p53 = scmp.eq.s32.totalorder %s22, 1
    %p54 = por %p52, %p53
    %p55 = scmp.ne.s32.totalorder %s44, %s45
    %p56 = scmp.eq.s32.totalorder %s22, 0
    %p57 = por %p55, %p56
    %p58 = scmp.ne.s32.totalorder %s44, %s45
    %p59 = scmp.eq.s32.totalorder %s23, 1
    %p60 = por %p58, %p59
    %p62 = scmp.ne.s32.totalorder %s45, %s61
    %p63 = scmp.eq.s32.totalorder %s23, 0
    %p64 = por %p62, %p63
    %s65 = ssub.s32 %s24, %s36
    %p66 = scmp.eq.s32.totalorder %s65, 0
    %s68 = sadd.s32 %s67, 1
    %s69 = scalar_select %p66, %s67, %s68
    %p72 = pneg %p66
    %p73 = scmp.eq.s32.totalorder %s17, 1
    %p74 = por %p72, %p73
    %p75 = scmp.ne.s32.totalorder %s67, %s70
    %p76 = scmp.eq.s32.totalorder %s17, 0
    %p77 = por %p75, %p76
    %p78 = scmp.ne.s32.totalorder %s67, %s70
    %p79 = scmp.eq.s32.totalorder %s22, 1
    %p80 = por %p78, %p79
    %p81 = scmp.ne.s32.totalorder %s70, %s71
    %p82 = scmp.eq.s32.totalorder %s22, 0
    %p83 = por %p81, %p82
    %p84 = scmp.ne.s32.totalorder %s70, %s71
    %p85 = scmp.eq.s32.totalorder %s23, 1
    %p86 = por %p84, %p85
    %p88 = scmp.ne.s32.totalorder %s71, %s87
    %p89 = scmp.eq.s32.totalorder %s23, 0
    %p90 = por %p88, %p89
    %s91 = ssub.s32 %s24, %s36
    %p92 = scmp.eq.s32.totalorder %s91, 0
    %s94 = sadd.s32 %s93, 1
    %s95 = scalar_select %p92, %s93, %s94
    %p98 = pneg %p92
    %p99 = scmp.eq.s32.totalorder %s17, 1
    %p100 = por %p98, %p99
    %p101 = scmp.ne.s32.totalorder %s93, %s96
    %p102 = scmp.eq.s32.totalorder %s17, 0
    %p103 = por %p101, %p102
    %p104 = scmp.ne.s32.totalorder %s93, %s96
    %p105 = scmp.eq.s32.totalorder %s22, 1
    %p106 = por %p104, %p105
    %p107 = scmp.ne.s32.totalorder %s96, %s97
    %p108 = scmp.eq.s32.totalorder %s22, 0
    %p109 = por %p107, %p108
    %p110 = scmp.ne.s32.totalorder %s96, %s97
    %p111 = scmp.eq.s32.totalorder %s23, 1
    %p112 = por %p110, %p111
    %p114 = scmp.ne.s32.totalorder %s97, %s113
    %p115 = scmp.eq.s32.totalorder %s23, 0
    %p116 = por %p114, %p115
    %s118 = sadd.s32 %s117, 1
    %p121 = scmp.eq.s32.totalorder %s17, 1
    %p122 = scmp.ne.s32.totalorder %s117, %s119
    %p123 = scmp.eq.s32.totalorder %s17, 0
    %p124 = por %p122, %p123
    %p125 = scmp.ne.s32.totalorder %s117, %s119
    %p126 = scmp.eq.s32.totalorder %s22, 1
    %p127 = por %p125, %p126
    %p128 = scmp.ne.s32.totalorder %s119, %s120
    %p129 = scmp.eq.s32.totalorder %s22, 0
    %p130 = por %p128, %p129
    %p131 = scmp.ne.s32.totalorder %s119, %s120
    %p132 = scmp.eq.s32.totalorder %s23, 1
    %p133 = por %p131, %p132
    %p135 = scmp.ne.s32.totalorder %s120, %s134
    %p136 = scmp.eq.s32.totalorder %s23, 0
    %p137 = por %p135, %p136
    %s139 = sadd.s32 %s138, 1
    %p142 = scmp.eq.s32.totalorder %s17, 1
    %p143 = scmp.ne.s32.totalorder %s138, %s140
    %p144 = scmp.eq.s32.totalorder %s17, 0
    %p145 = por %p143, %p144
    %p146 = scmp.ne.s32.totalorder %s138, %s140
    %p147 = scmp.eq.s32.totalorder %s22, 1
    %p148 = por %p146, %p147
    %p149 = scmp.ne.s32.totalorder %s140, %s141
    %p150 = scmp.eq.s32.totalorder %s22, 0
    %p151 = por %p149, %p150
    %p152 = scmp.ne.s32.totalorder %s140, %s141
    %p153 = scmp.eq.s32.totalorder %s23, 1
    %p154 = por %p152, %p153
    %p156 = scmp.ne.s32.totalorder %s141, %s155
    %p157 = scmp.eq.s32.totalorder %s23, 0
    %p158 = por %p156, %p157
    %s160 = sadd.s32 %s159, 1
    %p163 = scmp.eq.s32.totalorder %s17, 1
    %p164 = scmp.ne.s32.totalorder %s159, %s161
    %p165 = scmp.eq.s32.totalorder %s17, 0
    %p166 = por %p164, %p165
    %p167 = scmp.ne.s32.totalorder %s159, %s161
    %p168 = scmp.eq.s32.totalorder %s22, 1
    %p169 = por %p167, %p168
    %p170 = scmp.ne.s32.totalorder %s161, %s162
    %p171 = scmp.eq.s32.totalorder %s22, 0
    %p172 = por %p170, %p171
    %p173 = scmp.ne.s32.totalorder %s161, %s162
    %p174 = scmp.eq.s32.totalorder %s23, 1
    %p175 = por %p173, %p174
    %p177 = scmp.ne.s32.totalorder %s162, %s176
    %p178 = scmp.eq.s32.totalorder %s23, 0
    %p179 = por %p177, %p178
    %s181 = sadd.s32 %s180, 1
    %p184 = scmp.eq.s32.totalorder %s17, 1
    %p185 = scmp.ne.s32.totalorder %s180, %s182
    %p186 = scmp.eq.s32.totalorder %s17, 0
    %p187 = por %p185, %p186
    %p188 = scmp.ne.s32.totalorder %s180, %s182
    %p189 = scmp.eq.s32.totalorder %s22, 1
    %p190 = por %p188, %p189
    %p191 = scmp.ne.s32.totalorder %s182, %s183
    %p192 = scmp.eq.s32.totalorder %s22, 0
    %p193 = por %p191, %p192
    %p194 = scmp.ne.s32.totalorder %s182, %s183
    %p195 = scmp.eq.s32.totalorder %s23, 1
    %p196 = por %p194, %p195
    %p198 = scmp.ne.s32.totalorder %s183, %s197
    %p199 = scmp.eq.s32.totalorder %s23, 0
    %p200 = por %p198, %p199
    %s202 = sadd.s32 %s201, 1
    %p205 = scmp.eq.s32.totalorder %s17, 1
    %p206 = scmp.ne.s32.totalorder %s201, %s203
    %p207 = scmp.eq.s32.totalorder %s17, 0
    %p208 = por %p206, %p207
    %p209 = scmp.ne.s32.totalorder %s201, %s203
    %p210 = scmp.eq.s32.totalorder %s22, 1
    %p211 = por %p209, %p210
    %p212 = scmp.ne.s32.totalorder %s203, %s204
    %p213 = scmp.eq.s32.totalorder %s22, 0
    %p214 = por %p212, %p213
    %p215 = scmp.ne.s32.totalorder %s203, %s204
    %p216 = scmp.eq.s32.totalorder %s23, 1
    %p217 = por %p215, %p216
    %p219 = scmp.ne.s32.totalorder %s204, %s218
    %p220 = scmp.eq.s32.totalorder %s23, 0
    %p221 = por %p219, %p220
    %s223 = sadd.s32 %s222, 1
    %p226 = scmp.eq.s32.totalorder %s17, 1
    %p227 = scmp.ne.s32.totalorder %s222, %s224
    %p228 = scmp.eq.s32.totalorder %s17, 0
    %p229 = por %p227, %p228
    %p230 = scmp.ne.s32.totalorder %s222, %s224
    %p231 = scmp.eq.s32.totalorder %s22, 1
    %p232 = por %p230, %p231
    %p233 = scmp.ne.s32.totalorder %s224, %s225
    %p234 = scmp.eq.s32.totalorder %s22, 0
    %p235 = por %p233, %p234
    %p236 = scmp.ne.s32.totalorder %s224, %s225
    %p237 = scmp.eq.s32.totalorder %s23, 1
    %p238 = por %p236, %p237
    %p240 = scmp.ne.s32.totalorder %s225, %s239
    %p241 = scmp.eq.s32.totalorder %s23, 0
    %p242 = por %p240, %p241
    %s244 = sadd.s32 %s243, 1
    %p247 = scmp.eq.s32.totalorder %s17, 1
    %p248 = scmp.ne.s32.totalorder %s243, %s245
    %p249 = scmp.eq.s32.totalorder %s17, 0
    %p250 = por %p248, %p249
    %p251 = scmp.ne.s32.totalorder %s243, %s245
    %p252 = scmp.eq.s32.totalorder %s22, 1
    %p253 = por %p251, %p252
    %p254 = scmp.ne.s32.totalorder %s245, %s246
    %p255 = scmp.eq.s32.totalorder %s22, 0
    %p256 = por %p254, %p255
    %p257 = scmp.ne.s32.totalorder %s245, %s246
    %p258 = scmp.eq.s32.totalorder %s23, 1
    %p259 = por %p257, %p258
    %p261 = scmp.ne.s32.totalorder %s246, %s260
    %p262 = scmp.eq.s32.totalorder %s23, 0
    %p263 = por %p261, %p262
    %s265 = sadd.s32 %s264, 1
    %p268 = scmp.eq.s32.totalorder %s17, 1
    %p269 = scmp.ne.s32.totalorder %s264, %s266
    %p270 = scmp.eq.s32.totalorder %s17, 0
    %p271 = por %p269, %p270
    %p272 = scmp.ne.s32.totalorder %s264, %s266
    %p273 = scmp.eq.s32.totalorder %s22, 1
    %p274 = por %p272, %p273
    %p275 = scmp.ne.s32.totalorder %s266, %s267
    %p276 = scmp.eq.s32.totalorder %s22, 0
    %p277 = por %p275, %p276
    %p278 = scmp.ne.s32.totalorder %s266, %s267
    %p279 = scmp.eq.s32.totalorder %s23, 1
    %p280 = por %p278, %p279
    %p282 = scmp.ne.s32.totalorder %s267, %s281
    %p283 = scmp.eq.s32.totalorder %s23, 0
    %p284 = por %p282, %p283
    %s285 = ssub.s32 %s24, %s36
    %s286 = ssub.s32 %s25, %s32
    %s287 = sor.u32 %s285, %s286
    %p288 = scmp.eq.s32.totalorder %s287, 0
    %s290 = sadd.s32 %s289, 1
    %s291 = scalar_select %p288, %s289, %s290
    %p294 = pneg %p288
    %p295 = scmp.eq.s32.totalorder %s17, 1
    %p296 = por %p294, %p295
    %p297 = scmp.ne.s32.totalorder %s289, %s292
    %p298 = scmp.eq.s32.totalorder %s17, 0
    %p299 = por %p297, %p298
    %p300 = scmp.ne.s32.totalorder %s289, %s292
    %p301 = scmp.eq.s32.totalorder %s22, 1
    %p302 = por %p300, %p301
    %p303 = scmp.ne.s32.totalorder %s292, %s293
    %p304 = scmp.eq.s32.totalorder %s22, 0
    %p305 = por %p303, %p304
    %p306 = scmp.ne.s32.totalorder %s292, %s293
    %p307 = scmp.eq.s32.totalorder %s23, 1
    %p308 = por %p306, %p307
    %p310 = scmp.ne.s32.totalorder %s293, %s309
    %p311 = scmp.eq.s32.totalorder %s23, 0
    %p312 = por %p310, %p311
    %p313 = scmp.le.s32.totalorder 1, %s17
    %p314 = scmp.lt.s32.totalorder %s17, 3
    %p315 = pnand %p313, %p314
    %p316 = pneg %p315
    // Predicated region
    $region9: #{transformer_forward.16} parent=5 // pred_check
      _
    $region10: #{transformer_forward.16} parent=5 // pred_check_branch
      %318 = sbr.rel (%p315) target = $region12
    $region11: #{transformer_forward.16} parent=5 // pred_region
      %s319 = ssub.s32 %s17, 1
      // Predicated region
      $region13: #{transformer_forward.16} parent=11 // pred_check
        %p320 = pneg %p130
      $region14: #{transformer_forward.16} parent=11 // pred_check_branch
        %322 = sbr.rel (%p320) target = $region16
      $region15: #{transformer_forward.16} parent=11 // pred_region
        _
      $region16: #{transformer_forward.16} parent=11 // pred_fallthru
        _
      // Predicated region
      $region17: #{transformer_forward.16} parent=11 // pred_check
        %p323 = pneg %p151
      $region18: #{transformer_forward.16} parent=11 // pred_check_branch
        %325 = sbr.rel (%p323) target = $region20
      $region19: #{transformer_forward.16} parent=11 // pred_region
        _
      $region20: #{transformer_forward.16} parent=11 // pred_fallthru
        _
      // Predicated region
      $region21: #{transformer_forward.16} parent=11 // pred_check
        %p326 = pneg %p172
      $region22: #{transformer_forward.16} parent=11 // pred_check_branch
        %328 = sbr.rel (%p326) target = $region24
      $region23: #{transformer_forward.16} parent=11 // pred_region
        _
      $region24: #{transformer_forward.16} parent=11 // pred_fallthru
        _
      // Predicated region
      $region25: #{transformer_forward.16} parent=11 // pred_check
        %p329 = pneg %p193
      $region26: #{transformer_forward.16} parent=11 // pred_check_branch
        %331 = sbr.rel (%p329) target = $region28
      $region27: #{transformer_forward.16} parent=11 // pred_region
        _
      $region28: #{transformer_forward.16} parent=11 // pred_fallthru
        _
      // Predicated region
      $region29: #{transformer_forward.16} parent=11 // pred_check
        %p332 = pneg %p214
      $region30: #{transformer_forward.16} parent=11 // pred_check_branch
        %334 = sbr.rel (%p332) target = $region32
      $region31: #{transformer_forward.16} parent=11 // pred_region
        _
      $region32: #{transformer_forward.16} parent=11 // pred_fallthru
        _
      // Predicated region
      $region33: #{transformer_forward.16} parent=11 // pred_check
        %p335 = pneg %p235
      $region34: #{transformer_forward.16} parent=11 // pred_check_branch
        %337 = sbr.rel (%p335) target = $region36
      $region35: #{transformer_forward.16} parent=11 // pred_region
        _
      $region36: #{transformer_forward.16} parent=11 // pred_fallthru
        _
      // Predicated region
      $region37: #{transformer_forward.16} parent=11 // pred_check
        %p338 = pneg %p256
      $region38: #{transformer_forward.16} parent=11 // pred_check_branch
        %340 = sbr.rel (%p338) target = $region40
      $region39: #{transformer_forward.16} parent=11 // pred_region
        _
      $region40: #{transformer_forward.16} parent=11 // pred_fallthru
        _
      // Predicated region
      $region41: #{transformer_forward.16} parent=11 // pred_check
        %p341 = pneg %p277
      $region42: #{transformer_forward.16} parent=11 // pred_check_branch
        %343 = sbr.rel (%p341) target = $region44
      $region43: #{transformer_forward.16} parent=11 // pred_region
        _
      $region44: #{transformer_forward.16} parent=11 // pred_fallthru
        _
    $region12: #{transformer_forward.16} parent=5 // pred_fallthru
      _
    %p344 = scmp.lt.s32.totalorder %s17, 2
    // Predicated region
    $region45: #{transformer_forward.16} parent=5 // pred_check
      %p345 = pneg %p344
    $region46: #{transformer_forward.16} parent=5 // pred_check_branch
      %347 = sbr.rel (%p345) target = $region48
    $region47: #{transformer_forward.16} parent=5 // pred_region
      // Predicated region
      $region49: #{transformer_forward.16} parent=47 // pred_check
        %p348 = pneg %p51
      $region50: #{transformer_forward.16} parent=47 // pred_check_branch
        %350 = sbr.rel (%p348) target = $region52
      $region51: #{transformer_forward.16} parent=47 // pred_region
        %p351 = scmp.lt.s32.totalorder %s24, 1
        %s352 = scalar_select %p351, %s24, 1
        %p353 = scmp.lt.s32.totalorder %s25, 0
        %s354 = scalar_select %p353, %s25, 0
        %s355 = sadd.s32 %s354, %s352
        %s356 = smul.addr %s355, 8
        %s357 = scalar_lea.vmem %s0, %s356
      $region52: #{transformer_forward.16} parent=47 // pred_fallthru
        _
      // Predicated region
      $region53: #{transformer_forward.16} parent=47 // pred_check
        %p358 = pneg %p77
      $region54: #{transformer_forward.16} parent=47 // pred_check_branch
        %360 = sbr.rel (%p358) target = $region56
      $region55: #{transformer_forward.16} parent=47 // pred_region
        %p361 = scmp.lt.s32.totalorder %s24, 1
        %s362 = scalar_select %p361, %s24, 1
        %s363 = smul.addr %s362, 8
        %s364 = scalar_lea.vmem %s1, %s363
      $region56: #{transformer_forward.16} parent=47 // pred_fallthru
        _
      // Predicated region
      $region57: #{transformer_forward.16} parent=47 // pred_check
        %p365 = pneg %p103
      $region58: #{transformer_forward.16} parent=47 // pred_check_branch
        %367 = sbr.rel (%p365) target = $region60
      $region59: #{transformer_forward.16} parent=47 // pred_region
        %p368 = scmp.lt.s32.totalorder %s24, 1
        %s369 = scalar_select %p368, %s24, 1
        %s370 = scalar_lea.vmem %s2, %s369
      $region60: #{transformer_forward.16} parent=47 // pred_fallthru
        _
    $region48: #{transformer_forward.16} parent=5 // pred_fallthru
      _
    %p371 = scmp.le.s32.totalorder 1, %s17
    %p372 = scmp.lt.s32.totalorder %s17, 3
    %p373 = pnand %p371, %p372
    %p374 = pneg %p373
    // Predicated region
    $region61: #{transformer_forward.16} parent=5 // pred_check
      _
    $region62: #{transformer_forward.16} parent=5 // pred_check_branch
      %376 = sbr.rel (%p373) target = $region64
    $region63: #{transformer_forward.16} parent=5 // pred_region
      %s377 = ssub.s32 %s17, 1
      %p378 = scmp.lt.s32.totalorder %s26, 1
      %s379 = scalar_select %p378, %s26, 1
      %p380 = scmp.lt.s32.totalorder %s27, 0
      %s381 = scalar_select %p380, %s27, 0
      %s382 = sadd.s32 %s381, %s379
      %s383 = smul.addr %s382, 8
      %s384 = scalar_lea.vmem %s0, %s383
      %p385 = pneg %p57
      %p386 = pneg %p54
      %p387 = scmp.lt.s32.totalorder %s26, 1
      %s388 = scalar_select %p387, %s26, 1
      %s389 = smul.addr %s388, 8
      %s390 = scalar_lea.vmem %s1, %s389
      %p391 = pneg %p83
      %p392 = pneg %p80
      %p393 = scmp.lt.s32.totalorder %s26, 1
      %s394 = scalar_select %p393, %s26, 1
      %s395 = scalar_lea.vmem %s2, %s394
      %p396 = pneg %p109
      %p397 = pneg %p106
      %p398 = pneg %p130
      %p399 = pneg %p127
      %p400 = pneg %p151
      %p401 = pneg %p148
      %p402 = pneg %p172
      %p403 = pneg %p169
      %p404 = pneg %p193
      %p405 = pneg %p190
      %p406 = pneg %p214
      %p407 = pneg %p211
      %p408 = pneg %p235
      %p409 = pneg %p232
      %p410 = pneg %p256
      %p411 = pneg %p253
      %p412 = pneg %p277
      %p413 = pneg %p274
      %p414 = pneg %p305
      %p415 = pneg %p302
      %p416 = scmp.lt.s32.totalorder %s26, 1
      %s417 = scalar_select %p416, %s26, 1
      %p418 = scmp.lt.s32.totalorder %s27, 0
      %s419 = scalar_select %p418, %s27, 0
      %s420 = sadd.s32 %s419, %s417
      %s421 = smul.addr %s420, 8
      %s422 = scalar_lea.vmem %s11, %s421
      %p423 = scmp.lt.s32.totalorder %s26, 1
      %s424 = scalar_select %p423, %s26, 1
      %p425 = scmp.lt.s32.totalorder %s27, 0
      %s426 = scalar_select %p425, %s27, 0
      %s427 = sadd.s32 %s426, %s424
      %s428 = smul.addr %s427, 8
      %s429 = scalar_lea.vmem %s0, %s428
      %p430 = scmp.lt.s32.totalorder %s26, 1
      %s431 = scalar_select %p430, %s26, 1
      %s432 = smul.addr %s431, 8
      %s433 = scalar_lea.vmem %s1, %s432
      %p434 = scmp.lt.s32.totalorder %s26, 1
      %s435 = scalar_select %p434, %s26, 1
      %s436 = scalar_lea.vmem %s2, %s435
      %p437 = scmp.lt.s32.totalorder %s26, 1
      %s438 = scalar_select %p437, %s26, 1
      %p439 = scmp.lt.s32.totalorder %s27, 0
      %s440 = scalar_select %p439, %s27, 0
      %s441 = sadd.s32 %s440, %s438
      %s442 = smul.addr %s441, 8
      %s443 = scalar_lea.vmem %s11, %s442
      %p445 = scmp.eq.s32.totalorder %s27, 0
      // Predicated region
      $region65: #{transformer_forward.16} parent=63 // pred_check
        %p446 = pneg %p445
      $region66: #{transformer_forward.16} parent=63 // pred_check_branch
        %448 = sbr.rel (%p446) target = $region68
      $region67: #{transformer_forward.16} parent=63 // pred_region
        %v449 = vld [vmem:[%s433] sm:$0xff]
        %v450 = vpack.c.bf16 %v449, %v449
        %v451 = vld [vmem:[%s5] sm:$0xf]
        %v452 = vld [vmem:[%s5 + $0x4] sm:$0xf]
        %v453 = vld [vmem:[%s5 + $0x8] sm:$0xf]
        %v454 = vld [vmem:[%s5 + $0xc] sm:$0xf]
        %v455 = vld [vmem:[%s6] sm:$0x1]
        %v457 = vlaneseq
        %v458 = vshrl.u32 %v457, 7
        %v459 = vsub.s32 0, %v458
        %v460 = vrot.slane %v455, %v459
        %v466 = vunpack.c.l.b16 %v451
        %v467 = vunpack.c.l.b16 %v452
        %v468 = vunpack.c.l.b16 %v453
        %v469 = vunpack.c.l.b16 %v454
        %v470 = vpack.c.b16 %v467, %v466
        %v471 = vpack.c.b16 %v469, %v468
        %vm474 = vcmask 261120
        %v476 = vsel %vm474, %v450, 0
        %478 = vmatprep.subr.bf16.mxu0 0
        %479 = vmatpush1.bf16.msra.mxu0 %v470
        %480 = vmatprep.subr.bf16.mxu0 0
        %481 = vmatpush1.bf16.msra.mxu0 %v471
        %482 = vmatprep.subr.bf16.mxu0 0
        %483 = vmatpush1.bf16.msra.mxu0 0
        %484 = vmatprep.subr.bf16.mxu0 0
        %485 = vmatpush1.bf16.msra.mxu0 0
        %486 = vmatprep.subr.bf16.mxu0 0
        %487 = vmatpush1.bf16.msra.mxu0 0
        %488 = vmatprep.subr.bf16.mxu0 0
        %489 = vmatpush1.bf16.msra.mxu0 0
        %490 = vmatprep.subr.bf16.mxu0 0
        %491 = vmatpush1.bf16.msra.mxu0 0
        %492 = vmatprep.subr.bf16.mxu0 0
        %493 = vmatpush1.bf16.msra.mxu0 0
        %494 = vmatprep.subr.bf16.mxu0 0
        %495 = vmatpush1.bf16.msra.mxu0 0
        %496 = vmatprep.subr.bf16.mxu0 0
        %497 = vmatpush1.bf16.msra.mxu0 0
        %498 = vmatprep.subr.bf16.mxu0 0
        %499 = vmatpush1.bf16.msra.mxu0 0
        %500 = vmatprep.subr.bf16.mxu0 0
        %501 = vmatpush1.bf16.msra.mxu0 0
        %502 = vmatprep.subr.bf16.mxu0 0
        %503 = vmatpush1.bf16.msra.mxu0 0
        %504 = vmatprep.subr.bf16.mxu0 0
        %505 = vmatpush1.bf16.msra.mxu0 0
        %506 = vmatprep.subr.bf16.mxu0 0
        %507 = vmatpush1.bf16.msra.mxu0 0
        %508 = vmatprep.subr.bf16.mxu0 0
        %509 = vmatpush1.bf16.msra.mxu0 0
        %510 = vmatprep.mubr.bf16.mxu0 0
        %511 = vmatmul.mubr.bf16.gmra.mrb[0].mxu0 %v476
        %v512 = vpop.f32.mrb[0].mxu0
        %v513 = vadd.f32 %v460, %v512
        %v514 = vpop.f32.mrb[0].mxu0
        %v515 = vpop.f32.mrb[0].mxu0
        %v516 = vpop.f32.mrb[0].mxu0
        %517 = vdwg.mxu0
        %v518 = vpack.c.bf16 %v513, %v513
        %vm519 = vcmask 519168
        %520 = vst.msk [vmem:[#allocation2] sm:$0xf] %vm519, %v518
      $region68: #{transformer_forward.16} parent=63 // pred_fallthru
        _
      %v521 = vld [vmem:[%s429] sm:$0xff]
      %v522 = vpack.c.bf16 %v521, %v521
      %v523 = vld [vmem:[%s3] sm:$0xf]
      %v524 = vld [vmem:[%s3 + $0x4] sm:$0xf]
      %v525 = vld [vmem:[%s3 + $0x8] sm:$0xf]
      %v526 = vld [vmem:[%s3 + $0xc] sm:$0xf]
      %v527 = vld [vmem:[%s4] sm:$0x1]
      %v529 = vlaneseq
      %v530 = vshrl.u32 %v529, 7
      %v531 = vsub.s32 0, %v530
      %v532 = vrot.slane %v527, %v531
      %v538 = vunpack.c.l.b16 %v523
      %v539 = vunpack.c.l.b16 %v524
      %v540 = vunpack.c.l.b16 %v525
      %v541 = vunpack.c.l.b16 %v526
      %v542 = vpack.c.b16 %v539, %v538
      %v543 = vpack.c.b16 %v541, %v540
      %vm546 = vcmask 261120
      %v548 = vsel %vm546, %v522, 0
      %550 = vmatprep.subr.bf16.mxu0 0
      %551 = vmatpush1.bf16.msra.mxu0 %v542
      %552 = vmatprep.subr.bf16.mxu0 0
      %553 = vmatpush1.bf16.msra.mxu0 %v543
      %554 = vmatprep.subr.bf16.mxu0 0
      %555 = vmatpush1.bf16.msra.mxu0 0
      %556 = vmatprep.subr.bf16.mxu0 0
      %557 = vmatpush1.bf16.msra.mxu0 0
      %558 = vmatprep.subr.bf16.mxu0 0
      %559 = vmatpush1.bf16.msra.mxu0 0
      %560 = vmatprep.subr.bf16.mxu0 0
      %561 = vmatpush1.bf16.msra.mxu0 0
      %562 = vmatprep.subr.bf16.mxu0 0
      %563 = vmatpush1.bf16.msra.mxu0 0
      %564 = vmatprep.subr.bf16.mxu0 0
      %565 = vmatpush1.bf16.msra.mxu0 0
      %566 = vmatprep.subr.bf16.mxu0 0
      %567 = vmatpush1.bf16.msra.mxu0 0
      %568 = vmatprep.subr.bf16.mxu0 0
      %569 = vmatpush1.bf16.msra.mxu0 0
      %570 = vmatprep.subr.bf16.mxu0 0
      %571 = vmatpush1.bf16.msra.mxu0 0
      %572 = vmatprep.subr.bf16.mxu0 0
      %573 = vmatpush1.bf16.msra.mxu0 0
      %574 = vmatprep.subr.bf16.mxu0 0
      %575 = vmatpush1.bf16.msra.mxu0 0
      %576 = vmatprep.subr.bf16.mxu0 0
      %577 = vmatpush1.bf16.msra.mxu0 0
      %578 = vmatprep.subr.bf16.mxu0 0
      %579 = vmatpush1.bf16.msra.mxu0 0
      %580 = vmatprep.subr.bf16.mxu0 0
      %581 = vmatpush1.bf16.msra.mxu0 0
      %582 = vmatprep.mubr.bf16.mxu0 0
      %583 = vmatmul.mubr.bf16.gmra.mrb[0].mxu0 %v548
      %v584 = vpop.f32.mrb[0].mxu0
      %v585 = vadd.f32 %v532, %v584
      %v586 = vpop.f32.mrb[0].mxu0
      %v587 = vpop.f32.mrb[0].mxu0
      %v588 = vpop.f32.mrb[0].mxu0
      %589 = vdwg.mxu0
      %v590 = vmul.f32 %v585, 0.35355338
      %v591 = vpack.c.bf16 %v590, %v590
      %v592 = vld [vmem:[%s436] sm:$0x1]
      %v593 = vsub.f32 %v592, 1.0
      %v594 = vmul.f32 %v593, 1e+09
      %v595 = vld [vmem:[#allocation2] sm:$0xf]
      %v597 = vlaneseq
      %v598 = vshrl.u32 %v597, 7
      %v599 = vsub.s32 0, %v598
      %v600 = vrot.slane %v594, %v599
      %vm602 = vcmask 64512
      %v604 = vsel %vm602, %v591, 0
      %v607 = vsel %vm602, %v595, 0
      %609 = vmatprep.subr.bf16.mxu0 0
      %610 = vmatpush1.bf16.xpose.msra.mxu0 %v607
      %611 = vmatprep.subr.bf16.mxu0 0
      %612 = vmatpush1.bf16.xpose.msra.mxu0 0
      %613 = vmatprep.subr.bf16.mxu0 0
      %614 = vmatpush1.bf16.xpose.msra.mxu0 0
      %615 = vmatprep.subr.bf16.mxu0 0
      %616 = vmatpush1.bf16.xpose.msra.mxu0 0
      %617 = vmatprep.subr.bf16.mxu0 0
      %618 = vmatpush1.bf16.xpose.msra.mxu0 0
      %619 = vmatprep.subr.bf16.mxu0 0
      %620 = vmatpush1.bf16.xpose.msra.mxu0 0
      %621 = vmatprep.subr.bf16.mxu0 0
      %622 = vmatpush1.bf16.xpose.msra.mxu0 0
      %623 = vmatprep.subr.bf16.mxu0 0
      %624 = vmatpush1.bf16.xpose.msra.mxu0 0
      %625 = vmatprep.subr.bf16.mxu0 0
      %626 = vmatpush1.bf16.xpose.msra.mxu0 0
      %627 = vmatprep.subr.bf16.mxu0 0
      %628 = vmatpush1.bf16.xpose.msra.mxu0 0
      %629 = vmatprep.subr.bf16.mxu0 0
      %630 = vmatpush1.bf16.xpose.msra.mxu0 0
      %631 = vmatprep.subr.bf16.mxu0 0
      %632 = vmatpush1.bf16.xpose.msra.mxu0 0
      %633 = vmatprep.subr.bf16.mxu0 0
      %634 = vmatpush1.bf16.xpose.msra.mxu0 0
      %635 = vmatprep.subr.bf16.mxu0 0
      %636 = vmatpush1.bf16.xpose.msra.mxu0 0
      %637 = vmatprep.subr.bf16.mxu0 0
      %638 = vmatpush1.bf16.xpose.msra.mxu0 0
      %639 = vmatprep.subr.bf16.mxu0 0
      %640 = vmatpush1.bf16.xpose.msra.mxu0 0
      %641 = vmatprep.mubr.bf16.mxu0 0
      %642 = vmatmul.mubr.bf16.gmra.mrb[0].mxu0 %v604
      %v643 = vpop.f32.mrb[0].mxu0
      %v644 = vadd.f32 %v600, %v643
      %v645 = vpop.f32.mrb[0].mxu0
      %v646 = vpop.f32.mrb[0].mxu0
      %v647 = vpop.f32.mrb[0].mxu0
      %648 = vdwg.mxu0
      %v649 = vsel %vm602, %v644, -inf
      %650 = vmax.xlane.f32.xlu0 %v649
      %v651 = vpop.xlane.xlu0 %650
      %v652 = vsub.f32 %v644, %v651
      %v653 = vmul.f32 %v652, 1.442695
      %v654 = vpow.pop %v653
      %v655 = vsel %vm602, %v654, 0.0
      %656 = vadd.xlane.f32.xlu0 %v655
      %v657 = vpop.xlane.xlu0 %656
      %v658 = vpack.c.bf16 %v654, %v654
      %v660 = vunpack.c.l.b16 %v595
      %v661 = vpack.c.b16 %v660, %v660
      %662 = vrot.lane.b32.xlu0 %v661, 96
      %v663 = vpop.permute.xlu0 %662
      %v665 = vsel %vm602, %v658, 0
      %vm667 = vcmask 1043456
      %v669 = vsel %vm667, %v663, 0
      %671 = vmatprep.subr.bf16.mxu0 0
      %672 = vmatpush1.bf16.msra.mxu0 %v669
      %673 = vmatprep.subr.bf16.mxu0 0
      %674 = vmatpush1.bf16.msra.mxu0 0
      %675 = vmatprep.subr.bf16.mxu0 0
      %676 = vmatpush1.bf16.msra.mxu0 0
      %677 = vmatprep.subr.bf16.mxu0 0
      %678 = vmatpush1.bf16.msra.mxu0 0
      %679 = vmatprep.subr.bf16.mxu0 0
      %680 = vmatpush1.bf16.msra.mxu0 0
      %681 = vmatprep.subr.bf16.mxu0 0
      %682 = vmatpush1.bf16.msra.mxu0 0
      %683 = vmatprep.subr.bf16.mxu0 0
      %684 = vmatpush1.bf16.msra.mxu0 0
      %685 = vmatprep.subr.bf16.mxu0 0
      %686 = vmatpush1.bf16.msra.mxu0 0
      %687 = vmatprep.subr.bf16.mxu0 0
      %688 = vmatpush1.bf16.msra.mxu0 0
      %689 = vmatprep.subr.bf16.mxu0 0
      %690 = vmatpush1.bf16.msra.mxu0 0
      %691 = vmatprep.subr.bf16.mxu0 0
      %692 = vmatpush1.bf16.msra.mxu0 0
      %693 = vmatprep.subr.bf16.mxu0 0
      %694 = vmatpush1.bf16.msra.mxu0 0
      %695 = vmatprep.subr.bf16.mxu0 0
      %696 = vmatpush1.bf16.msra.mxu0 0
      %697 = vmatprep.subr.bf16.mxu0 0
      %698 = vmatpush1.bf16.msra.mxu0 0
      %699 = vmatprep.subr.bf16.mxu0 0
      %700 = vmatpush1.bf16.msra.mxu0 0
      %701 = vmatprep.subr.bf16.mxu0 0
      %702 = vmatpush1.bf16.msra.mxu0 0
      %703 = vmatprep.mubr.bf16.mxu0 0
      %704 = vmatmul.mubr.bf16.gmra.mrb[0].mxu0 %v665
      %v705 = vpop.f32.mrb[0].mxu0
      %v706 = vadd.f32 0.0, %v705
      %v707 = vpop.f32.mrb[0].mxu0
      %v708 = vpop.f32.mrb[0].mxu0
      %v709 = vpop.f32.mrb[0].mxu0
      %710 = vdwg.mxu0
      %v711 = vrcp.pop %v657
      %v712 = vmul.f32 %v706, %v711
      %713 = vst.msk [vmem:[#allocation3] sm:$0xff] %vm602, %v712
      %v714 = vld [vmem:[#allocation2] sm:$0xf]
      %716 = vrot.lane.b32.xlu0 %v591, 120
      %v717 = vpop.permute.xlu0 %716
      %v719 = vunpack.c.l.b16 %v714
      %v720 = vpack.c.b16 %v719, %v719
      %721 = vrot.lane.b32.xlu0 %v720, 120
      %v722 = vpop.permute.xlu0 %721
      %v724 = vsel %vm602, %v717, 0
      %v727 = vsel %vm602, %v722, 0
      %729 = vmatprep.subr.bf16.mxu0 0
      %730 = vmatpush1.bf16.xpose.msra.mxu0 %v727
      %731 = vmatprep.subr.bf16.mxu0 0
      %732 = vmatpush1.bf16.xpose.msra.mxu0 0
      %733 = vmatprep.subr.bf16.mxu0 0
      %734 = vmatpush1.bf16.xpose.msra.mxu0 0
      %735 = vmatprep.subr.bf16.mxu0 0
      %736 = vmatpush1.bf16.xpose.msra.mxu0 0
      %737 = vmatprep.subr.bf16.mxu0 0
      %738 = vmatpush1.bf16.xpose.msra.mxu0 0
      %739 = vmatprep.subr.bf16.mxu0 0
      %740 = vmatpush1.bf16.xpose.msra.mxu0 0
      %741 = vmatprep.subr.bf16.mxu0 0
      %742 = vmatpush1.bf16.xpose.msra.mxu0 0
      %743 = vmatprep.subr.bf16.mxu0 0
      %744 = vmatpush1.bf16.xpose.msra.mxu0 0
      %745 = vmatprep.subr.bf16.mxu0 0
      %746 = vmatpush1.bf16.xpose.msra.mxu0 0
      %747 = vmatprep.subr.bf16.mxu0 0
      %748 = vmatpush1.bf16.xpose.msra.mxu0 0
      %749 = vmatprep.subr.bf16.mxu0 0
      %750 = vmatpush1.bf16.xpose.msra.mxu0 0
      %751 = vmatprep.subr.bf16.mxu0 0
      %752 = vmatpush1.bf16.xpose.msra.mxu0 0
      %753 = vmatprep.subr.bf16.mxu0 0
      %754 = vmatpush1.bf16.xpose.msra.mxu0 0
      %755 = vmatprep.subr.bf16.mxu0 0
      %756 = vmatpush1.bf16.xpose.msra.mxu0 0
      %757 = vmatprep.subr.bf16.mxu0 0
      %758 = vmatpush1.bf16.xpose.msra.mxu0 0
      %759 = vmatprep.subr.bf16.mxu0 0
      %760 = vmatpush1.bf16.xpose.msra.mxu0 0
      %761 = vmatprep.mubr.bf16.mxu0 0
      %762 = vmatmul.mubr.bf16.gmra.mrb[0].mxu0 %v724
      %v763 = vpop.f32.mrb[0].mxu0
      %v764 = vadd.f32 %v600, %v763
      %v765 = vpop.f32.mrb[0].mxu0
      %v766 = vpop.f32.mrb[0].mxu0
      %v767 = vpop.f32.mrb[0].mxu0
      %768 = vdwg.mxu0
      %v769 = vsel %vm602, %v764, -inf
      %770 = vmax.xlane.f32.xlu0 %v769
      %v771 = vpop.xlane.xlu0 %770
      %v772 = vsub.f32 %v764, %v771
      %v773 = vmul.f32 %v772, 1.442695
      %v774 = vpow.pop %v773
      %v775 = vsel %vm602, %v774, 0.0
      %776 = vadd.xlane.f32.xlu0 %v775
      %v777 = vpop.xlane.xlu0 %776
      %v778 = vpack.c.bf16 %v774, %v774
      %779 = vrot.lane.b32.xlu0 %v720, 88
      %v780 = vpop.permute.xlu0 %779
      %v782 = vsel %vm602, %v778, 0
      %v785 = vsel %vm667, %v780, 0
      %787 = vmatprep.subr.bf16.mxu0 0
      %788 = vmatpush1.bf16.msra.mxu0 %v785
      %789 = vmatprep.subr.bf16.mxu0 0
      %790 = vmatpush1.bf16.msra.mxu0 0
      %791 = vmatprep.subr.bf16.mxu0 0
      %792 = vmatpush1.bf16.msra.mxu0 0
      %793 = vmatprep.subr.bf16.mxu0 0
      %794 = vmatpush1.bf16.msra.mxu0 0
      %795 = vmatprep.subr.bf16.mxu0 0
      %796 = vmatpush1.bf16.msra.mxu0 0
      %797 = vmatprep.subr.bf16.mxu0 0
      %798 = vmatpush1.bf16.msra.mxu0 0
      %799 = vmatprep.subr.bf16.mxu0 0
      %800 = vmatpush1.bf16.msra.mxu0 0
      %801 = vmatprep.subr.bf16.mxu0 0
      %802 = vmatpush1.bf16.msra.mxu0 0
      %803 = vmatprep.subr.bf16.mxu0 0
      %804 = vmatpush1.bf16.msra.mxu0 0
      %805 = vmatprep.subr.bf16.mxu0 0
      %806 = vmatpush1.bf16.msra.mxu0 0
      %807 = vmatprep.subr.bf16.mxu0 0
      %808 = vmatpush1.bf16.msra.mxu0 0
      %809 = vmatprep.subr.bf16.mxu0 0
      %810 = vmatpush1.bf16.msra.mxu0 0
      %811 = vmatprep.subr.bf16.mxu0 0
      %812 = vmatpush1.bf16.msra.mxu0 0
      %813 = vmatprep.subr.bf16.mxu0 0
      %814 = vmatpush1.bf16.msra.mxu0 0
      %815 = vmatprep.subr.bf16.mxu0 0
      %816 = vmatpush1.bf16.msra.mxu0 0
      %817 = vmatprep.subr.bf16.mxu0 0
      %818 = vmatpush1.bf16.msra.mxu0 0
      %819 = vmatprep.mubr.bf16.mxu0 0
      %820 = vmatmul.mubr.bf16.gmra.mrb[0].mxu0 %v782
      %v821 = vpop.f32.mrb[0].mxu0
      %v822 = vadd.f32 0.0, %v821
      %v823 = vpop.f32.mrb[0].mxu0
      %v824 = vpop.f32.mrb[0].mxu0
      %v825 = vpop.f32.mrb[0].mxu0
      %826 = vdwg.mxu0
      %v827 = vrcp.pop %v777
      %v828 = vmul.f32 %v822, %v827
      %830 = vrot.lane.b32.xlu0 %v828, 8
      %v831 = vpop.permute.xlu0 %830
      %vm833 = vcmask 130112
      %834 = vst.msk [vmem:[#allocation3] sm:$0xff] %vm833, %v831
      %v835 = vld [vmem:[#allocation2] sm:$0xf]
      %836 = vrot.lane.b32.xlu0 %v591, 112
      %v837 = vpop.permute.xlu0 %836
      %v839 = vunpack.c.l.b16 %v835
      %v840 = vpack.c.b16 %v839, %v839
      %841 = vrot.lane.b32.xlu0 %v840, 112
      %v842 = vpop.permute.xlu0 %841
      %v844 = vsel %vm602, %v837, 0
      %v847 = vsel %vm602, %v842, 0
      %849 = vmatprep.subr.bf16.mxu0 0
      %850 = vmatpush1.bf16.xpose.msra.mxu0 %v847
      %851 = vmatprep.subr.bf16.mxu0 0
      %852 = vmatpush1.bf16.xpose.msra.mxu0 0
      %853 = vmatprep.subr.bf16.mxu0 0
      %854 = vmatpush1.bf16.xpose.msra.mxu0 0
      %855 = vmatprep.subr.bf16.mxu0 0
      %856 = vmatpush1.bf16.xpose.msra.mxu0 0
      %857 = vmatprep.subr.bf16.mxu0 0
      %858 = vmatpush1.bf16.xpose.msra.mxu0 0
      %859 = vmatprep.subr.bf16.mxu0 0
      %860 = vmatpush1.bf16.xpose.msra.mxu0 0
      %861 = vmatprep.subr.bf16.mxu0 0
      %862 = vmatpush1.bf16.xpose.msra.mxu0 0
      %863 = vmatprep.subr.bf16.mxu0 0
      %864 = vmatpush1.bf16.xpose.msra.mxu0 0
      %865 = vmatprep.subr.bf16.mxu0 0
      %866 = vmatpush1.bf16.xpose.msra.mxu0 0
      %867 = vmatprep.subr.bf16.mxu0 0
      %868 = vmatpush1.bf16.xpose.msra.mxu0 0
      %869 = vmatprep.subr.bf16.mxu0 0
      %870 = vmatpush1.bf16.xpose.msra.mxu0 0
      %871 = vmatprep.subr.bf16.mxu0 0
      %872 = vmatpush1.bf16.xpose.msra.mxu0 0
      %873 = vmatprep.subr.bf16.mxu0 0
      %874 = vmatpush1.bf16.xpose.msra.mxu0 0
      %875 = vmatprep.subr.bf16.mxu0 0
      %876 = vmatpush1.bf16.xpose.msra.mxu0 0
      %877 = vmatprep.subr.bf16.mxu0 0
      %878 = vmatpush1.bf16.xpose.msra.mxu0 0
      %879 = vmatprep.subr.bf16.mxu0 0
      %880 = vmatpush1.bf16.xpose.msra.mxu0 0
      %881 = vmatprep.mubr.bf16.mxu0 0
      %882 = vmatmul.mubr.bf16.gmra.mrb[0].mxu0 %v844
      %v883 = vpop.f32.mrb[0].mxu0
      %v884 = vadd.f32 %v600, %v883
      %v885 = vpop.f32.mrb[0].mxu0
      %v886 = vpop.f32.mrb[0].mxu0
      %v887 = vpop.f32.mrb[0].mxu0
      %888 = vdwg.mxu0
      %v889 = vsel %vm602, %v884, -inf
      %890 = vmax.xlane.f32.xlu0 %v889
      %v891 = vpop.xlane.xlu0 %890
      %v892 = vsub.f32 %v884, %v891
      %v893 = vmul.f32 %v892, 1.442695
      %v894 = vpow.pop %v893
      %v895 = vsel %vm602, %v894, 0.0
      %896 = vadd.xlane.f32.xlu0 %v895
      %v897 = vpop.xlane.xlu0 %896
      %v898 = vpack.c.bf16 %v894, %v894
      %899 = vrot.lane.b32.xlu0 %v840, 80
      %v900 = vpop.permute.xlu0 %899
      %v902 = vsel %vm602, %v898, 0
      %v905 = vsel %vm667, %v900, 0
      %907 = vmatprep.subr.bf16.mxu0 0
      %908 = vmatpush1.bf16.msra.mxu0 %v905
      %909 = vmatprep.subr.bf16.mxu0 0
      %910 = vmatpush1.bf16.msra.mxu0 0
      %911 = vmatprep.subr.bf16.mxu0 0
      %912 = vmatpush1.bf16.msra.mxu0 0
      %913 = vmatprep.subr.bf16.mxu0 0
      %914 = vmatpush1.bf16.msra.mxu0 0
      %915 = vmatprep.subr.bf16.mxu0 0
      %916 = vmatpush1.bf16.msra.mxu0 0
      %917 = vmatprep.subr.bf16.mxu0 0
      %918 = vmatpush1.bf16.msra.mxu0 0
      %919 = vmatprep.subr.bf16.mxu0 0
      %920 = vmatpush1.bf16.msra.mxu0 0
      %921 = vmatprep.subr.bf16.mxu0 0
      %922 = vmatpush1.bf16.msra.mxu0 0
      %923 = vmatprep.subr.bf16.mxu0 0
      %924 = vmatpush1.bf16.msra.mxu0 0
      %925 = vmatprep.subr.bf16.mxu0 0
      %926 = vmatpush1.bf16.msra.mxu0 0
      %927 = vmatprep.subr.bf16.mxu0 0
      %928 = vmatpush1.bf16.msra.mxu0 0
      %929 = vmatprep.subr.bf16.mxu0 0
      %930 = vmatpush1.bf16.msra.mxu0 0
      %931 = vmatprep.subr.bf16.mxu0 0
      %932 = vmatpush1.bf16.msra.mxu0 0
      %933 = vmatprep.subr.bf16.mxu0 0
      %934 = vmatpush1.bf16.msra.mxu0 0
      %935 = vmatprep.subr.bf16.mxu0 0
      %936 = vmatpush1.bf16.msra.mxu0 0
      %937 = vmatprep.subr.bf16.mxu0 0
      %938 = vmatpush1.bf16.msra.mxu0 0
      %939 = vmatprep.mubr.bf16.mxu0 0
      %940 = vmatmul.mubr.bf16.gmra.mrb[0].mxu0 %v902
      %v941 = vpop.f32.mrb[0].mxu0
      %v942 = vadd.f32 0.0, %v941
      %v943 = vpop.f32.mrb[0].mxu0
      %v944 = vpop.f32.mrb[0].mxu0
      %v945 = vpop.f32.mrb[0].mxu0
      %946 = vdwg.mxu0
      %v947 = vrcp.pop %v897
      %v948 = vmul.f32 %v942, %v947
      %950 = vrot.lane.b32.xlu0 %v948, 16
      %v951 = vpop.permute.xlu0 %950
      %vm953 = vcmask 195712
      %954 = vst.msk [vmem:[#allocation3] sm:$0xff] %vm953, %v951
      %v955 = vld [vmem:[#allocation2] sm:$0xf]
      %956 = vrot.lane.b32.xlu0 %v591, 104
      %v957 = vpop.permute.xlu0 %956
      %v959 = vunpack.c.l.b16 %v955
      %v960 = vpack.c.b16 %v959, %v959
      %961 = vrot.lane.b32.xlu0 %v960, 104
      %v962 = vpop.permute.xlu0 %961
      %v964 = vsel %vm602, %v957, 0
      %v967 = vsel %vm602, %v962, 0
      %969 = vmatprep.subr.bf16.mxu0 0
      %970 = vmatpush1.bf16.xpose.msra.mxu0 %v967
      %971 = vmatprep.subr.bf16.mxu0 0
      %972 = vmatpush1.bf16.xpose.msra.mxu0 0
      %973 = vmatprep.subr.bf16.mxu0 0
      %974 = vmatpush1.bf16.xpose.msra.mxu0 0
      %975 = vmatprep.subr.bf16.mxu0 0
      %976 = vmatpush1.bf16.xpose.msra.mxu0 0
      %977 = vmatprep.subr.bf16.mxu0 0
      %978 = vmatpush1.bf16.xpose.msra.mxu0 0
      %979 = vmatprep.subr.bf16.mxu0 0
      %980 = vmatpush1.bf16.xpose.msra.mxu0 0
      %981 = vmatprep.subr.bf16.mxu0 0
      %982 = vmatpush1.bf16.xpose.msra.mxu0 0
      %983 = vmatprep.subr.bf16.mxu0 0
      %984 = vmatpush1.bf16.xpose.msra.mxu0 0
      %985 = vmatprep.subr.bf16.mxu0 0
      %986 = vmatpush1.bf16.xpose.msra.mxu0 0
      %987 = vmatprep.subr.bf16.mxu0 0
      %988 = vmatpush1.bf16.xpose.msra.mxu0 0
      %989 = vmatprep.subr.bf16.mxu0 0
      %990 = vmatpush1.bf16.xpose.msra.mxu0 0
      %991 = vmatprep.subr.bf16.mxu0 0
      %992 = vmatpush1.bf16.xpose.msra.mxu0 0
      %993 = vmatprep.subr.bf16.mxu0 0
      %994 = vmatpush1.bf16.xpose.msra.mxu0 0
      %995 = vmatprep.subr.bf16.mxu0 0
      %996 = vmatpush1.bf16.xpose.msra.mxu0 0
      %997 = vmatprep.subr.bf16.mxu0 0
      %998 = vmatpush1.bf16.xpose.msra.mxu0 0
      %999 = vmatprep.subr.bf16.mxu0 0
      %1000 = vmatpush1.bf16.xpose.msra.mxu0 0
      %1001 = vmatprep.mubr.bf16.mxu0 0
      %1002 = vmatmul.mubr.bf16.gmra.mrb[0].mxu0 %v964
      %v1003 = vpop.f32.mrb[0].mxu0
      %v1004 = vadd.f32 %v600, %v1003
      %v1005 = vpop.f32.mrb[0].mxu0
      %v1006 = vpop.f32.mrb[0].mxu0
      %v1007 = vpop.f32.mrb[0].mxu0
      %1008 = vdwg.mxu0
      %v1009 = vsel %vm602, %v1004, -inf
      %1010 = vmax.xlane.f32.xlu0 %v1009
      %v1011 = vpop.xlane.xlu0 %1010
      %v1012 = vsub.f32 %v1004, %v1011
      %v1013 = vmul.f32 %v1012, 1.442695
      %v1014 = vpow.pop %v1013
      %v1015 = vsel %vm602, %v1014, 0.0
      %1016 = vadd.xlane.f32.xlu0 %v1015
      %v1017 = vpop.xlane.xlu0 %1016
      %v1018 = vpack.c.bf16 %v1014, %v1014
      %1019 = vrot.lane.b32.xlu0 %v960, 72
      %v1020 = vpop.permute.xlu0 %1019
      %v1022 = vsel %vm602, %v1018, 0
      %v1025 = vsel %vm667, %v1020, 0
      %1027 = vmatprep.subr.bf16.mxu0 0
      %1028 = vmatpush1.bf16.msra.mxu0 %v1025
      %1029 = vmatprep.subr.bf16.mxu0 0
      %1030 = vmatpush1.bf16.msra.mxu0 0
      %1031 = vmatprep.subr.bf16.mxu0 0
      %1032 = vmatpush1.bf16.msra.mxu0 0
      %1033 = vmatprep.subr.bf16.mxu0 0
      %1034 = vmatpush1.bf16.msra.mxu0 0
      %1035 = vmatprep.subr.bf16.mxu0 0
      %1036 = vmatpush1.bf16.msra.mxu0 0
      %1037 = vmatprep.subr.bf16.mxu0 0
      %1038 = vmatpush1.bf16.msra.mxu0 0
      %1039 = vmatprep.subr.bf16.mxu0 0
      %1040 = vmatpush1.bf16.msra.mxu0 0
      %1041 = vmatprep.subr.bf16.mxu0 0
      %1042 = vmatpush1.bf16.msra.mxu0 0
      %1043 = vmatprep.subr.bf16.mxu0 0
      %1044 = vmatpush1.bf16.msra.mxu0 0
      %1045 = vmatprep.subr.bf16.mxu0 0
      %1046 = vmatpush1.bf16.msra.mxu0 0
      %1047 = vmatprep.subr.bf16.mxu0 0
      %1048 = vmatpush1.bf16.msra.mxu0 0
      %1049 = vmatprep.subr.bf16.mxu0 0
      %1050 = vmatpush1.bf16.msra.mxu0 0
      %1051 = vmatprep.subr.bf16.mxu0 0
      %1052 = vmatpush1.bf16.msra.mxu0 0
      %1053 = vmatprep.subr.bf16.mxu0 0
      %1054 = vmatpush1.bf16.msra.mxu0 0
      %1055 = vmatprep.subr.bf16.mxu0 0
      %1056 = vmatpush1.bf16.msra.mxu0 0
      %1057 = vmatprep.subr.bf16.mxu0 0
      %1058 = vmatpush1.bf16.msra.mxu0 0
      %1059 = vmatprep.mubr.bf16.mxu0 0
      %1060 = vmatmul.mubr.bf16.gmra.mrb[0].mxu0 %v1022
      %v1061 = vpop.f32.mrb[0].mxu0
      %v1062 = vadd.f32 0.0, %v1061
      %v1063 = vpop.f32.mrb[0].mxu0
      %v1064 = vpop.f32.mrb[0].mxu0
      %v1065 = vpop.f32.mrb[0].mxu0
      %1066 = vdwg.mxu0
      %v1067 = vrcp.pop %v1017
      %v1068 = vmul.f32 %v1062, %v1067
      %1070 = vrot.lane.b32.xlu0 %v1068, 24
      %v1071 = vpop.permute.xlu0 %1070
      %vm1073 = vcmask 261312
      %1074 = vst.msk [vmem:[#allocation3] sm:$0xff] %vm1073, %v1071
      %v1075 = vld [vmem:[#allocation3] sm:$0xff]
      %v1076 = vpack.c.bf16 %v1075, %v1075
      %v1077 = vld [vmem:[%s7] sm:$0xf]
      %v1078 = vld [vmem:[%s7 + $0x4] sm:$0xf]
      %v1079 = vld [vmem:[%s7 + $0x8] sm:$0xf]
      %v1080 = vld [vmem:[%s7 + $0xc] sm:$0xf]
      %v1081 = vld [vmem:[%s8] sm:$0x1]
      %v1083 = vlaneseq
      %v1084 = vshrl.u32 %v1083, 7
      %v1085 = vsub.s32 0, %v1084
      %v1086 = vrot.slane %v1081, %v1085
      %v1092 = vunpack.c.l.b16 %v1077
      %v1093 = vunpack.c.l.b16 %v1078
      %v1094 = vunpack.c.l.b16 %v1079
      %v1095 = vunpack.c.l.b16 %v1080
      %v1096 = vpack.c.b16 %v1093, %v1092
      %v1097 = vpack.c.b16 %v1095, %v1094
      %v1101 = vsel %vm546, %v1076, 0
      %1103 = vmatprep.subr.bf16.mxu0 0
      %1104 = vmatpush1.bf16.msra.mxu0 %v1096
      %1105 = vmatprep.subr.bf16.mxu0 0
      %1106 = vmatpush1.bf16.msra.mxu0 %v1097
      %1107 = vmatprep.subr.bf16.mxu0 0
      %1108 = vmatpush1.bf16.msra.mxu0 0
      %1109 = vmatprep.subr.bf16.mxu0 0
      %1110 = vmatpush1.bf16.msra.mxu0 0
      %1111 = vmatprep.subr.bf16.mxu0 0
      %1112 = vmatpush1.bf16.msra.mxu0 0
      %1113 = vmatprep.subr.bf16.mxu0 0
      %1114 = vmatpush1.bf16.msra.mxu0 0
      %1115 = vmatprep.subr.bf16.mxu0 0
      %1116 = vmatpush1.bf16.msra.mxu0 0
      %1117 = vmatprep.subr.bf16.mxu0 0
      %1118 = vmatpush1.bf16.msra.mxu0 0
      %1119 = vmatprep.subr.bf16.mxu0 0
      %1120 = vmatpush1.bf16.msra.mxu0 0
      %1121 = vmatprep.subr.bf16.mxu0 0
      %1122 = vmatpush1.bf16.msra.mxu0 0
      %1123 = vmatprep.subr.bf16.mxu0 0
      %1124 = vmatpush1.bf16.msra.mxu0 0
      %1125 = vmatprep.subr.bf16.mxu0 0
      %1126 = vmatpush1.bf16.msra.mxu0 0
      %1127 = vmatprep.subr.bf16.mxu0 0
      %1128 = vmatpush1.bf16.msra.mxu0 0
      %1129 = vmatprep.subr.bf16.mxu0 0
      %1130 = vmatpush1.bf16.msra.mxu0 0
      %1131 = vmatprep.subr.bf16.mxu0 0
      %1132 = vmatpush1.bf16.msra.mxu0 0
      %1133 = vmatprep.subr.bf16.mxu0 0
      %1134 = vmatpush1.bf16.msra.mxu0 0
      %1135 = vmatprep.mubr.bf16.mxu0 0
      %1136 = vmatmul.mubr.bf16.gmra.mrb[0].mxu0 %v1101
      %v1137 = vpop.f32.mrb[0].mxu0
      %v1138 = vadd.f32 %v1086, %v1137
      %v1139 = vpop.f32.mrb[0].mxu0
      %v1140 = vpop.f32.mrb[0].mxu0
      %v1141 = vpop.f32.mrb[0].mxu0
      %1142 = vdwg.mxu0
      %v1143 = vadd.f32 %v521, %v1138
      %v1144 = vsel %vm546, %v1143, 0.0
      %1145 = vadd.xlane.f32.xlu0 %v1144
      %v1146 = vpop.xlane.xlu0 %1145
      %v1147 = vrcp.pop 32.0
      %v1148 = vmul.f32 %v1146, %v1147
      %v1149 = vsub.f32 %v1143, %v1148
      %v1150 = vmul.f32 %v1149, %v1149
      %v1151 = vsel %vm546, %v1150, 0.0
      %1152 = vadd.xlane.f32.xlu0 %v1151
      %v1153 = vpop.xlane.xlu0 %1152
      %v1154 = vmul.f32 %v1153, %v1147
      %v1155 = vadd.f32 %v1154, 1e-05
      %v1156 = vrsqrt.pop %v1155
      %v1157 = vmul.f32 %v1149, %v1156
      %v1158 = vld [vmem:[%s9] sm:$0x1]
      %v1160 = vlaneseq
      %v1161 = vshrl.u32 %v1160, 7
      %v1162 = vsub.s32 0, %v1161
      %v1163 = vrot.slane %v1158, %v1162
      %v1165 = vmul.f32 %v1157, %v1163
      %v1166 = vld [vmem:[%s10] sm:$0x1]
      %v1168 = vlaneseq
      %v1169 = vshrl.u32 %v1168, 7
      %v1170 = vsub.s32 0, %v1169
      %v1171 = vrot.slane %v1166, %v1170
      %v1173 = vadd.f32 %v1165, %v1171
      %1174 = vst.msk [vmem:[%s443] sm:$0xff] %vm546, %v1173
      %p1175 = scmp.lt.s32.totalorder %s26, 1
      %s1176 = scalar_select %p1175, %s26, 1
      %p1177 = scmp.lt.s32.totalorder %s27, 0
      %s1178 = scalar_select %p1177, %s27, 0
      %s1179 = sadd.s32 %s1178, %s1176
      %s1180 = smul.addr %s1179, 8
      %s1181 = scalar_lea.vmem %s11, %s1180
      // Predicated region
      $region69: #{transformer_forward.16} parent=63 // pred_check
        %p1182 = pneg %p302
      $region70: #{transformer_forward.16} parent=63 // pred_check_branch
        %1184 = sbr.rel (%p1182) target = $region72
      $region71: #{transformer_forward.16} parent=63 // pred_region
        _
      $region72: #{transformer_forward.16} parent=63 // pred_fallthru
        _
    $region64: #{transformer_forward.16} parent=5 // pred_fallthru
      _
    %p1185 = scmp.le.s32.totalorder 2, %s17
    // Predicated region
    $region73: #{transformer_forward.16} parent=5 // pred_check
      %p1186 = pneg %p1185
    $region74: #{transformer_forward.16} parent=5 // pred_check_branch
      %1188 = sbr.rel (%p1186) target = $region76
    $region75: #{transformer_forward.16} parent=5 // pred_region
      %s1189 = ssub.s32 %s17, 2
      // Predicated region
      $region77: #{transformer_forward.16} parent=75 // pred_check
        %p1190 = pneg %p308
      $region78: #{transformer_forward.16} parent=75 // pred_check_branch
        %1192 = sbr.rel (%p1190) target = $region80
      $region79: #{transformer_forward.16} parent=75 // pred_region
        %p1193 = scmp.lt.s32.totalorder %s28, 1
        %s1194 = scalar_select %p1193, %s28, 1
        %p1195 = scmp.lt.s32.totalorder %s29, 0
        %s1196 = scalar_select %p1195, %s29, 0
        %s1197 = sadd.s32 %s1196, %s1194
        %s1198 = smul.addr %s1197, 8
        %s1199 = scalar_lea.vmem %s11, %s1198
      $region80: #{transformer_forward.16} parent=75 // pred_fallthru
        _
    $region76: #{transformer_forward.16} parent=5 // pred_fallthru
      _
  $region6: #{transformer_forward.16} parent=0 // loop_footer
    %s21 = sadd.s32 1, %s17
  $region7: #{transformer_forward.16} parent=0 // loop_footer_branch
    %16 = sbr.rel target = $region3
  $region8: #{transformer_forward.16} parent=0 // loop_exit
    _

// kernel: transformer_forward.21
$region0: #{transformer_forward.21}
  #allocation0 [shape = 'u32[]', space=smem, size = 0x4, offset = 0x4, fixed_abs, tag = 'smem constant byte address 0x4 - core index']
  #allocation1 [shape = 'u32[144,128]{1,0:T(1,128)}', space=vmem, size = 0x12000, scoped, tag = 'internal scratch']
  %s0 = inlined_call_operand.vmem [shape: f32[16,32], index: 0, kind: input, shape index: {}]
  %s1 = inlined_call_operand.vmem [shape: bf16[128,32], index: 1, kind: input, shape index: {}]
  %s2 = inlined_call_operand.vmem [shape: f32[16,128], index: 2, kind: output, shape index: {}]
  %s3 = sld [smem:[#allocation0]]
  $region18: #{transformer_forward.21} parent=0
    _
  %s5 = ssub.s32 1, %s3
  %s6 = scalar_select 0, %s5, %s3
  // Predicated region
  $region2: #{transformer_forward.21} parent=0 // pred_check
    _
  $region3: #{transformer_forward.21} parent=0 // pred_check_branch
    %8 = sbr.rel (0) target = $region5
  $region4: #{transformer_forward.21} parent=0 // pred_region
    _
  $region5: #{transformer_forward.21} parent=0 // pred_fallthru
    _
  // Predicated region
  $region6: #{transformer_forward.21} parent=0 // pred_check
    _
  $region7: #{transformer_forward.21} parent=0 // pred_check_branch
    %10 = sbr.rel (0) target = $region9
  $region8: #{transformer_forward.21} parent=0 // pred_region
    _
  $region9: #{transformer_forward.21} parent=0 // pred_fallthru
    _
  %v12 = vld [vmem:[%s0] sm:$0xff]
  %v13 = vld [vmem:[%s0 + $0x8] sm:$0xff]
  %v14 = vpack.c.bf16 %v13, %v12
  %v15 = vld [vmem:[%s1] sm:$0xf]
  %v16 = vld [vmem:[%s1 + $0x4] sm:$0xf]
  %v17 = vld [vmem:[%s1 + $0x8] sm:$0xf]
  %v18 = vld [vmem:[%s1 + $0xc] sm:$0xf]
  %v19 = vld [vmem:[%s1 + $0x10] sm:$0xf]
  %v20 = vld [vmem:[%s1 + $0x14] sm:$0xf]
  %v21 = vld [vmem:[%s1 + $0x18] sm:$0xf]
  %v22 = vld [vmem:[%s1 + $0x1c] sm:$0xf]
  %v23 = vld [vmem:[%s1 + $0x20] sm:$0xf]
  %v24 = vld [vmem:[%s1 + $0x24] sm:$0xf]
  %v25 = vld [vmem:[%s1 + $0x28] sm:$0xf]
  %v26 = vld [vmem:[%s1 + $0x2c] sm:$0xf]
  %v27 = vld [vmem:[%s1 + $0x30] sm:$0xf]
  %v28 = vld [vmem:[%s1 + $0x34] sm:$0xf]
  %v29 = vld [vmem:[%s1 + $0x38] sm:$0xf]
  %v30 = vld [vmem:[%s1 + $0x3c] sm:$0xf]
  %v47 = vunpack.c.l.b16 %v15
  %v48 = vunpack.c.l.b16 %v16
  %v49 = vunpack.c.l.b16 %v17
  %v50 = vunpack.c.l.b16 %v18
  %v51 = vunpack.c.l.b16 %v19
  %v52 = vunpack.c.l.b16 %v20
  %v53 = vunpack.c.l.b16 %v21
  %v54 = vunpack.c.l.b16 %v22
  %v55 = vunpack.c.l.b16 %v23
  %v56 = vunpack.c.l.b16 %v24
  %v57 = vunpack.c.l.b16 %v25
  %v58 = vunpack.c.l.b16 %v26
  %v59 = vunpack.c.l.b16 %v27
  %v60 = vunpack.c.l.b16 %v28
  %v61 = vunpack.c.l.b16 %v29
  %v62 = vunpack.c.l.b16 %v30
  %v63 = vpack.c.b16 %v48, %v47
  %v64 = vpack.c.b16 %v50, %v49
  %v65 = vpack.c.b16 %v52, %v51
  %v66 = vpack.c.b16 %v54, %v53
  %v67 = vpack.c.b16 %v56, %v55
  %v68 = vpack.c.b16 %v58, %v57
  %v69 = vpack.c.b16 %v60, %v59
  %v70 = vpack.c.b16 %v62, %v61
  %vm71 = vcmask 261120
  %v73 = vsel %vm71, %v14, 0
  %v76 = vsel %vm71, %v63, 0
  %v79 = vsel %vm71, %v64, 0
  %v82 = vsel %vm71, %v65, 0
  %v85 = vsel %vm71, %v66, 0
  %v88 = vsel %vm71, %v67, 0
  %v91 = vsel %vm71, %v68, 0
  %v94 = vsel %vm71, %v69, 0
  %v97 = vsel %vm71, %v70, 0
  %99 = vmatprep.subr.bf16.mxu0 0
  %100 = vmatpush1.bf16.xpose.msra.mxu0 %v76
  %101 = vmatprep.subr.bf16.mxu0 0
  %102 = vmatpush1.bf16.xpose.msra.mxu0 %v79
  %103 = vmatprep.subr.bf16.mxu0 0
  %104 = vmatpush1.bf16.xpose.msra.mxu0 %v82
  %105 = vmatprep.subr.bf16.mxu0 0
  %106 = vmatpush1.bf16.xpose.msra.mxu0 %v85
  %107 = vmatprep.subr.bf16.mxu0 0
  %108 = vmatpush1.bf16.xpose.msra.mxu0 %v88
  %109 = vmatprep.subr.bf16.mxu0 0
  %110 = vmatpush1.bf16.xpose.msra.mxu0 %v91
  %111 = vmatprep.subr.bf16.mxu0 0
  %112 = vmatpush1.bf16.xpose.msra.mxu0 %v94
  %113 = vmatprep.subr.bf16.mxu0 0
  %114 = vmatpush1.bf16.xpose.msra.mxu0 %v97
  %115 = vmatprep.subr.bf16.mxu0 0
  %116 = vmatpush1.bf16.xpose.msra.mxu0 0
  %117 = vmatprep.subr.bf16.mxu0 0
  %118 = vmatpush1.bf16.xpose.msra.mxu0 0
  %119 = vmatprep.subr.bf16.mxu0 0
  %120 = vmatpush1.bf16.xpose.msra.mxu0 0
  %121 = vmatprep.subr.bf16.mxu0 0
  %122 = vmatpush1.bf16.xpose.msra.mxu0 0
  %123 = vmatprep.subr.bf16.mxu0 0
  %124 = vmatpush1.bf16.xpose.msra.mxu0 0
  %125 = vmatprep.subr.bf16.mxu0 0
  %126 = vmatpush1.bf16.xpose.msra.mxu0 0
  %127 = vmatprep.subr.bf16.mxu0 0
  %128 = vmatpush1.bf16.xpose.msra.mxu0 0
  %129 = vmatprep.subr.bf16.mxu0 0
  %130 = vmatpush1.bf16.xpose.msra.mxu0 0
  %131 = vmatprep.mubr.bf16.mxu0 0
  %132 = vmatmul.mubr.bf16.gmra.mrb[0].mxu0 %v73
  %v133 = vpop.f32.mrb[0].mxu0
  %v134 = vadd.f32 0.0, %v133
  %v135 = vpop.f32.mrb[0].mxu0
  %v136 = vpop.f32.mrb[0].mxu0
  %v137 = vadd.f32 0.0, %v136
  %v138 = vpop.f32.mrb[0].mxu0
  %139 = vdwg.mxu0
  %140 = vst [vmem:[%s2] sm:$0xff] %v134
  %141 = vst [vmem:[%s2 + $0x8] sm:$0xff] %v137
  // Predicated region
  $region10: #{transformer_forward.21} parent=0 // pred_check
    _
  $region11: #{transformer_forward.21} parent=0 // pred_check_branch
    %143 = sbr.rel (0) target = $region13
  $region12: #{transformer_forward.21} parent=0 // pred_region
    _
  $region13: #{transformer_forward.21} parent=0 // pred_fallthru
    _
  // Predicated region
  $region14: #{transformer_forward.21} parent=0 // pred_check
    _
  $region15: #{transformer_forward.21} parent=0 // pred_check_branch
    %145 = sbr.rel (0) target = $region17
  $region16: #{transformer_forward.21} parent=0 // pred_region
    _
  $region17: #{transformer_forward.21} parent=0 // pred_fallthru
    _

</llo_original>
